<compile_context>
chip_gen: v6e
topology: v6e:2x2x1
jax: 0.10.0
libtpu: 0.0.40
codegen_flags: <defaults>
</compile_context>

<pallas_src>
import math

import jax
import jax.numpy as jnp
import numpy as np
from jax.experimental import pallas as pl
from jax.experimental.pallas import tpu as pltpu

# ---------------- config (small shapes consistent with the module) ----------
B, M, T = 2, 4, 8            # B*M = 8 -> one sublane tile per GRU time step
RAW_IN = 12                  # TRUSMoEModel raw embedding dim (input_proj in)
E_IN = 16                    # moe_config['input_dim'] / embedding_dim
E_OUT = 16                   # moe_config['output_dim']
NUM_CLASSES = 8              # output_proj out
NUM_EXPERTS = 4
NUM_SYNERGY = 1              # SynergyExpert == FeedForwardExpert computationally
TOP_K = 2
EXPERT_HIDDEN = 32
GRU_HIDDEN = 16
TOKEN_PROC = 16
ATTN_KEY = 8
ATTN_VAL = 8

N_TOKENS = B * M * T         # 64
BM = B * M                   # 8
GRU_IN = 1 + ATTN_VAL        # 9
COMBINED = TOKEN_PROC + GRU_HIDDEN      # 32
N_OTH = M - 1                # 3
XH = NUM_EXPERTS * EXPERT_HIDDEN        # 128
IN_W = RAW_IN + 1 + 2 * N_OTH           # 19 packed input lanes
PACK_W = 16                  # packed output lanes: 8 logits | 4 gate | 2 idx | 2 pad

# ---------------- packed weight-slab layout (compile-time constants) ---------
SLAB_W = 144                 # widest entry (fused [experts|token_proc] RHS)
_ENTRIES = [
    ("w_in",  RAW_IN, E_IN),
    ("b_in",  1, E_IN),
    ("w_xcat", E_IN, XH + TOKEN_PROC),       # [w_e1 (all experts) | w_tp]
    ("b_xcat", 1, XH + TOKEN_PROC),
    ("w_q",   TOKEN_PROC, ATTN_KEY),
    ("b_q",   1, ATTN_KEY),
    ("w_kv",  2 * N_OTH, N_OTH * (ATTN_KEY + ATTN_VAL)),   # block-diag [keys|vals]
    ("b_kv",  1, N_OTH * (ATTN_KEY + ATTN_VAL)),
    ("red3",  N_OTH * ATTN_KEY, N_OTH),      # score block-sum constant
    ("exp3",  N_OTH, N_OTH * ATTN_VAL),      # attn block-replicate constant
    ("sumI",  N_OTH * ATTN_VAL, ATTN_VAL),   # ctx identity-stack constant
    ("w_ih",  GRU_IN, 3 * GRU_HIDDEN),
    ("b_ih",  1, 3 * GRU_HIDDEN),
    ("w_hh",  GRU_HIDDEN, 3 * GRU_HIDDEN),
    ("b_hh",  1, 3 * GRU_HIDDEN),
    ("w_f1",  COMBINED, COMBINED // 2),
    ("b_f1",  1, COMBINED // 2),
    ("w_f2",  COMBINED // 2, NUM_EXPERTS),
    ("b_f2",  1, NUM_EXPERTS),
    ("e4exp", NUM_EXPERTS, XH),              # routing-weight block-expand constant
    ("w_eo",  XH, NUM_CLASSES),              # w_e2_cat @ w_out (offline fused)
    ("bw_eo", NUM_EXPERTS, NUM_CLASSES),     # b_e2 @ w_out
    ("b_out", 1, NUM_CLASSES),
]


def _build_layout():
    layout, off = {}, 0
    for name, h, w in _ENTRIES:
        layout[name] = (off, h, w)
        off += ((h + 7) // 8) * 8            # keep every entry sublane-tile aligned
    return layout, off


LAYOUT, SLAB_ROWS = _build_layout()


# ------------------------------ fused Pallas kernel ---------------------------
def _fused_kernel(in_ref, slab_ref, out_ref):
    f32 = jnp.float32

    def W(name):                                      # static sub-view of the slab
        off, h, w = LAYOUT[name]
        return slab_ref[off:off + h, 0:w]

    x_raw = in_ref[:, 0:RAW_IN]                                      # (N, 12)
    u = in_ref[:, RAW_IN:RAW_IN + 1]                                 # (N, 1)
    pairs = in_ref[:, RAW_IN + 1:IN_W]                               # (N, 6)

    # ---- TRUSMoEModel.input_proj ----
    x_tok = (jnp.dot(x_raw, W("w_in"), preferred_element_type=f32)
             + W("b_in"))                                            # (N, 16)

    # ---- token processor + all experts' first layers (shared LHS, one matmul) ----
    y = jnp.maximum(
        jnp.dot(x_tok, W("w_xcat"), preferred_element_type=f32) + W("b_xcat"), 0.0)
    h_all = y[:, :XH]                                                # (N, 128)
    proc = y[:, XH:XH + TOKEN_PROC]                                  # (N, 16)

    # ---- router: pairwise R/S attention (fully vectorized) ----
    q = jnp.dot(proc, W("w_q"), preferred_element_type=f32) + W("b_q")   # (N, 8)
    kv = jnp.dot(pairs, W("w_kv"), preferred_element_type=f32) + W("b_kv")  # (N, 48)
    keys = kv[:, :N_OTH * ATTN_KEY]                                  # (N, 24)
    vals = kv[:, N_OTH * ATTN_KEY:]                                  # (N, 24)
    q_tiled = jnp.concatenate([q] * N_OTH, axis=-1)                  # (N, 24)
    inv_sqrt_k = 1.0 / math.sqrt(ATTN_KEY)
    scores = jnp.dot(q_tiled * keys, W("red3"),
                     preferred_element_type=f32) * inv_sqrt_k        # (N, 3)
    s_max = jnp.max(scores, axis=-1, keepdims=True)
    se = jnp.exp(scores - s_max)
    attn = se / jnp.sum(se, axis=-1, keepdims=True)                  # (N, 3)
    attn_wide = jnp.dot(attn, W("exp3"), preferred_element_type=f32)     # (N, 24)
    ctx = jnp.dot(attn_wide * vals, W("sumI"), preferred_element_type=f32)  # (N, 8)

    # ---- router: GRU over time (time-major, input matmul hoisted, no scratch) ----
    gru_x = jnp.concatenate([u, ctx], axis=-1)                       # (N, 9)
    gi_all = (jnp.dot(gru_x, W("w_ih"), preferred_element_type=f32)
              + W("b_ih"))                                           # (N, 48)
    w_hh = W("w_hh")
    b_hh = W("b_hh")
    H = GRU_HIDDEN
    h = jnp.zeros((BM, H), f32)
    hs = []
    for t in range(T):                                               # fully unrolled
        gi = gi_all[t * BM:(t + 1) * BM, :]                          # static (8, 48)
        gh = jnp.dot(h, w_hh, preferred_element_type=f32) + b_hh
        r = jax.nn.sigmoid(gi[:, :H] + gh[:, :H])
        z = jax.nn.sigmoid(gi[:, H:2 * H] + gh[:, H:2 * H])
        n = jnp.tanh(gi[:, 2 * H:] + r * gh[:, 2 * H:])
        h = (1.0 - z) * n + z * h
        hs.append(h)
    rus_ctx = jnp.concatenate(hs, axis=0)                            # (N, 16)

    # ---- router: final MLP -> logits ----
    combined = jnp.concatenate([proc, rus_ctx], axis=-1)             # (N, 32)
    h1 = jnp.maximum(
        jnp.dot(combined, W("w_f1"), preferred_element_type=f32) + W("b_f1"), 0.0)
    logits = (jnp.dot(h1, W("w_f2"), preferred_element_type=f32)
              + W("b_f2"))                                           # (N, 4)

    # ---- aux: full softmax gating probs ----
    l_max = jnp.max(logits, axis=-1, keepdims=True)
    le = jnp.exp(logits - l_max)
    gate = le / jnp.sum(le, axis=-1, keepdims=True)                  # (N, 4)

    # ---- top-2 routing + renormalizing softmax (in-kernel) ----
    eidx = jax.lax.broadcasted_iota(jnp.int32, logits.shape, 1).astype(f32)
    big = jnp.float32(1e9)
    i1 = jnp.min(jnp.where(logits == l_max, eidx, big), axis=-1, keepdims=True)
    mask1 = (eidx == i1)
    logits2 = jnp.where(mask1, -big, logits)
    m2 = jnp.max(logits2, axis=-1, keepdims=True)
    i2 = jnp.min(jnp.where(logits2 == m2, eidx, big), axis=-1, keepdims=True)
    mask2 = (eidx == i2)
    e2 = jnp.exp(m2 - l_max)                                         # m2 <= l_max
    inv = 1.0 / (1.0 + e2)
    w_dense = inv * mask1.astype(f32) + (e2 * inv) * mask2.astype(f32)   # (N, 4)

    # ---- MoE combine + output_proj (w_e2/w_out fused offline, MXU block-expand) ----
    scale128 = jnp.dot(w_dense, W("e4exp"), preferred_element_type=f32)  # (N, 128)
    h_scaled = h_all * scale128                                      # (N, 128)
    out = (jnp.dot(h_scaled, W("w_eo"), preferred_element_type=f32)
           + jnp.dot(w_dense, W("bw_eo"), preferred_element_type=f32)
           + W("b_out"))                                             # (N, 8)

    # ---- single lane-packed output slab ----
    out_ref[...] = jnp.concatenate(
        [out, gate, i1, i2, jnp.zeros((N_TOKENS, 2), f32)], axis=-1)  # (N, 16)


# ------------------------------- parameters ----------------------------------
def init_params(key):
    keys = jax.random.split(key, 24)

    def u(k, shape, fan_in):
        bound = 1.0 / math.sqrt(fan_in)
        return jax.random.uniform(k, shape, jnp.float32, -bound, bound)

    p = {}
    p["w_in"] = u(keys[0], (RAW_IN, E_IN), RAW_IN)
    p["b_in"] = u(keys[1], (E_IN,), RAW_IN)
    p["w_tp"] = u(keys[2], (E_IN, TOKEN_PROC), E_IN)
    p["b_tp"] = u(keys[3], (TOKEN_PROC,), E_IN)
    p["w_q"] = u(keys[4], (TOKEN_PROC, ATTN_KEY), TOKEN_PROC)
    p["b_q"] = u(keys[5], (ATTN_KEY,), TOKEN_PROC)
    p["w_k"] = u(keys[6], (2, ATTN_KEY), 2)
    p["b_k"] = u(keys[7], (ATTN_KEY,), 2)
    p["w_v"] = u(keys[8], (2, ATTN_VAL), 2)
    p["b_v"] = u(keys[9], (ATTN_VAL,), 2)
    # GRU stored transposed: (in, 3H), gate order r|z|n (PyTorch layout)
    p["w_ih"] = u(keys[10], (GRU_IN, 3 * GRU_HIDDEN), GRU_HIDDEN)
    p["w_hh"] = u(keys[11], (GRU_HIDDEN, 3 * GRU_HIDDEN), GRU_HIDDEN)
    p["b_ih"] = u(keys[12], (3 * GRU_HIDDEN,), GRU_HIDDEN)
    p["b_hh"] = u(keys[13], (3 * GRU_HIDDEN,), GRU_HIDDEN)
    p["w_f1"] = u(keys[14], (COMBINED, COMBINED // 2), COMBINED)
    p["b_f1"] = u(keys[15], (COMBINED // 2,), COMBINED)
    p["w_f2"] = u(keys[16], (COMBINED // 2, NUM_EXPERTS), COMBINED // 2)
    p["b_f2"] = u(keys[17], (NUM_EXPERTS,), COMBINED // 2)
    # experts (SynergyExpert == FeedForwardExpert; stacked along axis 0)
    p["w_e1"] = u(keys[18], (NUM_EXPERTS, E_IN, EXPERT_HIDDEN), E_IN)
    p["b_e1"] = u(keys[19], (NUM_EXPERTS, EXPERT_HIDDEN), E_IN)
    p["w_e2"] = u(keys[20], (NUM_EXPERTS, EXPERT_HIDDEN, E_OUT), EXPERT_HIDDEN)
    p["b_e2"] = u(keys[21], (NUM_EXPERTS, E_OUT), EXPERT_HIDDEN)
    p["w_out"] = u(keys[22], (E_OUT, NUM_CLASSES), E_OUT)
    p["b_out"] = u(keys[23], (NUM_CLASSES,), E_OUT)
    return p


def prepare_kernel_params(p):
    """One-time offline repack of all weights into a single tile-aligned slab."""
    pn = {k: np.asarray(v, np.float32) for k, v in p.items()}

    # fused [all experts' W1 | token_processor W] sharing LHS x_tok
    w_e1_cat = np.concatenate([pn["w_e1"][e] for e in range(NUM_EXPERTS)], axis=1)
    b_e1_cat = pn["b_e1"].reshape(-1)
    w_xcat = np.concatenate([w_e1_cat, pn["w_tp"]], axis=1)          # (16, 144)
    b_xcat = np.concatenate([b_e1_cat, pn["b_tp"]])                  # (144,)

    # block-diagonal key/value projections for the 3 "other" modalities
    wk_blk = np.zeros((2 * N_OTH, N_OTH * ATTN_KEY), np.float32)
    wv_blk = np.zeros((2 * N_OTH, N_OTH * ATTN_VAL), np.float32)
    for j in range(N_OTH):
        wk_blk[2 * j:2 * j + 2, ATTN_KEY * j:ATTN_KEY * (j + 1)] = pn["w_k"]
        wv_blk[2 * j:2 * j + 2, ATTN_VAL * j:ATTN_VAL * (j + 1)] = pn["w_v"]
    w_kv = np.concatenate([wk_blk, wv_blk], axis=1)                  # (6, 48)
    b_kv = np.concatenate([np.tile(pn["b_k"], N_OTH), np.tile(pn["b_v"], N_OTH)])

    # attention / expert constant matrices (so all broadcasts become MXU matmuls)
    red3 = np.repeat(np.eye(N_OTH, dtype=np.float32), ATTN_KEY, axis=0)   # (24, 3)
    exp3 = np.repeat(np.eye(N_OTH, dtype=np.float32), ATTN_VAL, axis=1)   # (3, 24)
    sumI = np.tile(np.eye(ATTN_VAL, dtype=np.float32), (N_OTH, 1))        # (24, 8)
    e4exp = np.repeat(np.eye(NUM_EXPERTS, dtype=np.float32),
                      EXPERT_HIDDEN, axis=1)                              # (4, 128)

    # experts' second layer fused with output_proj (no nonlinearity between them)
    w_e2_cat = pn["w_e2"].reshape(XH, E_OUT)
    w_eo = w_e2_cat @ pn["w_out"]                                    # (128, 8)
    bw_eo = pn["b_e2"] @ pn["w_out"]                                 # (4, 8)

    slab = np.zeros((SLAB_ROWS, SLAB_W), np.float32)

    def put(name, arr):
        off, h, w = LAYOUT[name]
        slab[off:off + h, :w] = np.asarray(arr, np.float32).reshape(h, w)

    put("w_in", pn["w_in"]);   put("b_in", pn["b_in"])
    put("w_xcat", w_xcat);     put("b_xcat", b_xcat)
    put("w_q", pn["w_q"]);     put("b_q", pn["b_q"])
    put("w_kv", w_kv);         put("b_kv", b_kv)
    put("red3", red3);         put("exp3", exp3);      put("sumI", sumI)
    put("w_ih", pn["w_ih"]);   put("b_ih", pn["b_ih"])
    put("w_hh", pn["w_hh"]);   put("b_hh", pn["b_hh"])
    put("w_f1", pn["w_f1"]);   put("b_f1", pn["b_f1"])
    put("w_f2", pn["w_f2"]);   put("b_f2", pn["b_f2"])
    put("e4exp", e4exp)
    put("w_eo", w_eo);         put("bw_eo", bw_eo);    put("b_out", pn["b_out"])
    return jnp.asarray(slab)


# ------------------------------ forward wrapper -------------------------------
def _prepare_inputs(token_embeddings, U, R, S):
    # Time-major flat token order (t, b, m): GRU steps become contiguous BM rows.
    x_tm = jnp.transpose(token_embeddings, (2, 0, 1, 3)).reshape(N_TOKENS, RAW_IN)
    u_tm = jnp.transpose(U, (2, 0, 1)).reshape(N_TOKENS, 1)
    # TODO(synk): this pairwise R/S gather + the (T,B,M)<->(B,M,T) relayouts stay as
    # a single plain-JAX static-index prep (no compute); all math is in Pallas.
    others = np.array([[j for j in range(M) if j != m] for m in range(M)],
                      dtype=np.int32)                                # (M, M-1)
    oi = jnp.broadcast_to(jnp.asarray(others)[None, :, :, None], (B, M, M - 1, T))
    R_sel = jnp.take_along_axis(R, oi, axis=2)                       # (B,M,M-1,T)
    S_sel = jnp.take_along_axis(S, oi, axis=2)
    pair = jnp.stack([R_sel, S_sel], axis=-1)                        # (B,M,M-1,T,2)
    pairs_tm = jnp.transpose(pair, (3, 0, 1, 2, 4)).reshape(N_TOKENS, 2 * N_OTH)
    return jnp.concatenate([x_tm, u_tm, pairs_tm], axis=-1)          # (N, 19)


def fused_forward(weight_slab, token_embeddings, U, R, S):
    in_slab = _prepare_inputs(token_embeddings, U, R, S)
    vmem = pl.BlockSpec(memory_space=pltpu.MemorySpace.VMEM)
    packed = pl.pallas_call(
        _fused_kernel,
        out_shape=jax.ShapeDtypeStruct((N_TOKENS, PACK_W), jnp.float32),
        in_specs=[vmem, vmem],
        out_specs=vmem,
    )(in_slab, weight_slab)

    def untm(a):
        return jnp.transpose(a.reshape(T, B, M, a.shape[-1]), (1, 2, 0, 3))

    final = untm(packed[:, :NUM_CLASSES])                            # (B,M,T,classes)
    gate = untm(packed[:, NUM_CLASSES:NUM_CLASSES + NUM_EXPERTS])
    idx = untm(packed[:, NUM_CLASSES + NUM_EXPERTS:
                      NUM_CLASSES + NUM_EXPERTS + TOP_K]).astype(jnp.int32)
    aux = {"gating_probs": gate, "expert_indices": idx}
    return final, aux


# ------------------------- pure-JAX reference (check) -------------------------
def ref_forward(params, token_embeddings, U, R, S):
    x = token_embeddings.reshape(-1, RAW_IN) @ params["w_in"] + params["b_in"]
    tokens_flat = x.reshape(N_TOKENS, E_IN)

    proc = jnp.maximum(tokens_flat @ params["w_tp"] + params["b_tp"], 0.0)
    proc = proc.reshape(B, M, T, TOKEN_PROC)

    q = jnp.einsum("bmtp,pk->bmtk", proc, params["w_q"]) + params["b_q"]
    others = np.array([[j for j in range(M) if j != m] for m in range(M)],
                      dtype=np.int32)
    oi = jnp.broadcast_to(jnp.asarray(others)[None, :, :, None], (B, M, M - 1, T))
    R_sel = jnp.take_along_axis(R, oi, axis=2)
    S_sel = jnp.take_along_axis(S, oi, axis=2)
    pair = jnp.stack([R_sel, S_sel], axis=-1)                        # (B,M,M-1,T,2)
    keys = jnp.einsum("bmjtc,ck->bmjtk", pair, params["w_k"]) + params["b_k"]
    vals = jnp.einsum("bmjtc,cv->bmjtv", pair, params["w_v"]) + params["b_v"]
    scores = jnp.einsum("bmtk,bmjtk->bmtj", q, keys) / math.sqrt(ATTN_KEY)
    attn = jax.nn.softmax(scores, axis=-1)
    ctx = jnp.einsum("bmtj,bmjtv->bmtv", attn, vals)                 # (B,M,T,Vd)

    gru_in = jnp.concatenate([U[..., None], ctx], axis=-1).reshape(BM, T, GRU_IN)

    def step(h, xt):
        gi = xt @ params["w_ih"] + params["b_ih"]
        gh = h @ params["w_hh"] + params["b_hh"]
        H = GRU_HIDDEN
        r = jax.nn.sigmoid(gi[:, :H] + gh[:, :H])
        z = jax.nn.sigmoid(gi[:, H:2 * H] + gh[:, H:2 * H])
        n = jnp.tanh(gi[:, 2 * H:] + r * gh[:, 2 * H:])
        h_new = (1.0 - z) * n + z * h
        return h_new, h_new

    _, ys = jax.lax.scan(step, jnp.zeros((BM, GRU_HIDDEN), jnp.float32),
                         jnp.transpose(gru_in, (1, 0, 2)))
    rus_ctx = jnp.transpose(ys, (1, 0, 2)).reshape(B, M, T, GRU_HIDDEN)

    combined = jnp.concatenate([proc, rus_ctx], axis=-1).reshape(N_TOKENS, COMBINED)
    h1 = jnp.maximum(combined @ params["w_f1"] + params["b_f1"], 0.0)
    logits = h1 @ params["w_f2"] + params["b_f2"]
    gating = jax.nn.softmax(logits, axis=-1)

    topk_w, topk_i = jax.lax.top_k(logits, TOP_K)
    topk_p = jax.nn.softmax(topk_w, axis=-1)
    w_dense = jnp.sum(jax.nn.one_hot(topk_i, NUM_EXPERTS, dtype=jnp.float32)
                      * topk_p[..., None], axis=1)

    moe_out = jnp.zeros((N_TOKENS, E_OUT), jnp.float32)
    for e in range(NUM_EXPERTS):
        h = jnp.maximum(tokens_flat @ params["w_e1"][e] + params["b_e1"][e], 0.0)
        y = h @ params["w_e2"][e] + params["b_e2"][e]
        moe_out = moe_out + w_dense[:, e:e + 1] * y

    out = moe_out @ params["w_out"] + params["b_out"]
    return (out.reshape(B, M, T, NUM_CLASSES),
            gating.reshape(B, M, T, NUM_EXPERTS),
            topk_i.reshape(B, M, T, TOP_K))


# ------------------------------------ main ------------------------------------
if __name__ == "__main__":
    key = jax.random.PRNGKey(0)
    k_x, k_u, k_r, k_s, k_p = jax.random.split(key, 5)
    token_embeddings = jax.random.normal(k_x, (B, M, T, RAW_IN), jnp.float32)
    U = jax.random.uniform(k_u, (B, M, T), jnp.float32)
    R = jax.random.uniform(k_r, (B, M, M, T), jnp.float32)
    S = jax.random.uniform(k_s, (B, M, M, T), jnp.float32)
    params = init_params(k_p)
    weight_slab = prepare_kernel_params(params)

    fwd = jax.jit(fused_forward)
    final, aux = fwd(weight_slab, token_embeddings, U, R, S)
    final = jax.block_until_ready(final)

    ref_out, ref_gate, ref_idx = ref_forward(params, token_embeddings, U, R, S)
    np.testing.assert_allclose(np.asarray(final), np.asarray(ref_out),
                               rtol=2e-3, atol=2e-3)
    np.testing.assert_allclose(np.asarray(aux["gating_probs"]), np.asarray(ref_gate),
                               rtol=2e-3, atol=2e-3)
    assert aux["expert_indices"].shape == (B, M, T, TOP_K)
    assert aux["expert_indices"].dtype == jnp.int32
    assert aux["gating_probs"].shape == (B, M, T, NUM_EXPERTS)
    print("KERNEL_OK")
</pallas_src>

<mosaic_0001>
module attributes {stable_mosaic.version = 11 : i64} {
  func.func @_fused_kernel(%arg0: memref<64x19xf32, #tpu.memory_space<vmem>>, %arg1: memref<408x144xf32, #tpu.memory_space<vmem>>, %arg2: memref<64x16xf32, #tpu.memory_space<vmem>>) attributes {dimension_semantics = [], scalar_prefetch = 0 : i64, scratch_operands = 0 : i64, tpu.core_type = #tpu.core_type<tc>} {
    %c0 = arith.constant 0 : index
    %c0_0 = arith.constant 0 : index
    %0 = vector.load %arg0[%c0, %c0_0] : memref<64x19xf32, #tpu.memory_space<vmem>>, vector<64x12xf32>
    %c0_1 = arith.constant 0 : index
    %c12 = arith.constant 12 : index
    %1 = vector.load %arg0[%c0_1, %c12] : memref<64x19xf32, #tpu.memory_space<vmem>>, vector<64x1xf32>
    %c0_2 = arith.constant 0 : index
    %c13 = arith.constant 13 : index
    %2 = vector.load %arg0[%c0_2, %c13] : memref<64x19xf32, #tpu.memory_space<vmem>>, vector<64x6xf32>
    %c0_3 = arith.constant 0 : index
    %c0_4 = arith.constant 0 : index
    %3 = vector.load %arg1[%c0_3, %c0_4] : memref<408x144xf32, #tpu.memory_space<vmem>>, vector<12x16xf32>
    %cst = arith.constant dense<0.000000e+00> : vector<64x16xf32>
    %4 = tpu.matmul %0, %3, %cst {dimension_numbers = #tpu.dot_dimension_numbers<[1], [0], [0], [1], [0, 0, 1, 1], [], []>} : vector<64x12xf32>, vector<12x16xf32>, vector<64x16xf32> -> vector<64x16xf32>
    %c16 = arith.constant 16 : index
    %c0_5 = arith.constant 0 : index
    %5 = vector.load %arg1[%c16, %c0_5] : memref<408x144xf32, #tpu.memory_space<vmem>>, vector<1x16xf32>
    %6 = vector.broadcast %5 : vector<1x16xf32> to vector<64x16xf32>
    %7 = arith.addf %4, %6 : vector<64x16xf32>
    %c24 = arith.constant 24 : index
    %c0_6 = arith.constant 0 : index
    %8 = vector.load %arg1[%c24, %c0_6] : memref<408x144xf32, #tpu.memory_space<vmem>>, vector<16x144xf32>
    %cst_7 = arith.constant dense<0.000000e+00> : vector<64x144xf32>
    %9 = tpu.matmul %7, %8, %cst_7 {dimension_numbers = #tpu.dot_dimension_numbers<[1], [0], [0], [1], [0, 0, 1, 1], [], []>} : vector<64x16xf32>, vector<16x144xf32>, vector<64x144xf32> -> vector<64x144xf32>
    %c40 = arith.constant 40 : index
    %c0_8 = arith.constant 0 : index
    %10 = vector.load %arg1[%c40, %c0_8] : memref<408x144xf32, #tpu.memory_space<vmem>>, vector<1x144xf32>
    %11 = vector.broadcast %10 : vector<1x144xf32> to vector<64x144xf32>
    %12 = arith.addf %9, %11 : vector<64x144xf32>
    %cst_9 = arith.constant 0.000000e+00 : f32
    %13 = vector.broadcast %cst_9 : f32 to vector<64x144xf32>
    %14 = arith.maximumf %12, %13 : vector<64x144xf32>
    %15 = vector.extract_strided_slice %14 {offsets = [0, 0], sizes = [64, 128], strides = [1, 1]} : vector<64x144xf32> to vector<64x128xf32>
    %16 = vector.extract_strided_slice %14 {offsets = [0, 128], sizes = [64, 16], strides = [1, 1]} : vector<64x144xf32> to vector<64x16xf32>
    %c48 = arith.constant 48 : index
    %c0_10 = arith.constant 0 : index
    %17 = vector.load %arg1[%c48, %c0_10] : memref<408x144xf32, #tpu.memory_space<vmem>>, vector<16x8xf32>
    %cst_11 = arith.constant dense<0.000000e+00> : vector<64x8xf32>
    %18 = tpu.matmul %16, %17, %cst_11 {dimension_numbers = #tpu.dot_dimension_numbers<[1], [0], [0], [1], [0, 0, 1, 1], [], []>} : vector<64x16xf32>, vector<16x8xf32>, vector<64x8xf32> -> vector<64x8xf32>
    %c64 = arith.constant 64 : index
    %c0_12 = arith.constant 0 : index
    %19 = vector.load %arg1[%c64, %c0_12] : memref<408x144xf32, #tpu.memory_space<vmem>>, vector<1x8xf32>
    %20 = vector.broadcast %19 : vector<1x8xf32> to vector<64x8xf32>
    %21 = arith.addf %18, %20 : vector<64x8xf32>
    %c72 = arith.constant 72 : index
    %c0_13 = arith.constant 0 : index
    %22 = vector.load %arg1[%c72, %c0_13] : memref<408x144xf32, #tpu.memory_space<vmem>>, vector<6x48xf32>
    %cst_14 = arith.constant dense<0.000000e+00> : vector<64x48xf32>
    %23 = tpu.matmul %2, %22, %cst_14 {dimension_numbers = #tpu.dot_dimension_numbers<[1], [0], [0], [1], [0, 0, 1, 1], [], []>} : vector<64x6xf32>, vector<6x48xf32>, vector<64x48xf32> -> vector<64x48xf32>
    %c80 = arith.constant 80 : index
    %c0_15 = arith.constant 0 : index
    %24 = vector.load %arg1[%c80, %c0_15] : memref<408x144xf32, #tpu.memory_space<vmem>>, vector<1x48xf32>
    %25 = vector.broadcast %24 : vector<1x48xf32> to vector<64x48xf32>
    %26 = arith.addf %23, %25 : vector<64x48xf32>
    %27 = vector.extract_strided_slice %26 {offsets = [0, 0], sizes = [64, 24], strides = [1, 1]} : vector<64x48xf32> to vector<64x24xf32>
    %28 = vector.extract_strided_slice %26 {offsets = [0, 24], sizes = [64, 24], strides = [1, 1]} : vector<64x48xf32> to vector<64x24xf32>
    %29 = tpu.concatenate %21, %21, %21 in 1 : vector<64x8xf32>, vector<64x8xf32>, vector<64x8xf32> -> vector<64x24xf32>
    %30 = arith.mulf %29, %27 : vector<64x24xf32>
    %c88 = arith.constant 88 : index
    %c0_16 = arith.constant 0 : index
    %31 = vector.load %arg1[%c88, %c0_16] : memref<408x144xf32, #tpu.memory_space<vmem>>, vector<24x3xf32>
    %cst_17 = arith.constant dense<0.000000e+00> : vector<64x3xf32>
    %32 = tpu.matmul %30, %31, %cst_17 {dimension_numbers = #tpu.dot_dimension_numbers<[1], [0], [0], [1], [0, 0, 1, 1], [], []>} : vector<64x24xf32>, vector<24x3xf32>, vector<64x3xf32> -> vector<64x3xf32>
    %cst_18 = arith.constant 0.353553385 : f32
    %33 = vector.broadcast %cst_18 : f32 to vector<64x3xf32>
    %34 = arith.mulf %32, %33 : vector<64x3xf32>
    %cst_19 = arith.constant dense<0xFF800000> : vector<64xf32>
    %35 = vector.multi_reduction <maximumf>, %34, %cst_19 [1] : vector<64x3xf32> to vector<64xf32>
    %36 = vector.shape_cast %35 : vector<64xf32> to vector<64x1xf32>
    %37 = vector.broadcast %36 : vector<64x1xf32> to vector<64x3xf32>
    %38 = arith.subf %34, %37 : vector<64x3xf32>
    %39 = math.exp %38 : vector<64x3xf32>
    %cst_20 = arith.constant dense<0.000000e+00> : vector<64xf32>
    %40 = vector.multi_reduction <add>, %39, %cst_20 [1] : vector<64x3xf32> to vector<64xf32>
    %41 = vector.shape_cast %40 : vector<64xf32> to vector<64x1xf32>
    %42 = vector.broadcast %41 : vector<64x1xf32> to vector<64x3xf32>
    %43 = arith.divf %39, %42 : vector<64x3xf32>
    %c112 = arith.constant 112 : index
    %c0_21 = arith.constant 0 : index
    %44 = vector.load %arg1[%c112, %c0_21] : memref<408x144xf32, #tpu.memory_space<vmem>>, vector<3x24xf32>
    %cst_22 = arith.constant dense<0.000000e+00> : vector<64x24xf32>
    %45 = tpu.matmul %43, %44, %cst_22 {dimension_numbers = #tpu.dot_dimension_numbers<[1], [0], [0], [1], [0, 0, 1, 1], [], []>} : vector<64x3xf32>, vector<3x24xf32>, vector<64x24xf32> -> vector<64x24xf32>
    %46 = arith.mulf %45, %28 : vector<64x24xf32>
    %c120 = arith.constant 120 : index
    %c0_23 = arith.constant 0 : index
    %47 = vector.load %arg1[%c120, %c0_23] : memref<408x144xf32, #tpu.memory_space<vmem>>, vector<24x8xf32>
    %cst_24 = arith.constant dense<0.000000e+00> : vector<64x8xf32>
    %48 = tpu.matmul %46, %47, %cst_24 {dimension_numbers = #tpu.dot_dimension_numbers<[1], [0], [0], [1], [0, 0, 1, 1], [], []>} : vector<64x24xf32>, vector<24x8xf32>, vector<64x8xf32> -> vector<64x8xf32>
    %49 = tpu.concatenate %1, %48 in 1 : vector<64x1xf32>, vector<64x8xf32> -> vector<64x9xf32>
    %c144 = arith.constant 144 : index
    %c0_25 = arith.constant 0 : index
    %50 = vector.load %arg1[%c144, %c0_25] : memref<408x144xf32, #tpu.memory_space<vmem>>, vector<9x48xf32>
    %cst_26 = arith.constant dense<0.000000e+00> : vector<64x48xf32>
    %51 = tpu.matmul %49, %50, %cst_26 {dimension_numbers = #tpu.dot_dimension_numbers<[1], [0], [0], [1], [0, 0, 1, 1], [], []>} : vector<64x9xf32>, vector<9x48xf32>, vector<64x48xf32> -> vector<64x48xf32>
    %c160 = arith.constant 160 : index
    %c0_27 = arith.constant 0 : index
    %52 = vector.load %arg1[%c160, %c0_27] : memref<408x144xf32, #tpu.memory_space<vmem>>, vector<1x48xf32>
    %53 = vector.broadcast %52 : vector<1x48xf32> to vector<64x48xf32>
    %54 = arith.addf %51, %53 : vector<64x48xf32>
    %c168 = arith.constant 168 : index
    %c0_28 = arith.constant 0 : index
    %55 = vector.load %arg1[%c168, %c0_28] : memref<408x144xf32, #tpu.memory_space<vmem>>, vector<16x48xf32>
    %c184 = arith.constant 184 : index
    %c0_29 = arith.constant 0 : index
    %56 = vector.load %arg1[%c184, %c0_29] : memref<408x144xf32, #tpu.memory_space<vmem>>, vector<1x48xf32>
    %cst_30 = arith.constant 0.000000e+00 : f32
    %57 = vector.broadcast %cst_30 : f32 to vector<8x16xf32>
    %58 = vector.extract_strided_slice %54 {offsets = [0, 0], sizes = [8, 48], strides = [1, 1]} : vector<64x48xf32> to vector<8x48xf32>
    %cst_31 = arith.constant dense<0.000000e+00> : vector<8x48xf32>
    %59 = tpu.matmul %57, %55, %cst_31 {dimension_numbers = #tpu.dot_dimension_numbers<[1], [0], [0], [1], [0, 0, 1, 1], [], []>} : vector<8x16xf32>, vector<16x48xf32>, vector<8x48xf32> -> vector<8x48xf32>
    %60 = vector.broadcast %56 : vector<1x48xf32> to vector<8x48xf32>
    %61 = arith.addf %59, %60 : vector<8x48xf32>
    %62 = vector.extract_strided_slice %58 {offsets = [0, 0], sizes = [8, 16], strides = [1, 1]} : vector<8x48xf32> to vector<8x16xf32>
    %63 = vector.extract_strided_slice %61 {offsets = [0, 0], sizes = [8, 16], strides = [1, 1]} : vector<8x48xf32> to vector<8x16xf32>
    %64 = arith.addf %62, %63 : vector<8x16xf32>
    %65 = arith.negf %64 : vector<8x16xf32>
    %66 = math.exp %65 : vector<8x16xf32>
    %cst_32 = arith.constant 1.000000e+00 : f32
    %67 = vector.broadcast %cst_32 : f32 to vector<8x16xf32>
    %68 = arith.addf %67, %66 : vector<8x16xf32>
    %69 = arith.divf %67, %68 : vector<8x16xf32>
    %70 = vector.extract_strided_slice %58 {offsets = [0, 16], sizes = [8, 16], strides = [1, 1]} : vector<8x48xf32> to vector<8x16xf32>
    %71 = vector.extract_strided_slice %61 {offsets = [0, 16], sizes = [8, 16], strides = [1, 1]} : vector<8x48xf32> to vector<8x16xf32>
    %72 = arith.addf %70, %71 : vector<8x16xf32>
    %73 = arith.negf %72 : vector<8x16xf32>
    %74 = math.exp %73 : vector<8x16xf32>
    %cst_33 = arith.constant 1.000000e+00 : f32
    %75 = vector.broadcast %cst_33 : f32 to vector<8x16xf32>
    %76 = arith.addf %75, %74 : vector<8x16xf32>
    %77 = arith.divf %75, %76 : vector<8x16xf32>
    %78 = vector.extract_strided_slice %58 {offsets = [0, 32], sizes = [8, 16], strides = [1, 1]} : vector<8x48xf32> to vector<8x16xf32>
    %79 = vector.extract_strided_slice %61 {offsets = [0, 32], sizes = [8, 16], strides = [1, 1]} : vector<8x48xf32> to vector<8x16xf32>
    %80 = arith.mulf %69, %79 : vector<8x16xf32>
    %81 = arith.addf %78, %80 : vector<8x16xf32>
    %82 = math.tanh %81 : vector<8x16xf32>
    %cst_34 = arith.constant 1.000000e+00 : f32
    %83 = vector.broadcast %cst_34 : f32 to vector<8x16xf32>
    %84 = arith.subf %83, %77 : vector<8x16xf32>
    %85 = arith.mulf %84, %82 : vector<8x16xf32>
    %86 = arith.mulf %77, %57 : vector<8x16xf32>
    %87 = arith.addf %85, %86 : vector<8x16xf32>
    %88 = vector.extract_strided_slice %54 {offsets = [8, 0], sizes = [8, 48], strides = [1, 1]} : vector<64x48xf32> to vector<8x48xf32>
    %cst_35 = arith.constant dense<0.000000e+00> : vector<8x48xf32>
    %89 = tpu.matmul %87, %55, %cst_35 {dimension_numbers = #tpu.dot_dimension_numbers<[1], [0], [0], [1], [0, 0, 1, 1], [], []>} : vector<8x16xf32>, vector<16x48xf32>, vector<8x48xf32> -> vector<8x48xf32>
    %90 = vector.broadcast %56 : vector<1x48xf32> to vector<8x48xf32>
    %91 = arith.addf %89, %90 : vector<8x48xf32>
    %92 = vector.extract_strided_slice %88 {offsets = [0, 0], sizes = [8, 16], strides = [1, 1]} : vector<8x48xf32> to vector<8x16xf32>
    %93 = vector.extract_strided_slice %91 {offsets = [0, 0], sizes = [8, 16], strides = [1, 1]} : vector<8x48xf32> to vector<8x16xf32>
    %94 = arith.addf %92, %93 : vector<8x16xf32>
    %95 = arith.negf %94 : vector<8x16xf32>
    %96 = math.exp %95 : vector<8x16xf32>
    %cst_36 = arith.constant 1.000000e+00 : f32
    %97 = vector.broadcast %cst_36 : f32 to vector<8x16xf32>
    %98 = arith.addf %97, %96 : vector<8x16xf32>
    %99 = arith.divf %97, %98 : vector<8x16xf32>
    %100 = vector.extract_strided_slice %88 {offsets = [0, 16], sizes = [8, 16], strides = [1, 1]} : vector<8x48xf32> to vector<8x16xf32>
    %101 = vector.extract_strided_slice %91 {offsets = [0, 16], sizes = [8, 16], strides = [1, 1]} : vector<8x48xf32> to vector<8x16xf32>
    %102 = arith.addf %100, %101 : vector<8x16xf32>
    %103 = arith.negf %102 : vector<8x16xf32>
    %104 = math.exp %103 : vector<8x16xf32>
    %cst_37 = arith.constant 1.000000e+00 : f32
    %105 = vector.broadcast %cst_37 : f32 to vector<8x16xf32>
    %106 = arith.addf %105, %104 : vector<8x16xf32>
    %107 = arith.divf %105, %106 : vector<8x16xf32>
    %108 = vector.extract_strided_slice %88 {offsets = [0, 32], sizes = [8, 16], strides = [1, 1]} : vector<8x48xf32> to vector<8x16xf32>
    %109 = vector.extract_strided_slice %91 {offsets = [0, 32], sizes = [8, 16], strides = [1, 1]} : vector<8x48xf32> to vector<8x16xf32>
    %110 = arith.mulf %99, %109 : vector<8x16xf32>
    %111 = arith.addf %108, %110 : vector<8x16xf32>
    %112 = math.tanh %111 : vector<8x16xf32>
    %cst_38 = arith.constant 1.000000e+00 : f32
    %113 = vector.broadcast %cst_38 : f32 to vector<8x16xf32>
    %114 = arith.subf %113, %107 : vector<8x16xf32>
    %115 = arith.mulf %114, %112 : vector<8x16xf32>
    %116 = arith.mulf %107, %87 : vector<8x16xf32>
    %117 = arith.addf %115, %116 : vector<8x16xf32>
    %118 = vector.extract_strided_slice %54 {offsets = [16, 0], sizes = [8, 48], strides = [1, 1]} : vector<64x48xf32> to vector<8x48xf32>
    %cst_39 = arith.constant dense<0.000000e+00> : vector<8x48xf32>
    %119 = tpu.matmul %117, %55, %cst_39 {dimension_numbers = #tpu.dot_dimension_numbers<[1], [0], [0], [1], [0, 0, 1, 1], [], []>} : vector<8x16xf32>, vector<16x48xf32>, vector<8x48xf32> -> vector<8x48xf32>
    %120 = vector.broadcast %56 : vector<1x48xf32> to vector<8x48xf32>
    %121 = arith.addf %119, %120 : vector<8x48xf32>
    %122 = vector.extract_strided_slice %118 {offsets = [0, 0], sizes = [8, 16], strides = [1, 1]} : vector<8x48xf32> to vector<8x16xf32>
    %123 = vector.extract_strided_slice %121 {offsets = [0, 0], sizes = [8, 16], strides = [1, 1]} : vector<8x48xf32> to vector<8x16xf32>
    %124 = arith.addf %122, %123 : vector<8x16xf32>
    %125 = arith.negf %124 : vector<8x16xf32>
    %126 = math.exp %125 : vector<8x16xf32>
    %cst_40 = arith.constant 1.000000e+00 : f32
    %127 = vector.broadcast %cst_40 : f32 to vector<8x16xf32>
    %128 = arith.addf %127, %126 : vector<8x16xf32>
    %129 = arith.divf %127, %128 : vector<8x16xf32>
    %130 = vector.extract_strided_slice %118 {offsets = [0, 16], sizes = [8, 16], strides = [1, 1]} : vector<8x48xf32> to vector<8x16xf32>
    %131 = vector.extract_strided_slice %121 {offsets = [0, 16], sizes = [8, 16], strides = [1, 1]} : vector<8x48xf32> to vector<8x16xf32>
    %132 = arith.addf %130, %131 : vector<8x16xf32>
    %133 = arith.negf %132 : vector<8x16xf32>
    %134 = math.exp %133 : vector<8x16xf32>
    %cst_41 = arith.constant 1.000000e+00 : f32
    %135 = vector.broadcast %cst_41 : f32 to vector<8x16xf32>
    %136 = arith.addf %135, %134 : vector<8x16xf32>
    %137 = arith.divf %135, %136 : vector<8x16xf32>
    %138 = vector.extract_strided_slice %118 {offsets = [0, 32], sizes = [8, 16], strides = [1, 1]} : vector<8x48xf32> to vector<8x16xf32>
    %139 = vector.extract_strided_slice %121 {offsets = [0, 32], sizes = [8, 16], strides = [1, 1]} : vector<8x48xf32> to vector<8x16xf32>
    %140 = arith.mulf %129, %139 : vector<8x16xf32>
    %141 = arith.addf %138, %140 : vector<8x16xf32>
    %142 = math.tanh %141 : vector<8x16xf32>
    %cst_42 = arith.constant 1.000000e+00 : f32
    %143 = vector.broadcast %cst_42 : f32 to vector<8x16xf32>
    %144 = arith.subf %143, %137 : vector<8x16xf32>
    %145 = arith.mulf %144, %142 : vector<8x16xf32>
    %146 = arith.mulf %137, %117 : vector<8x16xf32>
    %147 = arith.addf %145, %146 : vector<8x16xf32>
    %148 = vector.extract_strided_slice %54 {offsets = [24, 0], sizes = [8, 48], strides = [1, 1]} : vector<64x48xf32> to vector<8x48xf32>
    %cst_43 = arith.constant dense<0.000000e+00> : vector<8x48xf32>
    %149 = tpu.matmul %147, %55, %cst_43 {dimension_numbers = #tpu.dot_dimension_numbers<[1], [0], [0], [1], [0, 0, 1, 1], [], []>} : vector<8x16xf32>, vector<16x48xf32>, vector<8x48xf32> -> vector<8x48xf32>
    %150 = vector.broadcast %56 : vector<1x48xf32> to vector<8x48xf32>
    %151 = arith.addf %149, %150 : vector<8x48xf32>
    %152 = vector.extract_strided_slice %148 {offsets = [0, 0], sizes = [8, 16], strides = [1, 1]} : vector<8x48xf32> to vector<8x16xf32>
    %153 = vector.extract_strided_slice %151 {offsets = [0, 0], sizes = [8, 16], strides = [1, 1]} : vector<8x48xf32> to vector<8x16xf32>
    %154 = arith.addf %152, %153 : vector<8x16xf32>
    %155 = arith.negf %154 : vector<8x16xf32>
    %156 = math.exp %155 : vector<8x16xf32>
    %cst_44 = arith.constant 1.000000e+00 : f32
    %157 = vector.broadcast %cst_44 : f32 to vector<8x16xf32>
    %158 = arith.addf %157, %156 : vector<8x16xf32>
    %159 = arith.divf %157, %158 : vector<8x16xf32>
    %160 = vector.extract_strided_slice %148 {offsets = [0, 16], sizes = [8, 16], strides = [1, 1]} : vector<8x48xf32> to vector<8x16xf32>
    %161 = vector.extract_strided_slice %151 {offsets = [0, 16], sizes = [8, 16], strides = [1, 1]} : vector<8x48xf32> to vector<8x16xf32>
    %162 = arith.addf %160, %161 : vector<8x16xf32>
    %163 = arith.negf %162 : vector<8x16xf32>
    %164 = math.exp %163 : vector<8x16xf32>
    %cst_45 = arith.constant 1.000000e+00 : f32
    %165 = vector.broadcast %cst_45 : f32 to vector<8x16xf32>
    %166 = arith.addf %165, %164 : vector<8x16xf32>
    %167 = arith.divf %165, %166 : vector<8x16xf32>
    %168 = vector.extract_strided_slice %148 {offsets = [0, 32], sizes = [8, 16], strides = [1, 1]} : vector<8x48xf32> to vector<8x16xf32>
    %169 = vector.extract_strided_slice %151 {offsets = [0, 32], sizes = [8, 16], strides = [1, 1]} : vector<8x48xf32> to vector<8x16xf32>
    %170 = arith.mulf %159, %169 : vector<8x16xf32>
    %171 = arith.addf %168, %170 : vector<8x16xf32>
    %172 = math.tanh %171 : vector<8x16xf32>
    %cst_46 = arith.constant 1.000000e+00 : f32
    %173 = vector.broadcast %cst_46 : f32 to vector<8x16xf32>
    %174 = arith.subf %173, %167 : vector<8x16xf32>
    %175 = arith.mulf %174, %172 : vector<8x16xf32>
    %176 = arith.mulf %167, %147 : vector<8x16xf32>
    %177 = arith.addf %175, %176 : vector<8x16xf32>
    %178 = vector.extract_strided_slice %54 {offsets = [32, 0], sizes = [8, 48], strides = [1, 1]} : vector<64x48xf32> to vector<8x48xf32>
    %cst_47 = arith.constant dense<0.000000e+00> : vector<8x48xf32>
    %179 = tpu.matmul %177, %55, %cst_47 {dimension_numbers = #tpu.dot_dimension_numbers<[1], [0], [0], [1], [0, 0, 1, 1], [], []>} : vector<8x16xf32>, vector<16x48xf32>, vector<8x48xf32> -> vector<8x48xf32>
    %180 = vector.broadcast %56 : vector<1x48xf32> to vector<8x48xf32>
    %181 = arith.addf %179, %180 : vector<8x48xf32>
    %182 = vector.extract_strided_slice %178 {offsets = [0, 0], sizes = [8, 16], strides = [1, 1]} : vector<8x48xf32> to vector<8x16xf32>
    %183 = vector.extract_strided_slice %181 {offsets = [0, 0], sizes = [8, 16], strides = [1, 1]} : vector<8x48xf32> to vector<8x16xf32>
    %184 = arith.addf %182, %183 : vector<8x16xf32>
    %185 = arith.negf %184 : vector<8x16xf32>
    %186 = math.exp %185 : vector<8x16xf32>
    %cst_48 = arith.constant 1.000000e+00 : f32
    %187 = vector.broadcast %cst_48 : f32 to vector<8x16xf32>
    %188 = arith.addf %187, %186 : vector<8x16xf32>
    %189 = arith.divf %187, %188 : vector<8x16xf32>
    %190 = vector.extract_strided_slice %178 {offsets = [0, 16], sizes = [8, 16], strides = [1, 1]} : vector<8x48xf32> to vector<8x16xf32>
    %191 = vector.extract_strided_slice %181 {offsets = [0, 16], sizes = [8, 16], strides = [1, 1]} : vector<8x48xf32> to vector<8x16xf32>
    %192 = arith.addf %190, %191 : vector<8x16xf32>
    %193 = arith.negf %192 : vector<8x16xf32>
    %194 = math.exp %193 : vector<8x16xf32>
    %cst_49 = arith.constant 1.000000e+00 : f32
    %195 = vector.broadcast %cst_49 : f32 to vector<8x16xf32>
    %196 = arith.addf %195, %194 : vector<8x16xf32>
    %197 = arith.divf %195, %196 : vector<8x16xf32>
    %198 = vector.extract_strided_slice %178 {offsets = [0, 32], sizes = [8, 16], strides = [1, 1]} : vector<8x48xf32> to vector<8x16xf32>
    %199 = vector.extract_strided_slice %181 {offsets = [0, 32], sizes = [8, 16], strides = [1, 1]} : vector<8x48xf32> to vector<8x16xf32>
    %200 = arith.mulf %189, %199 : vector<8x16xf32>
    %201 = arith.addf %198, %200 : vector<8x16xf32>
    %202 = math.tanh %201 : vector<8x16xf32>
    %cst_50 = arith.constant 1.000000e+00 : f32
    %203 = vector.broadcast %cst_50 : f32 to vector<8x16xf32>
    %204 = arith.subf %203, %197 : vector<8x16xf32>
    %205 = arith.mulf %204, %202 : vector<8x16xf32>
    %206 = arith.mulf %197, %177 : vector<8x16xf32>
    %207 = arith.addf %205, %206 : vector<8x16xf32>
    %208 = vector.extract_strided_slice %54 {offsets = [40, 0], sizes = [8, 48], strides = [1, 1]} : vector<64x48xf32> to vector<8x48xf32>
    %cst_51 = arith.constant dense<0.000000e+00> : vector<8x48xf32>
    %209 = tpu.matmul %207, %55, %cst_51 {dimension_numbers = #tpu.dot_dimension_numbers<[1], [0], [0], [1], [0, 0, 1, 1], [], []>} : vector<8x16xf32>, vector<16x48xf32>, vector<8x48xf32> -> vector<8x48xf32>
    %210 = vector.broadcast %56 : vector<1x48xf32> to vector<8x48xf32>
    %211 = arith.addf %209, %210 : vector<8x48xf32>
    %212 = vector.extract_strided_slice %208 {offsets = [0, 0], sizes = [8, 16], strides = [1, 1]} : vector<8x48xf32> to vector<8x16xf32>
    %213 = vector.extract_strided_slice %211 {offsets = [0, 0], sizes = [8, 16], strides = [1, 1]} : vector<8x48xf32> to vector<8x16xf32>
    %214 = arith.addf %212, %213 : vector<8x16xf32>
    %215 = arith.negf %214 : vector<8x16xf32>
    %216 = math.exp %215 : vector<8x16xf32>
    %cst_52 = arith.constant 1.000000e+00 : f32
    %217 = vector.broadcast %cst_52 : f32 to vector<8x16xf32>
    %218 = arith.addf %217, %216 : vector<8x16xf32>
    %219 = arith.divf %217, %218 : vector<8x16xf32>
    %220 = vector.extract_strided_slice %208 {offsets = [0, 16], sizes = [8, 16], strides = [1, 1]} : vector<8x48xf32> to vector<8x16xf32>
    %221 = vector.extract_strided_slice %211 {offsets = [0, 16], sizes = [8, 16], strides = [1, 1]} : vector<8x48xf32> to vector<8x16xf32>
    %222 = arith.addf %220, %221 : vector<8x16xf32>
    %223 = arith.negf %222 : vector<8x16xf32>
    %224 = math.exp %223 : vector<8x16xf32>
    %cst_53 = arith.constant 1.000000e+00 : f32
    %225 = vector.broadcast %cst_53 : f32 to vector<8x16xf32>
    %226 = arith.addf %225, %224 : vector<8x16xf32>
    %227 = arith.divf %225, %226 : vector<8x16xf32>
    %228 = vector.extract_strided_slice %208 {offsets = [0, 32], sizes = [8, 16], strides = [1, 1]} : vector<8x48xf32> to vector<8x16xf32>
    %229 = vector.extract_strided_slice %211 {offsets = [0, 32], sizes = [8, 16], strides = [1, 1]} : vector<8x48xf32> to vector<8x16xf32>
    %230 = arith.mulf %219, %229 : vector<8x16xf32>
    %231 = arith.addf %228, %230 : vector<8x16xf32>
    %232 = math.tanh %231 : vector<8x16xf32>
    %cst_54 = arith.constant 1.000000e+00 : f32
    %233 = vector.broadcast %cst_54 : f32 to vector<8x16xf32>
    %234 = arith.subf %233, %227 : vector<8x16xf32>
    %235 = arith.mulf %234, %232 : vector<8x16xf32>
    %236 = arith.mulf %227, %207 : vector<8x16xf32>
    %237 = arith.addf %235, %236 : vector<8x16xf32>
    %238 = vector.extract_strided_slice %54 {offsets = [48, 0], sizes = [8, 48], strides = [1, 1]} : vector<64x48xf32> to vector<8x48xf32>
    %cst_55 = arith.constant dense<0.000000e+00> : vector<8x48xf32>
    %239 = tpu.matmul %237, %55, %cst_55 {dimension_numbers = #tpu.dot_dimension_numbers<[1], [0], [0], [1], [0, 0, 1, 1], [], []>} : vector<8x16xf32>, vector<16x48xf32>, vector<8x48xf32> -> vector<8x48xf32>
    %240 = vector.broadcast %56 : vector<1x48xf32> to vector<8x48xf32>
    %241 = arith.addf %239, %240 : vector<8x48xf32>
    %242 = vector.extract_strided_slice %238 {offsets = [0, 0], sizes = [8, 16], strides = [1, 1]} : vector<8x48xf32> to vector<8x16xf32>
    %243 = vector.extract_strided_slice %241 {offsets = [0, 0], sizes = [8, 16], strides = [1, 1]} : vector<8x48xf32> to vector<8x16xf32>
    %244 = arith.addf %242, %243 : vector<8x16xf32>
    %245 = arith.negf %244 : vector<8x16xf32>
    %246 = math.exp %245 : vector<8x16xf32>
    %cst_56 = arith.constant 1.000000e+00 : f32
    %247 = vector.broadcast %cst_56 : f32 to vector<8x16xf32>
    %248 = arith.addf %247, %246 : vector<8x16xf32>
    %249 = arith.divf %247, %248 : vector<8x16xf32>
    %250 = vector.extract_strided_slice %238 {offsets = [0, 16], sizes = [8, 16], strides = [1, 1]} : vector<8x48xf32> to vector<8x16xf32>
    %251 = vector.extract_strided_slice %241 {offsets = [0, 16], sizes = [8, 16], strides = [1, 1]} : vector<8x48xf32> to vector<8x16xf32>
    %252 = arith.addf %250, %251 : vector<8x16xf32>
    %253 = arith.negf %252 : vector<8x16xf32>
    %254 = math.exp %253 : vector<8x16xf32>
    %cst_57 = arith.constant 1.000000e+00 : f32
    %255 = vector.broadcast %cst_57 : f32 to vector<8x16xf32>
    %256 = arith.addf %255, %254 : vector<8x16xf32>
    %257 = arith.divf %255, %256 : vector<8x16xf32>
    %258 = vector.extract_strided_slice %238 {offsets = [0, 32], sizes = [8, 16], strides = [1, 1]} : vector<8x48xf32> to vector<8x16xf32>
    %259 = vector.extract_strided_slice %241 {offsets = [0, 32], sizes = [8, 16], strides = [1, 1]} : vector<8x48xf32> to vector<8x16xf32>
    %260 = arith.mulf %249, %259 : vector<8x16xf32>
    %261 = arith.addf %258, %260 : vector<8x16xf32>
    %262 = math.tanh %261 : vector<8x16xf32>
    %cst_58 = arith.constant 1.000000e+00 : f32
    %263 = vector.broadcast %cst_58 : f32 to vector<8x16xf32>
    %264 = arith.subf %263, %257 : vector<8x16xf32>
    %265 = arith.mulf %264, %262 : vector<8x16xf32>
    %266 = arith.mulf %257, %237 : vector<8x16xf32>
    %267 = arith.addf %265, %266 : vector<8x16xf32>
    %268 = vector.extract_strided_slice %54 {offsets = [56, 0], sizes = [8, 48], strides = [1, 1]} : vector<64x48xf32> to vector<8x48xf32>
    %cst_59 = arith.constant dense<0.000000e+00> : vector<8x48xf32>
    %269 = tpu.matmul %267, %55, %cst_59 {dimension_numbers = #tpu.dot_dimension_numbers<[1], [0], [0], [1], [0, 0, 1, 1], [], []>} : vector<8x16xf32>, vector<16x48xf32>, vector<8x48xf32> -> vector<8x48xf32>
    %270 = vector.broadcast %56 : vector<1x48xf32> to vector<8x48xf32>
    %271 = arith.addf %269, %270 : vector<8x48xf32>
    %272 = vector.extract_strided_slice %268 {offsets = [0, 0], sizes = [8, 16], strides = [1, 1]} : vector<8x48xf32> to vector<8x16xf32>
    %273 = vector.extract_strided_slice %271 {offsets = [0, 0], sizes = [8, 16], strides = [1, 1]} : vector<8x48xf32> to vector<8x16xf32>
    %274 = arith.addf %272, %273 : vector<8x16xf32>
    %275 = arith.negf %274 : vector<8x16xf32>
    %276 = math.exp %275 : vector<8x16xf32>
    %cst_60 = arith.constant 1.000000e+00 : f32
    %277 = vector.broadcast %cst_60 : f32 to vector<8x16xf32>
    %278 = arith.addf %277, %276 : vector<8x16xf32>
    %279 = arith.divf %277, %278 : vector<8x16xf32>
    %280 = vector.extract_strided_slice %268 {offsets = [0, 16], sizes = [8, 16], strides = [1, 1]} : vector<8x48xf32> to vector<8x16xf32>
    %281 = vector.extract_strided_slice %271 {offsets = [0, 16], sizes = [8, 16], strides = [1, 1]} : vector<8x48xf32> to vector<8x16xf32>
    %282 = arith.addf %280, %281 : vector<8x16xf32>
    %283 = arith.negf %282 : vector<8x16xf32>
    %284 = math.exp %283 : vector<8x16xf32>
    %cst_61 = arith.constant 1.000000e+00 : f32
    %285 = vector.broadcast %cst_61 : f32 to vector<8x16xf32>
    %286 = arith.addf %285, %284 : vector<8x16xf32>
    %287 = arith.divf %285, %286 : vector<8x16xf32>
    %288 = vector.extract_strided_slice %268 {offsets = [0, 32], sizes = [8, 16], strides = [1, 1]} : vector<8x48xf32> to vector<8x16xf32>
    %289 = vector.extract_strided_slice %271 {offsets = [0, 32], sizes = [8, 16], strides = [1, 1]} : vector<8x48xf32> to vector<8x16xf32>
    %290 = arith.mulf %279, %289 : vector<8x16xf32>
    %291 = arith.addf %288, %290 : vector<8x16xf32>
    %292 = math.tanh %291 : vector<8x16xf32>
    %cst_62 = arith.constant 1.000000e+00 : f32
    %293 = vector.broadcast %cst_62 : f32 to vector<8x16xf32>
    %294 = arith.subf %293, %287 : vector<8x16xf32>
    %295 = arith.mulf %294, %292 : vector<8x16xf32>
    %296 = arith.mulf %287, %267 : vector<8x16xf32>
    %297 = arith.addf %295, %296 : vector<8x16xf32>
    %298 = tpu.concatenate %87, %117, %147, %177, %207, %237, %267, %297 in 0 : vector<8x16xf32>, vector<8x16xf32>, vector<8x16xf32>, vector<8x16xf32>, vector<8x16xf32>, vector<8x16xf32>, vector<8x16xf32>, vector<8x16xf32> -> vector<64x16xf32>
    %299 = tpu.concatenate %16, %298 in 1 : vector<64x16xf32>, vector<64x16xf32> -> vector<64x32xf32>
    %c192 = arith.constant 192 : index
    %c0_63 = arith.constant 0 : index
    %300 = vector.load %arg1[%c192, %c0_63] : memref<408x144xf32, #tpu.memory_space<vmem>>, vector<32x16xf32>
    %cst_64 = arith.constant dense<0.000000e+00> : vector<64x16xf32>
    %301 = tpu.matmul %299, %300, %cst_64 {dimension_numbers = #tpu.dot_dimension_numbers<[1], [0], [0], [1], [0, 0, 1, 1], [], []>} : vector<64x32xf32>, vector<32x16xf32>, vector<64x16xf32> -> vector<64x16xf32>
    %c224 = arith.constant 224 : index
    %c0_65 = arith.constant 0 : index
    %302 = vector.load %arg1[%c224, %c0_65] : memref<408x144xf32, #tpu.memory_space<vmem>>, vector<1x16xf32>
    %303 = vector.broadcast %302 : vector<1x16xf32> to vector<64x16xf32>
    %304 = arith.addf %301, %303 : vector<64x16xf32>
    %cst_66 = arith.constant 0.000000e+00 : f32
    %305 = vector.broadcast %cst_66 : f32 to vector<64x16xf32>
    %306 = arith.maximumf %304, %305 : vector<64x16xf32>
    %c232 = arith.constant 232 : index
    %c0_67 = arith.constant 0 : index
    %307 = vector.load %arg1[%c232, %c0_67] : memref<408x144xf32, #tpu.memory_space<vmem>>, vector<16x4xf32>
    %cst_68 = arith.constant dense<0.000000e+00> : vector<64x4xf32>
    %308 = tpu.matmul %306, %307, %cst_68 {dimension_numbers = #tpu.dot_dimension_numbers<[1], [0], [0], [1], [0, 0, 1, 1], [], []>} : vector<64x16xf32>, vector<16x4xf32>, vector<64x4xf32> -> vector<64x4xf32>
    %c248 = arith.constant 248 : index
    %c0_69 = arith.constant 0 : index
    %309 = vector.load %arg1[%c248, %c0_69] : memref<408x144xf32, #tpu.memory_space<vmem>>, vector<1x4xf32>
    %310 = vector.broadcast %309 : vector<1x4xf32> to vector<64x4xf32>
    %311 = arith.addf %308, %310 : vector<64x4xf32>
    %cst_70 = arith.constant dense<0xFF800000> : vector<64xf32>
    %312 = vector.multi_reduction <maximumf>, %311, %cst_70 [1] : vector<64x4xf32> to vector<64xf32>
    %313 = vector.shape_cast %312 : vector<64xf32> to vector<64x1xf32>
    %314 = vector.broadcast %313 : vector<64x1xf32> to vector<64x4xf32>
    %315 = arith.subf %311, %314 : vector<64x4xf32>
    %316 = math.exp %315 : vector<64x4xf32>
    %cst_71 = arith.constant dense<0.000000e+00> : vector<64xf32>
    %317 = vector.multi_reduction <add>, %316, %cst_71 [1] : vector<64x4xf32> to vector<64xf32>
    %318 = vector.shape_cast %317 : vector<64xf32> to vector<64x1xf32>
    %319 = vector.broadcast %318 : vector<64x1xf32> to vector<64x4xf32>
    %320 = arith.divf %316, %319 : vector<64x4xf32>
    %321 = tpu.iota {dimensions = array<i32: 1>} : vector<64x4xi32>
    %322 = arith.sitofp %321 : vector<64x4xi32> to vector<64x4xf32>
    %323 = vector.broadcast %313 : vector<64x1xf32> to vector<64x4xf32>
    %324 = arith.cmpf oeq, %311, %323 : vector<64x4xf32>
    %cst_72 = arith.constant 1.000000e+09 : f32
    %325 = vector.broadcast %cst_72 : f32 to vector<64x4xf32>
    %326 = arith.select %324, %322, %325 : vector<64x4xi1>, vector<64x4xf32>
    %cst_73 = arith.constant dense<0x7F800000> : vector<64xf32>
    %327 = vector.multi_reduction <minimumf>, %326, %cst_73 [1] : vector<64x4xf32> to vector<64xf32>
    %328 = vector.shape_cast %327 : vector<64xf32> to vector<64x1xf32>
    %329 = vector.broadcast %328 : vector<64x1xf32> to vector<64x4xf32>
    %330 = arith.cmpf oeq, %322, %329 : vector<64x4xf32>
    %cst_74 = arith.constant 0.000000e+00 : f32
    %cst_75 = arith.constant 1.000000e+09 : f32
    %331 = arith.subf %cst_74, %cst_75 : f32
    %332 = vector.broadcast %331 : f32 to vector<64x4xf32>
    %333 = arith.select %330, %332, %311 : vector<64x4xi1>, vector<64x4xf32>
    %cst_76 = arith.constant dense<0xFF800000> : vector<64xf32>
    %334 = vector.multi_reduction <maximumf>, %333, %cst_76 [1] : vector<64x4xf32> to vector<64xf32>
    %335 = vector.shape_cast %334 : vector<64xf32> to vector<64x1xf32>
    %336 = vector.broadcast %335 : vector<64x1xf32> to vector<64x4xf32>
    %337 = arith.cmpf oeq, %333, %336 : vector<64x4xf32>
    %cst_77 = arith.constant 1.000000e+09 : f32
    %338 = vector.broadcast %cst_77 : f32 to vector<64x4xf32>
    %339 = arith.select %337, %322, %338 : vector<64x4xi1>, vector<64x4xf32>
    %cst_78 = arith.constant dense<0x7F800000> : vector<64xf32>
    %340 = vector.multi_reduction <minimumf>, %339, %cst_78 [1] : vector<64x4xf32> to vector<64xf32>
    %341 = vector.shape_cast %340 : vector<64xf32> to vector<64x1xf32>
    %342 = vector.broadcast %341 : vector<64x1xf32> to vector<64x4xf32>
    %343 = arith.cmpf oeq, %322, %342 : vector<64x4xf32>
    %344 = arith.subf %335, %313 : vector<64x1xf32>
    %345 = math.exp %344 : vector<64x1xf32>
    %cst_79 = arith.constant 1.000000e+00 : f32
    %346 = vector.broadcast %cst_79 : f32 to vector<64x1xf32>
    %347 = arith.addf %346, %345 : vector<64x1xf32>
    %cst_80 = arith.constant 1.000000e+00 : f32
    %348 = vector.broadcast %cst_80 : f32 to vector<64x1xf32>
    %349 = arith.divf %348, %347 : vector<64x1xf32>
    %350 = arith.extui %330 : vector<64x4xi1> to vector<64x4xi32>
    %351 = arith.sitofp %350 : vector<64x4xi32> to vector<64x4xf32>
    %352 = vector.broadcast %349 : vector<64x1xf32> to vector<64x4xf32>
    %353 = arith.mulf %352, %351 : vector<64x4xf32>
    %354 = arith.mulf %345, %349 : vector<64x1xf32>
    %355 = arith.extui %343 : vector<64x4xi1> to vector<64x4xi32>
    %356 = arith.sitofp %355 : vector<64x4xi32> to vector<64x4xf32>
    %357 = vector.broadcast %354 : vector<64x1xf32> to vector<64x4xf32>
    %358 = arith.mulf %357, %356 : vector<64x4xf32>
    %359 = arith.addf %353, %358 : vector<64x4xf32>
    %c256 = arith.constant 256 : index
    %c0_81 = arith.constant 0 : index
    %360 = vector.load %arg1[%c256, %c0_81] : memref<408x144xf32, #tpu.memory_space<vmem>>, vector<4x128xf32>
    %cst_82 = arith.constant dense<0.000000e+00> : vector<64x128xf32>
    %361 = tpu.matmul %359, %360, %cst_82 {dimension_numbers = #tpu.dot_dimension_numbers<[1], [0], [0], [1], [0, 0, 1, 1], [], []>} : vector<64x4xf32>, vector<4x128xf32>, vector<64x128xf32> -> vector<64x128xf32>
    %362 = arith.mulf %15, %361 : vector<64x128xf32>
    %c264 = arith.constant 264 : index
    %c0_83 = arith.constant 0 : index
    %363 = vector.load %arg1[%c264, %c0_83] : memref<408x144xf32, #tpu.memory_space<vmem>>, vector<128x8xf32>
    %cst_84 = arith.constant dense<0.000000e+00> : vector<64x8xf32>
    %364 = tpu.matmul %362, %363, %cst_84 {dimension_numbers = #tpu.dot_dimension_numbers<[1], [0], [0], [1], [0, 0, 1, 1], [], []>} : vector<64x128xf32>, vector<128x8xf32>, vector<64x8xf32> -> vector<64x8xf32>
    %c392 = arith.constant 392 : index
    %c0_85 = arith.constant 0 : index
    %365 = vector.load %arg1[%c392, %c0_85] : memref<408x144xf32, #tpu.memory_space<vmem>>, vector<4x8xf32>
    %cst_86 = arith.constant dense<0.000000e+00> : vector<64x8xf32>
    %366 = tpu.matmul %359, %365, %cst_86 {dimension_numbers = #tpu.dot_dimension_numbers<[1], [0], [0], [1], [0, 0, 1, 1], [], []>} : vector<64x4xf32>, vector<4x8xf32>, vector<64x8xf32> -> vector<64x8xf32>
    %367 = arith.addf %364, %366 : vector<64x8xf32>
    %c400 = arith.constant 400 : index
    %c0_87 = arith.constant 0 : index
    %368 = vector.load %arg1[%c400, %c0_87] : memref<408x144xf32, #tpu.memory_space<vmem>>, vector<1x8xf32>
    %369 = vector.broadcast %368 : vector<1x8xf32> to vector<64x8xf32>
    %370 = arith.addf %367, %369 : vector<64x8xf32>
    %cst_88 = arith.constant 0.000000e+00 : f32
    %371 = vector.broadcast %cst_88 : f32 to vector<64x2xf32>
    %372 = tpu.concatenate %370, %320, %328, %341, %371 in 1 : vector<64x8xf32>, vector<64x4xf32>, vector<64x1xf32>, vector<64x1xf32>, vector<64x2xf32> -> vector<64x16xf32>
    %c0_89 = arith.constant 0 : index
    %c0_90 = arith.constant 0 : index
    %373 = vector.load %arg2[%c0_89, %c0_90] : memref<64x16xf32, #tpu.memory_space<vmem>>, vector<64x16xf32>
    tpu.vector_store %arg2[%c0_89, %c0_90], %372 {strides = array<i32>} : memref<64x16xf32, #tpu.memory_space<vmem>>, vector<64x16xf32>,
    return
  }
}

</mosaic_0001>

<llo_original>
// kernel: fused_forward.1
$region0: #{fused_forward.1}
  #allocation0 [shape = 'u32[]', space=smem, size = 0x4, offset = 0x4, fixed_abs, tag = 'smem constant byte address 0x4 - core index']
  #allocation1 [shape = 'u32[144,128]{1,0:T(1,128)}', space=vmem, size = 0x12000, scoped, tag = 'internal scratch']
  %s0 = inlined_call_operand.vmem [shape: f32[64,19], index: 0, kind: input, shape index: {}]
  %s1 = inlined_call_operand.vmem [shape: f32[408,144], index: 1, kind: input, shape index: {}]
  %s2 = inlined_call_operand.vmem [shape: f32[64,16], index: 2, kind: output, shape index: {}]
  %s3 = sld [smem:[#allocation0]]
  $region18: #{fused_forward.1} parent=0
    _
  %s5 = ssub.s32 1, %s3
  %s6 = scalar_select 0, %s5, %s3
  // Predicated region
  $region2: #{fused_forward.1} parent=0 // pred_check
    _
  $region3: #{fused_forward.1} parent=0 // pred_check_branch
    %8 = sbr.rel (0) target = $region5
  $region4: #{fused_forward.1} parent=0 // pred_region
    _
  $region5: #{fused_forward.1} parent=0 // pred_fallthru
    _
  // Predicated region
  $region6: #{fused_forward.1} parent=0 // pred_check
    _
  $region7: #{fused_forward.1} parent=0 // pred_check_branch
    %10 = sbr.rel (0) target = $region9
  $region8: #{fused_forward.1} parent=0 // pred_region
    _
  $region9: #{fused_forward.1} parent=0 // pred_fallthru
    _
  %v11 = vld [vmem:[%s0] sm:$0xff]
  %v12 = vld [vmem:[%s0 + $0x8] sm:$0xff]
  %v13 = vld [vmem:[%s0 + $0x10] sm:$0xff]
  %v14 = vld [vmem:[%s0 + $0x18] sm:$0xff]
  %v15 = vld [vmem:[%s0 + $0x20] sm:$0xff]
  %v16 = vld [vmem:[%s0 + $0x28] sm:$0xff]
  %v17 = vld [vmem:[%s0 + $0x30] sm:$0xff]
  %v18 = vld [vmem:[%s0 + $0x38] sm:$0xff]
  %v19 = vld [vmem:[%s1] sm:$0xff]
  %v20 = vld [vmem:[%s1 + $0x10] sm:$0xf]
  %v21 = vld [vmem:[%s1 + $0x20] ss:$0 sm:$0xff]
  %vm22 = vcmask 97280
  %v24 = vsel %vm22, %v11, 0
  %v27 = vsel %vm22, %v12, 0
  %v30 = vsel %vm22, %v13, 0
  %v33 = vsel %vm22, %v14, 0
  %v36 = vsel %vm22, %v15, 0
  %v39 = vsel %vm22, %v16, 0
  %v42 = vsel %vm22, %v17, 0
  %v45 = vsel %vm22, %v18, 0
  %vm47 = vcmask 1043456
  %v49 = vsel %vm47, %v20, 0
  %51 = vmatprep.subr.mxu0 0.0
  %52 = vmatpush1.msra.mxu0 0.0
  %53 = vmatprep.subr.mxu0 0.0
  %54 = vmatpush1.msra.mxu0 0.0
  %55 = vmatprep.subr.mxu0 0.0
  %56 = vmatpush1.msra.mxu0 0.0
  %57 = vmatprep.subr.mxu0 0.0
  %58 = vmatpush1.msra.mxu0 0.0
  %59 = vmatprep.subr.mxu0 0.0
  %60 = vmatpush1.msra.mxu0 0.0
  %61 = vmatprep.subr.mxu0 0.0
  %62 = vmatpush1.msra.mxu0 0.0
  %63 = vmatprep.subr.mxu0 0.0
  %64 = vmatpush1.msra.mxu0 0.0
  %65 = vmatprep.subr.mxu0 0.0
  %66 = vmatpush1.msra.mxu0 0.0
  %67 = vmatprep.subr.mxu0 0.0
  %68 = vmatpush1.msra.mxu0 0.0
  %69 = vmatprep.subr.mxu0 0.0
  %70 = vmatpush1.msra.mxu0 0.0
  %71 = vmatprep.subr.mxu0 0.0
  %72 = vmatpush1.msra.mxu0 0.0
  %73 = vmatprep.subr.mxu0 0.0
  %74 = vmatpush1.msra.mxu0 0.0
  %75 = vmatprep.subr.mxu0 0.0
  %76 = vmatpush1.msra.mxu0 0.0
  %77 = vmatprep.subr.mxu0 0.0
  %78 = vmatpush1.msra.mxu0 0.0
  %79 = vmatprep.subr.mxu0 0.0
  %80 = vmatpush1.msra.mxu0 %v49
  %81 = vmatprep.subr.mxu0 0.0
  %82 = vmatpush1.msra.mxu0 %v19
  %83 = vmatprep.subr.mxu0 0.0
  %84 = vmatpush2.msra.mxu0 0.0
  %85 = vmatprep.subr.mxu0 0.0
  %86 = vmatpush2.msra.mxu0 0.0
  %87 = vmatprep.subr.mxu0 0.0
  %88 = vmatpush2.msra.mxu0 0.0
  %89 = vmatprep.subr.mxu0 0.0
  %90 = vmatpush2.msra.mxu0 0.0
  %91 = vmatprep.subr.mxu0 0.0
  %92 = vmatpush2.msra.mxu0 0.0
  %93 = vmatprep.subr.mxu0 0.0
  %94 = vmatpush2.msra.mxu0 0.0
  %95 = vmatprep.subr.mxu0 0.0
  %96 = vmatpush2.msra.mxu0 0.0
  %97 = vmatprep.subr.mxu0 0.0
  %98 = vmatpush2.msra.mxu0 0.0
  %99 = vmatprep.subr.mxu0 0.0
  %100 = vmatpush2.msra.mxu0 0.0
  %101 = vmatprep.subr.mxu0 0.0
  %102 = vmatpush2.msra.mxu0 0.0
  %103 = vmatprep.subr.mxu0 0.0
  %104 = vmatpush2.msra.mxu0 0.0
  %105 = vmatprep.subr.mxu0 0.0
  %106 = vmatpush2.msra.mxu0 0.0
  %107 = vmatprep.subr.mxu0 0.0
  %108 = vmatpush2.msra.mxu0 0.0
  %109 = vmatprep.subr.mxu0 0.0
  %110 = vmatpush2.msra.mxu0 0.0
  %111 = vmatprep.subr.mxu0 0.0
  %112 = vmatpush2.msra.mxu0 0.0
  %113 = vmatprep.subr.mxu0 0.0
  %114 = vmatpush2.msra.mxu0 0.0
  %115 = vmatprep.mubr.f32.mxu0 0.0
  %116 = vmatmul.mubr.f32.gmra.mxu0 %v24
  %v117 = vpop.f32.mrf.mxu0
  %v118 = vadd.f32 %v21, %v117
  %v119 = vpop.f32.mrf.mxu0
  %120 = vmatprep.mubr.f32.mxu0 0.0
  %121 = vmatmul.mubr.f32.gmra.mxu0 %v27
  %v122 = vpop.f32.mrf.mxu0
  %v123 = vadd.f32 %v21, %v122
  %v124 = vpop.f32.mrf.mxu0
  %125 = vmatprep.mubr.f32.mxu0 0.0
  %126 = vmatmul.mubr.f32.gmra.mxu0 %v30
  %v127 = vpop.f32.mrf.mxu0
  %v128 = vadd.f32 %v21, %v127
  %v129 = vpop.f32.mrf.mxu0
  %130 = vmatprep.mubr.f32.mxu0 0.0
  %131 = vmatmul.mubr.f32.gmra.mxu0 %v33
  %v132 = vpop.f32.mrf.mxu0
  %v133 = vadd.f32 %v21, %v132
  %v134 = vpop.f32.mrf.mxu0
  %135 = vmatprep.mubr.f32.mxu0 0.0
  %136 = vmatmul.mubr.f32.gmra.mxu0 %v36
  %v137 = vpop.f32.mrf.mxu0
  %v138 = vadd.f32 %v21, %v137
  %v139 = vpop.f32.mrf.mxu0
  %140 = vmatprep.mubr.f32.mxu0 0.0
  %141 = vmatmul.mubr.f32.gmra.mxu0 %v39
  %v142 = vpop.f32.mrf.mxu0
  %v143 = vadd.f32 %v21, %v142
  %v144 = vpop.f32.mrf.mxu0
  %145 = vmatprep.mubr.f32.mxu0 0.0
  %146 = vmatmul.mubr.f32.gmra.mxu0 %v42
  %v147 = vpop.f32.mrf.mxu0
  %v148 = vadd.f32 %v21, %v147
  %v149 = vpop.f32.mrf.mxu0
  %150 = vmatprep.mubr.f32.mxu0 0.0
  %151 = vmatmul.mubr.f32.gmra.mxu0 %v45
  %v152 = vpop.f32.mrf.mxu0
  %v153 = vadd.f32 %v21, %v152
  %v154 = vpop.f32.mrf.mxu0
  %155 = vdwg.mxu0
  %v156 = vld [vmem:[%s1 + $0x30] sm:$0xff]
  %v157 = vld [vmem:[%s1 + $0x38] sm:$0xff]
  %v158 = vld [vmem:[%s1 + $0x40] sm:$0xff]
  %v159 = vld [vmem:[%s1 + $0x48] sm:$0xff]
  %s160 = scalar_lea.vmem %s1, 80
  %v161 = vld [vmem:[%s160] ss:$8 sm:$0x3]
  %v163 = vlaneseq
  %v164 = vshrl.u32 %v163, 7
  %v165 = vsub.s32 0, %v164
  %v166 = vrot.slane %v161, %v165
  %v167 = vlaneseq
  %v168 = vshrl.u32 %v167, 7
  %v169 = vsub.s32 1, %v168
  %v170 = vrot.slane %v161, %v169
  %vm173 = vcmask 130048
  %v175 = vsel %vm173, %v118, 0
  %v178 = vsel %vm173, %v123, 0
  %v181 = vsel %vm173, %v128, 0
  %v184 = vsel %vm173, %v133, 0
  %v187 = vsel %vm173, %v138, 0
  %v190 = vsel %vm173, %v143, 0
  %v193 = vsel %vm173, %v148, 0
  %v196 = vsel %vm173, %v153, 0
  %198 = vmatprep.subr.mxu0 0.0
  %199 = vmatpush1.msra.mxu0 0.0
  %200 = vmatprep.subr.mxu0 0.0
  %201 = vmatpush1.msra.mxu0 0.0
  %202 = vmatprep.subr.mxu0 0.0
  %203 = vmatpush1.msra.mxu0 0.0
  %204 = vmatprep.subr.mxu0 0.0
  %205 = vmatpush1.msra.mxu0 0.0
  %206 = vmatprep.subr.mxu0 0.0
  %207 = vmatpush1.msra.mxu0 0.0
  %208 = vmatprep.subr.mxu0 0.0
  %209 = vmatpush1.msra.mxu0 0.0
  %210 = vmatprep.subr.mxu0 0.0
  %211 = vmatpush1.msra.mxu0 0.0
  %212 = vmatprep.subr.mxu0 0.0
  %213 = vmatpush1.msra.mxu0 0.0
  %214 = vmatprep.subr.mxu0 0.0
  %215 = vmatpush1.msra.mxu0 0.0
  %216 = vmatprep.subr.mxu0 0.0
  %217 = vmatpush1.msra.mxu0 0.0
  %218 = vmatprep.subr.mxu0 0.0
  %219 = vmatpush1.msra.mxu0 0.0
  %220 = vmatprep.subr.mxu0 0.0
  %221 = vmatpush1.msra.mxu0 0.0
  %222 = vmatprep.subr.mxu0 0.0
  %223 = vmatpush1.msra.mxu0 0.0
  %224 = vmatprep.subr.mxu0 0.0
  %225 = vmatpush1.msra.mxu0 0.0
  %226 = vmatprep.subr.mxu0 %v159
  %227 = vmatpush1.msra.mxu0 %v158
  %228 = vmatprep.subr.mxu0 %v157
  %229 = vmatpush1.msra.mxu0 %v156
  %230 = vmatprep.subr.mxu0 0.0
  %231 = vmatpush2.msra.mxu0 0.0
  %232 = vmatprep.subr.mxu0 0.0
  %233 = vmatpush2.msra.mxu0 0.0
  %234 = vmatprep.subr.mxu0 0.0
  %235 = vmatpush2.msra.mxu0 0.0
  %236 = vmatprep.subr.mxu0 0.0
  %237 = vmatpush2.msra.mxu0 0.0
  %238 = vmatprep.subr.mxu0 0.0
  %239 = vmatpush2.msra.mxu0 0.0
  %240 = vmatprep.subr.mxu0 0.0
  %241 = vmatpush2.msra.mxu0 0.0
  %242 = vmatprep.subr.mxu0 0.0
  %243 = vmatpush2.msra.mxu0 0.0
  %244 = vmatprep.subr.mxu0 0.0
  %245 = vmatpush2.msra.mxu0 0.0
  %246 = vmatprep.subr.mxu0 0.0
  %247 = vmatpush2.msra.mxu0 0.0
  %248 = vmatprep.subr.mxu0 0.0
  %249 = vmatpush2.msra.mxu0 0.0
  %250 = vmatprep.subr.mxu0 0.0
  %251 = vmatpush2.msra.mxu0 0.0
  %252 = vmatprep.subr.mxu0 0.0
  %253 = vmatpush2.msra.mxu0 0.0
  %254 = vmatprep.subr.mxu0 0.0
  %255 = vmatpush2.msra.mxu0 0.0
  %256 = vmatprep.subr.mxu0 0.0
  %257 = vmatpush2.msra.mxu0 0.0
  %258 = vmatprep.subr.mxu0 0.0
  %259 = vmatpush2.msra.mxu0 0.0
  %260 = vmatprep.subr.mxu0 0.0
  %261 = vmatpush2.msra.mxu0 0.0
  %262 = vmatprep.mubr.f32.mxu0 0.0
  %263 = vmatmul.mubr.f32.gmra.mxu0 %v175
  %v264 = vpop.f32.mrf.mxu0
  %v265 = vadd.f32 %v166, %v264
  %v266 = vpop.f32.mrf.mxu0
  %v267 = vadd.f32 %v170, %v266
  %268 = vmatprep.mubr.f32.mxu0 0.0
  %269 = vmatmul.mubr.f32.gmra.mxu0 %v178
  %v270 = vpop.f32.mrf.mxu0
  %v271 = vadd.f32 %v166, %v270
  %v272 = vpop.f32.mrf.mxu0
  %v273 = vadd.f32 %v170, %v272
  %274 = vmatprep.mubr.f32.mxu0 0.0
  %275 = vmatmul.mubr.f32.gmra.mxu0 %v181
  %v276 = vpop.f32.mrf.mxu0
  %v277 = vadd.f32 %v166, %v276
  %v278 = vpop.f32.mrf.mxu0
  %v279 = vadd.f32 %v170, %v278
  %280 = vmatprep.mubr.f32.mxu0 0.0
  %281 = vmatmul.mubr.f32.gmra.mxu0 %v184
  %v282 = vpop.f32.mrf.mxu0
  %v283 = vadd.f32 %v166, %v282
  %v284 = vpop.f32.mrf.mxu0
  %v285 = vadd.f32 %v170, %v284
  %286 = vmatprep.mubr.f32.mxu0 0.0
  %287 = vmatmul.mubr.f32.gmra.mxu0 %v187
  %v288 = vpop.f32.mrf.mxu0
  %v289 = vadd.f32 %v166, %v288
  %v290 = vpop.f32.mrf.mxu0
  %v291 = vadd.f32 %v170, %v290
  %292 = vmatprep.mubr.f32.mxu0 0.0
  %293 = vmatmul.mubr.f32.gmra.mxu0 %v190
  %v294 = vpop.f32.mrf.mxu0
  %v295 = vadd.f32 %v166, %v294
  %v296 = vpop.f32.mrf.mxu0
  %v297 = vadd.f32 %v170, %v296
  %298 = vmatprep.mubr.f32.mxu0 0.0
  %299 = vmatmul.mubr.f32.gmra.mxu0 %v193
  %v300 = vpop.f32.mrf.mxu0
  %v301 = vadd.f32 %v166, %v300
  %v302 = vpop.f32.mrf.mxu0
  %v303 = vadd.f32 %v170, %v302
  %304 = vmatprep.mubr.f32.mxu0 0.0
  %305 = vmatmul.mubr.f32.gmra.mxu0 %v196
  %v306 = vpop.f32.mrf.mxu0
  %v307 = vadd.f32 %v166, %v306
  %v308 = vpop.f32.mrf.mxu0
  %v309 = vadd.f32 %v170, %v308
  %310 = vdwg.mxu0
  %v311 = vmax.f32 %v265, 0.0
  %v312 = vmax.f32 %v267, 0.0
  %v313 = vmax.f32 %v271, 0.0
  %v314 = vmax.f32 %v273, 0.0
  %v315 = vmax.f32 %v277, 0.0
  %v316 = vmax.f32 %v279, 0.0
  %v317 = vmax.f32 %v283, 0.0
  %v318 = vmax.f32 %v285, 0.0
  %v319 = vmax.f32 %v289, 0.0
  %v320 = vmax.f32 %v291, 0.0
  %v321 = vmax.f32 %v295, 0.0
  %v322 = vmax.f32 %v297, 0.0
  %v323 = vmax.f32 %v301, 0.0
  %v324 = vmax.f32 %v303, 0.0
  %v325 = vmax.f32 %v307, 0.0
  %v326 = vmax.f32 %v309, 0.0
  %v327 = vld [vmem:[%s1 + $0x60] sm:$0xff]
  %v328 = vld [vmem:[%s1 + $0x70] sm:$0xff]
  %v329 = vld [vmem:[%s1 + $0x80] ss:$0 sm:$0xff]
  %v331 = vsel %vm173, %v312, 0
  %v334 = vsel %vm173, %v314, 0
  %v337 = vsel %vm173, %v316, 0
  %v340 = vsel %vm173, %v318, 0
  %v343 = vsel %vm173, %v320, 0
  %v346 = vsel %vm173, %v322, 0
  %v349 = vsel %vm173, %v324, 0
  %v352 = vsel %vm173, %v326, 0
  %354 = vmatprep.subr.mxu0 0.0
  %355 = vmatpush1.msra.mxu0 0.0
  %356 = vmatprep.subr.mxu0 0.0
  %357 = vmatpush1.msra.mxu0 0.0
  %358 = vmatprep.subr.mxu0 0.0
  %359 = vmatpush1.msra.mxu0 0.0
  %360 = vmatprep.subr.mxu0 0.0
  %361 = vmatpush1.msra.mxu0 0.0
  %362 = vmatprep.subr.mxu0 0.0
  %363 = vmatpush1.msra.mxu0 0.0
  %364 = vmatprep.subr.mxu0 0.0
  %365 = vmatpush1.msra.mxu0 0.0
  %366 = vmatprep.subr.mxu0 0.0
  %367 = vmatpush1.msra.mxu0 0.0
  %368 = vmatprep.subr.mxu0 0.0
  %369 = vmatpush1.msra.mxu0 0.0
  %370 = vmatprep.subr.mxu0 0.0
  %371 = vmatpush1.msra.mxu0 0.0
  %372 = vmatprep.subr.mxu0 0.0
  %373 = vmatpush1.msra.mxu0 0.0
  %374 = vmatprep.subr.mxu0 0.0
  %375 = vmatpush1.msra.mxu0 0.0
  %376 = vmatprep.subr.mxu0 0.0
  %377 = vmatpush1.msra.mxu0 0.0
  %378 = vmatprep.subr.mxu0 0.0
  %379 = vmatpush1.msra.mxu0 0.0
  %380 = vmatprep.subr.mxu0 0.0
  %381 = vmatpush1.msra.mxu0 0.0
  %382 = vmatprep.subr.mxu0 0.0
  %383 = vmatpush1.msra.mxu0 %v328
  %384 = vmatprep.subr.mxu0 0.0
  %385 = vmatpush1.msra.mxu0 %v327
  %386 = vmatprep.subr.mxu0 0.0
  %387 = vmatpush2.msra.mxu0 0.0
  %388 = vmatprep.subr.mxu0 0.0
  %389 = vmatpush2.msra.mxu0 0.0
  %390 = vmatprep.subr.mxu0 0.0
  %391 = vmatpush2.msra.mxu0 0.0
  %392 = vmatprep.subr.mxu0 0.0
  %393 = vmatpush2.msra.mxu0 0.0
  %394 = vmatprep.subr.mxu0 0.0
  %395 = vmatpush2.msra.mxu0 0.0
  %396 = vmatprep.subr.mxu0 0.0
  %397 = vmatpush2.msra.mxu0 0.0
  %398 = vmatprep.subr.mxu0 0.0
  %399 = vmatpush2.msra.mxu0 0.0
  %400 = vmatprep.subr.mxu0 0.0
  %401 = vmatpush2.msra.mxu0 0.0
  %402 = vmatprep.subr.mxu0 0.0
  %403 = vmatpush2.msra.mxu0 0.0
  %404 = vmatprep.subr.mxu0 0.0
  %405 = vmatpush2.msra.mxu0 0.0
  %406 = vmatprep.subr.mxu0 0.0
  %407 = vmatpush2.msra.mxu0 0.0
  %408 = vmatprep.subr.mxu0 0.0
  %409 = vmatpush2.msra.mxu0 0.0
  %410 = vmatprep.subr.mxu0 0.0
  %411 = vmatpush2.msra.mxu0 0.0
  %412 = vmatprep.subr.mxu0 0.0
  %413 = vmatpush2.msra.mxu0 0.0
  %414 = vmatprep.subr.mxu0 0.0
  %415 = vmatpush2.msra.mxu0 0.0
  %416 = vmatprep.subr.mxu0 0.0
  %417 = vmatpush2.msra.mxu0 0.0
  %418 = vmatprep.mubr.f32.mxu0 0.0
  %419 = vmatmul.mubr.f32.gmra.mxu0 %v331
  %v420 = vpop.f32.mrf.mxu0
  %v421 = vadd.f32 %v329, %v420
  %v422 = vpop.f32.mrf.mxu0
  %423 = vmatprep.mubr.f32.mxu0 0.0
  %424 = vmatmul.mubr.f32.gmra.mxu0 %v334
  %v425 = vpop.f32.mrf.mxu0
  %v426 = vadd.f32 %v329, %v425
  %v427 = vpop.f32.mrf.mxu0
  %428 = vmatprep.mubr.f32.mxu0 0.0
  %429 = vmatmul.mubr.f32.gmra.mxu0 %v337
  %v430 = vpop.f32.mrf.mxu0
  %v431 = vadd.f32 %v329, %v430
  %v432 = vpop.f32.mrf.mxu0
  %433 = vmatprep.mubr.f32.mxu0 0.0
  %434 = vmatmul.mubr.f32.gmra.mxu0 %v340
  %v435 = vpop.f32.mrf.mxu0
  %v436 = vadd.f32 %v329, %v435
  %v437 = vpop.f32.mrf.mxu0
  %438 = vmatprep.mubr.f32.mxu0 0.0
  %439 = vmatmul.mubr.f32.gmra.mxu0 %v343
  %v440 = vpop.f32.mrf.mxu0
  %v441 = vadd.f32 %v329, %v440
  %v442 = vpop.f32.mrf.mxu0
  %443 = vmatprep.mubr.f32.mxu0 0.0
  %444 = vmatmul.mubr.f32.gmra.mxu0 %v346
  %v445 = vpop.f32.mrf.mxu0
  %v446 = vadd.f32 %v329, %v445
  %v447 = vpop.f32.mrf.mxu0
  %448 = vmatprep.mubr.f32.mxu0 0.0
  %449 = vmatmul.mubr.f32.gmra.mxu0 %v349
  %v450 = vpop.f32.mrf.mxu0
  %v451 = vadd.f32 %v329, %v450
  %v452 = vpop.f32.mrf.mxu0
  %453 = vmatprep.mubr.f32.mxu0 0.0
  %454 = vmatmul.mubr.f32.gmra.mxu0 %v352
  %v455 = vpop.f32.mrf.mxu0
  %v456 = vadd.f32 %v329, %v455
  %v457 = vpop.f32.mrf.mxu0
  %458 = vdwg.mxu0
  %v459 = vld [vmem:[%s1 + $0x90] sm:$0x3f]
  %v460 = vld [vmem:[%s1 + $0xa0] ss:$0 sm:$0xff]
  %461 = vrot.lane.b32.xlu0 %v11, 115
  %v462 = vpop.permute.xlu0 %461
  %463 = vrot.lane.b32.xlu0 %v12, 115
  %v464 = vpop.permute.xlu0 %463
  %465 = vrot.lane.b32.xlu0 %v13, 115
  %v466 = vpop.permute.xlu0 %465
  %467 = vrot.lane.b32.xlu0 %v14, 115
  %v468 = vpop.permute.xlu0 %467
  %469 = vrot.lane.b32.xlu0 %v15, 115
  %v470 = vpop.permute.xlu0 %469
  %471 = vrot.lane.b32.xlu0 %v16, 115
  %v472 = vpop.permute.xlu0 %471
  %473 = vrot.lane.b32.xlu0 %v17, 115
  %v474 = vpop.permute.xlu0 %473
  %475 = vrot.lane.b32.xlu0 %v18, 115
  %v476 = vpop.permute.xlu0 %475
  %vm477 = vcmask 48128
  %v478 = vsel %vm477, %v462, 0
  %v480 = vsel %vm477, %v464, 0
  %v482 = vsel %vm477, %v466, 0
  %v484 = vsel %vm477, %v468, 0
  %v486 = vsel %vm477, %v470, 0
  %v488 = vsel %vm477, %v472, 0
  %v490 = vsel %vm477, %v474, 0
  %v492 = vsel %vm477, %v476, 0
  %vm494 = vcmask 1045504
  %v496 = vsel %vm494, %v459, 0
  %498 = vmatprep.subr.mxu0 0.0
  %499 = vmatpush1.msra.mxu0 0.0
  %500 = vmatprep.subr.mxu0 0.0
  %501 = vmatpush1.msra.mxu0 0.0
  %502 = vmatprep.subr.mxu0 0.0
  %503 = vmatpush1.msra.mxu0 0.0
  %504 = vmatprep.subr.mxu0 0.0
  %505 = vmatpush1.msra.mxu0 0.0
  %506 = vmatprep.subr.mxu0 0.0
  %507 = vmatpush1.msra.mxu0 0.0
  %508 = vmatprep.subr.mxu0 0.0
  %509 = vmatpush1.msra.mxu0 0.0
  %510 = vmatprep.subr.mxu0 0.0
  %511 = vmatpush1.msra.mxu0 0.0
  %512 = vmatprep.subr.mxu0 0.0
  %513 = vmatpush1.msra.mxu0 0.0
  %514 = vmatprep.subr.mxu0 0.0
  %515 = vmatpush1.msra.mxu0 0.0
  %516 = vmatprep.subr.mxu0 0.0
  %517 = vmatpush1.msra.mxu0 0.0
  %518 = vmatprep.subr.mxu0 0.0
  %519 = vmatpush1.msra.mxu0 0.0
  %520 = vmatprep.subr.mxu0 0.0
  %521 = vmatpush1.msra.mxu0 0.0
  %522 = vmatprep.subr.mxu0 0.0
  %523 = vmatpush1.msra.mxu0 0.0
  %524 = vmatprep.subr.mxu0 0.0
  %525 = vmatpush1.msra.mxu0 0.0
  %526 = vmatprep.subr.mxu0 0.0
  %527 = vmatpush1.msra.mxu0 0.0
  %528 = vmatprep.subr.mxu0 0.0
  %529 = vmatpush1.msra.mxu0 %v496
  %530 = vmatprep.subr.mxu0 0.0
  %531 = vmatpush2.msra.mxu0 0.0
  %532 = vmatprep.subr.mxu0 0.0
  %533 = vmatpush2.msra.mxu0 0.0
  %534 = vmatprep.subr.mxu0 0.0
  %535 = vmatpush2.msra.mxu0 0.0
  %536 = vmatprep.subr.mxu0 0.0
  %537 = vmatpush2.msra.mxu0 0.0
  %538 = vmatprep.subr.mxu0 0.0
  %539 = vmatpush2.msra.mxu0 0.0
  %540 = vmatprep.subr.mxu0 0.0
  %541 = vmatpush2.msra.mxu0 0.0
  %542 = vmatprep.subr.mxu0 0.0
  %543 = vmatpush2.msra.mxu0 0.0
  %544 = vmatprep.subr.mxu0 0.0
  %545 = vmatpush2.msra.mxu0 0.0
  %546 = vmatprep.subr.mxu0 0.0
  %547 = vmatpush2.msra.mxu0 0.0
  %548 = vmatprep.subr.mxu0 0.0
  %549 = vmatpush2.msra.mxu0 0.0
  %550 = vmatprep.subr.mxu0 0.0
  %551 = vmatpush2.msra.mxu0 0.0
  %552 = vmatprep.subr.mxu0 0.0
  %553 = vmatpush2.msra.mxu0 0.0
  %554 = vmatprep.subr.mxu0 0.0
  %555 = vmatpush2.msra.mxu0 0.0
  %556 = vmatprep.subr.mxu0 0.0
  %557 = vmatpush2.msra.mxu0 0.0
  %558 = vmatprep.subr.mxu0 0.0
  %559 = vmatpush2.msra.mxu0 0.0
  %560 = vmatprep.subr.mxu0 0.0
  %561 = vmatpush2.msra.mxu0 0.0
  %562 = vmatprep.mubr.f32.mxu0 0.0
  %563 = vmatmul.mubr.f32.gmra.mxu0 %v478
  %v564 = vpop.f32.mrf.mxu0
  %v565 = vadd.f32 %v460, %v564
  %v566 = vpop.f32.mrf.mxu0
  %567 = vmatprep.mubr.f32.mxu0 0.0
  %568 = vmatmul.mubr.f32.gmra.mxu0 %v480
  %v569 = vpop.f32.mrf.mxu0
  %v570 = vadd.f32 %v460, %v569
  %v571 = vpop.f32.mrf.mxu0
  %572 = vmatprep.mubr.f32.mxu0 0.0
  %573 = vmatmul.mubr.f32.gmra.mxu0 %v482
  %v574 = vpop.f32.mrf.mxu0
  %v575 = vadd.f32 %v460, %v574
  %v576 = vpop.f32.mrf.mxu0
  %577 = vmatprep.mubr.f32.mxu0 0.0
  %578 = vmatmul.mubr.f32.gmra.mxu0 %v484
  %v579 = vpop.f32.mrf.mxu0
  %v580 = vadd.f32 %v460, %v579
  %v581 = vpop.f32.mrf.mxu0
  %582 = vmatprep.mubr.f32.mxu0 0.0
  %583 = vmatmul.mubr.f32.gmra.mxu0 %v486
  %v584 = vpop.f32.mrf.mxu0
  %v585 = vadd.f32 %v460, %v584
  %v586 = vpop.f32.mrf.mxu0
  %587 = vmatprep.mubr.f32.mxu0 0.0
  %588 = vmatmul.mubr.f32.gmra.mxu0 %v488
  %v589 = vpop.f32.mrf.mxu0
  %v590 = vadd.f32 %v460, %v589
  %v591 = vpop.f32.mrf.mxu0
  %592 = vmatprep.mubr.f32.mxu0 0.0
  %593 = vmatmul.mubr.f32.gmra.mxu0 %v490
  %v594 = vpop.f32.mrf.mxu0
  %v595 = vadd.f32 %v460, %v594
  %v596 = vpop.f32.mrf.mxu0
  %597 = vmatprep.mubr.f32.mxu0 0.0
  %598 = vmatmul.mubr.f32.gmra.mxu0 %v492
  %v599 = vpop.f32.mrf.mxu0
  %v600 = vadd.f32 %v460, %v599
  %v601 = vpop.f32.mrf.mxu0
  %602 = vdwg.mxu0
  %611 = vrot.lane.b32.xlu0 %v421, 8
  %v612 = vpop.permute.xlu0 %611
  %613 = vrot.lane.b32.xlu0 %v426, 8
  %v614 = vpop.permute.xlu0 %613
  %615 = vrot.lane.b32.xlu0 %v431, 8
  %v616 = vpop.permute.xlu0 %615
  %617 = vrot.lane.b32.xlu0 %v436, 8
  %v618 = vpop.permute.xlu0 %617
  %619 = vrot.lane.b32.xlu0 %v441, 8
  %v620 = vpop.permute.xlu0 %619
  %621 = vrot.lane.b32.xlu0 %v446, 8
  %v622 = vpop.permute.xlu0 %621
  %623 = vrot.lane.b32.xlu0 %v451, 8
  %v624 = vpop.permute.xlu0 %623
  %625 = vrot.lane.b32.xlu0 %v456, 8
  %v626 = vpop.permute.xlu0 %625
  %635 = vrot.lane.b32.xlu0 %v421, 16
  %v636 = vpop.permute.xlu0 %635
  %637 = vrot.lane.b32.xlu0 %v426, 16
  %v638 = vpop.permute.xlu0 %637
  %639 = vrot.lane.b32.xlu0 %v431, 16
  %v640 = vpop.permute.xlu0 %639
  %641 = vrot.lane.b32.xlu0 %v436, 16
  %v642 = vpop.permute.xlu0 %641
  %643 = vrot.lane.b32.xlu0 %v441, 16
  %v644 = vpop.permute.xlu0 %643
  %645 = vrot.lane.b32.xlu0 %v446, 16
  %v646 = vpop.permute.xlu0 %645
  %647 = vrot.lane.b32.xlu0 %v451, 16
  %v648 = vpop.permute.xlu0 %647
  %649 = vrot.lane.b32.xlu0 %v456, 16
  %v650 = vpop.permute.xlu0 %649
  %vm659 = vcmask 64512
  %v660 = vsel %vm659, %v421, %v612
  %v661 = vsel %vm659, %v426, %v614
  %v662 = vsel %vm659, %v431, %v616
  %v663 = vsel %vm659, %v436, %v618
  %v664 = vsel %vm659, %v441, %v620
  %v665 = vsel %vm659, %v446, %v622
  %v666 = vsel %vm659, %v451, %v624
  %v667 = vsel %vm659, %v456, %v626
  %v668 = vsel %vm173, %v660, %v636
  %v669 = vsel %vm173, %v661, %v638
  %v670 = vsel %vm173, %v662, %v640
  %v671 = vsel %vm173, %v663, %v642
  %v672 = vsel %vm173, %v664, %v644
  %v673 = vsel %vm173, %v665, %v646
  %v674 = vsel %vm173, %v666, %v648
  %v675 = vsel %vm173, %v667, %v650
  %v676 = vmul.f32 %v668, %v565
  %v677 = vmul.f32 %v669, %v570
  %v678 = vmul.f32 %v670, %v575
  %v679 = vmul.f32 %v671, %v580
  %v680 = vmul.f32 %v672, %v585
  %v681 = vmul.f32 %v673, %v590
  %v682 = vmul.f32 %v674, %v595
  %v683 = vmul.f32 %v675, %v600
  %v684 = vld [vmem:[%s1 + $0xb0] sm:$0xff]
  %v685 = vld [vmem:[%s1 + $0xc0] sm:$0xff]
  %v686 = vld [vmem:[%s1 + $0xd0] sm:$0xff]
  %vm687 = vcmask 195584
  %v689 = vsel %vm687, %v676, 0
  %v692 = vsel %vm687, %v677, 0
  %v695 = vsel %vm687, %v678, 0
  %v698 = vsel %vm687, %v679, 0
  %v701 = vsel %vm687, %v680, 0
  %v704 = vsel %vm687, %v681, 0
  %v707 = vsel %vm687, %v682, 0
  %v710 = vsel %vm687, %v683, 0
  %712 = vmatprep.subr.mxu0 0.0
  %713 = vmatpush1.msra.mxu0 0.0
  %714 = vmatprep.subr.mxu0 0.0
  %715 = vmatpush1.msra.mxu0 0.0
  %716 = vmatprep.subr.mxu0 0.0
  %717 = vmatpush1.msra.mxu0 0.0
  %718 = vmatprep.subr.mxu0 0.0
  %719 = vmatpush1.msra.mxu0 0.0
  %720 = vmatprep.subr.mxu0 0.0
  %721 = vmatpush1.msra.mxu0 0.0
  %722 = vmatprep.subr.mxu0 0.0
  %723 = vmatpush1.msra.mxu0 0.0
  %724 = vmatprep.subr.mxu0 0.0
  %725 = vmatpush1.msra.mxu0 0.0
  %726 = vmatprep.subr.mxu0 0.0
  %727 = vmatpush1.msra.mxu0 0.0
  %728 = vmatprep.subr.mxu0 0.0
  %729 = vmatpush1.msra.mxu0 0.0
  %730 = vmatprep.subr.mxu0 0.0
  %731 = vmatpush1.msra.mxu0 0.0
  %732 = vmatprep.subr.mxu0 0.0
  %733 = vmatpush1.msra.mxu0 0.0
  %734 = vmatprep.subr.mxu0 0.0
  %735 = vmatpush1.msra.mxu0 0.0
  %736 = vmatprep.subr.mxu0 0.0
  %737 = vmatpush1.msra.mxu0 0.0
  %738 = vmatprep.subr.mxu0 0.0
  %739 = vmatpush1.msra.mxu0 %v686
  %740 = vmatprep.subr.mxu0 0.0
  %741 = vmatpush1.msra.mxu0 %v685
  %742 = vmatprep.subr.mxu0 0.0
  %743 = vmatpush1.msra.mxu0 %v684
  %744 = vmatprep.subr.mxu0 0.0
  %745 = vmatpush2.msra.mxu0 0.0
  %746 = vmatprep.subr.mxu0 0.0
  %747 = vmatpush2.msra.mxu0 0.0
  %748 = vmatprep.subr.mxu0 0.0
  %749 = vmatpush2.msra.mxu0 0.0
  %750 = vmatprep.subr.mxu0 0.0
  %751 = vmatpush2.msra.mxu0 0.0
  %752 = vmatprep.subr.mxu0 0.0
  %753 = vmatpush2.msra.mxu0 0.0
  %754 = vmatprep.subr.mxu0 0.0
  %755 = vmatpush2.msra.mxu0 0.0
  %756 = vmatprep.subr.mxu0 0.0
  %757 = vmatpush2.msra.mxu0 0.0
  %758 = vmatprep.subr.mxu0 0.0
  %759 = vmatpush2.msra.mxu0 0.0
  %760 = vmatprep.subr.mxu0 0.0
  %761 = vmatpush2.msra.mxu0 0.0
  %762 = vmatprep.subr.mxu0 0.0
  %763 = vmatpush2.msra.mxu0 0.0
  %764 = vmatprep.subr.mxu0 0.0
  %765 = vmatpush2.msra.mxu0 0.0
  %766 = vmatprep.subr.mxu0 0.0
  %767 = vmatpush2.msra.mxu0 0.0
  %768 = vmatprep.subr.mxu0 0.0
  %769 = vmatpush2.msra.mxu0 0.0
  %770 = vmatprep.subr.mxu0 0.0
  %771 = vmatpush2.msra.mxu0 0.0
  %772 = vmatprep.subr.mxu0 0.0
  %773 = vmatpush2.msra.mxu0 0.0
  %774 = vmatprep.subr.mxu0 0.0
  %775 = vmatpush2.msra.mxu0 0.0
  %776 = vmatprep.mubr.f32.mxu0 0.0
  %777 = vmatmul.mubr.f32.gmra.mxu0 %v689
  %v778 = vpop.f32.mrf.mxu0
  %v779 = vadd.f32 0.0, %v778
  %v780 = vpop.f32.mrf.mxu0
  %781 = vmatprep.mubr.f32.mxu0 0.0
  %782 = vmatmul.mubr.f32.gmra.mxu0 %v692
  %v783 = vpop.f32.mrf.mxu0
  %v784 = vadd.f32 0.0, %v783
  %v785 = vpop.f32.mrf.mxu0
  %786 = vmatprep.mubr.f32.mxu0 0.0
  %787 = vmatmul.mubr.f32.gmra.mxu0 %v695
  %v788 = vpop.f32.mrf.mxu0
  %v789 = vadd.f32 0.0, %v788
  %v790 = vpop.f32.mrf.mxu0
  %791 = vmatprep.mubr.f32.mxu0 0.0
  %792 = vmatmul.mubr.f32.gmra.mxu0 %v698
  %v793 = vpop.f32.mrf.mxu0
  %v794 = vadd.f32 0.0, %v793
  %v795 = vpop.f32.mrf.mxu0
  %796 = vmatprep.mubr.f32.mxu0 0.0
  %797 = vmatmul.mubr.f32.gmra.mxu0 %v701
  %v798 = vpop.f32.mrf.mxu0
  %v799 = vadd.f32 0.0, %v798
  %v800 = vpop.f32.mrf.mxu0
  %801 = vmatprep.mubr.f32.mxu0 0.0
  %802 = vmatmul.mubr.f32.gmra.mxu0 %v704
  %v803 = vpop.f32.mrf.mxu0
  %v804 = vadd.f32 0.0, %v803
  %v805 = vpop.f32.mrf.mxu0
  %806 = vmatprep.mubr.f32.mxu0 0.0
  %807 = vmatmul.mubr.f32.gmra.mxu0 %v707
  %v808 = vpop.f32.mrf.mxu0
  %v809 = vadd.f32 0.0, %v808
  %v810 = vpop.f32.mrf.mxu0
  %811 = vmatprep.mubr.f32.mxu0 0.0
  %812 = vmatmul.mubr.f32.gmra.mxu0 %v710
  %v813 = vpop.f32.mrf.mxu0
  %v814 = vadd.f32 0.0, %v813
  %v815 = vpop.f32.mrf.mxu0
  %816 = vdwg.mxu0
  %v817 = vmul.f32 %v779, 0.35355338
  %v818 = vmul.f32 %v784, 0.35355338
  %v819 = vmul.f32 %v789, 0.35355338
  %v820 = vmul.f32 %v794, 0.35355338
  %v821 = vmul.f32 %v799, 0.35355338
  %v822 = vmul.f32 %v804, 0.35355338
  %v823 = vmul.f32 %v809, 0.35355338
  %v824 = vmul.f32 %v814, 0.35355338
  %vm825 = vcmask 23552
  %v826 = vsel %vm825, %v817, -inf
  %827 = vmax.xlane.f32.xlu0 %v826
  %v828 = vpop.xlane.xlu0 %827
  %v829 = vsel %vm825, %v818, -inf
  %830 = vmax.xlane.f32.xlu0 %v829
  %v831 = vpop.xlane.xlu0 %830
  %v832 = vsel %vm825, %v819, -inf
  %833 = vmax.xlane.f32.xlu0 %v832
  %v834 = vpop.xlane.xlu0 %833
  %v835 = vsel %vm825, %v820, -inf
  %836 = vmax.xlane.f32.xlu0 %v835
  %v837 = vpop.xlane.xlu0 %836
  %v838 = vsel %vm825, %v821, -inf
  %839 = vmax.xlane.f32.xlu0 %v838
  %v840 = vpop.xlane.xlu0 %839
  %v841 = vsel %vm825, %v822, -inf
  %842 = vmax.xlane.f32.xlu0 %v841
  %v843 = vpop.xlane.xlu0 %842
  %v844 = vsel %vm825, %v823, -inf
  %845 = vmax.xlane.f32.xlu0 %v844
  %v846 = vpop.xlane.xlu0 %845
  %v847 = vsel %vm825, %v824, -inf
  %848 = vmax.xlane.f32.xlu0 %v847
  %v849 = vpop.xlane.xlu0 %848
  %v850 = vsub.f32 %v817, %v828
  %v851 = vsub.f32 %v818, %v831
  %v852 = vsub.f32 %v819, %v834
  %v853 = vsub.f32 %v820, %v837
  %v854 = vsub.f32 %v821, %v840
  %v855 = vsub.f32 %v822, %v843
  %v856 = vsub.f32 %v823, %v846
  %v857 = vsub.f32 %v824, %v849
  %v858 = vmul.f32 %v850, 1.442695
  %v859 = vpow.pop %v858
  %v860 = vmul.f32 %v851, 1.442695
  %v861 = vpow.pop %v860
  %v862 = vmul.f32 %v852, 1.442695
  %v863 = vpow.pop %v862
  %v864 = vmul.f32 %v853, 1.442695
  %v865 = vpow.pop %v864
  %v866 = vmul.f32 %v854, 1.442695
  %v867 = vpow.pop %v866
  %v868 = vmul.f32 %v855, 1.442695
  %v869 = vpow.pop %v868
  %v870 = vmul.f32 %v856, 1.442695
  %v871 = vpow.pop %v870
  %v872 = vmul.f32 %v857, 1.442695
  %v873 = vpow.pop %v872
  %v874 = vsel %vm825, %v859, 0.0
  %875 = vadd.xlane.f32.xlu0 %v874
  %v876 = vpop.xlane.xlu0 %875
  %v877 = vsel %vm825, %v861, 0.0
  %878 = vadd.xlane.f32.xlu0 %v877
  %v879 = vpop.xlane.xlu0 %878
  %v880 = vsel %vm825, %v863, 0.0
  %881 = vadd.xlane.f32.xlu0 %v880
  %v882 = vpop.xlane.xlu0 %881
  %v883 = vsel %vm825, %v865, 0.0
  %884 = vadd.xlane.f32.xlu0 %v883
  %v885 = vpop.xlane.xlu0 %884
  %v886 = vsel %vm825, %v867, 0.0
  %887 = vadd.xlane.f32.xlu0 %v886
  %v888 = vpop.xlane.xlu0 %887
  %v889 = vsel %vm825, %v869, 0.0
  %890 = vadd.xlane.f32.xlu0 %v889
  %v891 = vpop.xlane.xlu0 %890
  %v892 = vsel %vm825, %v871, 0.0
  %893 = vadd.xlane.f32.xlu0 %v892
  %v894 = vpop.xlane.xlu0 %893
  %v895 = vsel %vm825, %v873, 0.0
  %896 = vadd.xlane.f32.xlu0 %v895
  %v897 = vpop.xlane.xlu0 %896
  %v898 = vrcp.pop %v876
  %v899 = vmul.f32 %v859, %v898
  %v900 = vrcp.pop %v879
  %v901 = vmul.f32 %v861, %v900
  %v902 = vrcp.pop %v882
  %v903 = vmul.f32 %v863, %v902
  %v904 = vrcp.pop %v885
  %v905 = vmul.f32 %v865, %v904
  %v906 = vrcp.pop %v888
  %v907 = vmul.f32 %v867, %v906
  %v908 = vrcp.pop %v891
  %v909 = vmul.f32 %v869, %v908
  %v910 = vrcp.pop %v894
  %v911 = vmul.f32 %v871, %v910
  %v912 = vrcp.pop %v897
  %v913 = vmul.f32 %v873, %v912
  %v914 = vld [vmem:[%s1 + $0xe0] sm:$0x7]
  %v916 = vsel %vm825, %v899, 0
  %v919 = vsel %vm825, %v901, 0
  %v922 = vsel %vm825, %v903, 0
  %v925 = vsel %vm825, %v905, 0
  %v928 = vsel %vm825, %v907, 0
  %v931 = vsel %vm825, %v909, 0
  %v934 = vsel %vm825, %v911, 0
  %v937 = vsel %vm825, %v913, 0
  %vm939 = vcmask 1042432
  %v941 = vsel %vm939, %v914, 0
  %943 = vmatprep.subr.mxu0 0.0
  %944 = vmatpush1.msra.mxu0 0.0
  %945 = vmatprep.subr.mxu0 0.0
  %946 = vmatpush1.msra.mxu0 0.0
  %947 = vmatprep.subr.mxu0 0.0
  %948 = vmatpush1.msra.mxu0 0.0
  %949 = vmatprep.subr.mxu0 0.0
  %950 = vmatpush1.msra.mxu0 0.0
  %951 = vmatprep.subr.mxu0 0.0
  %952 = vmatpush1.msra.mxu0 0.0
  %953 = vmatprep.subr.mxu0 0.0
  %954 = vmatpush1.msra.mxu0 0.0
  %955 = vmatprep.subr.mxu0 0.0
  %956 = vmatpush1.msra.mxu0 0.0
  %957 = vmatprep.subr.mxu0 0.0
  %958 = vmatpush1.msra.mxu0 0.0
  %959 = vmatprep.subr.mxu0 0.0
  %960 = vmatpush1.msra.mxu0 0.0
  %961 = vmatprep.subr.mxu0 0.0
  %962 = vmatpush1.msra.mxu0 0.0
  %963 = vmatprep.subr.mxu0 0.0
  %964 = vmatpush1.msra.mxu0 0.0
  %965 = vmatprep.subr.mxu0 0.0
  %966 = vmatpush1.msra.mxu0 0.0
  %967 = vmatprep.subr.mxu0 0.0
  %968 = vmatpush1.msra.mxu0 0.0
  %969 = vmatprep.subr.mxu0 0.0
  %970 = vmatpush1.msra.mxu0 0.0
  %971 = vmatprep.subr.mxu0 0.0
  %972 = vmatpush1.msra.mxu0 0.0
  %973 = vmatprep.subr.mxu0 0.0
  %974 = vmatpush1.msra.mxu0 %v941
  %975 = vmatprep.subr.mxu0 0.0
  %976 = vmatpush2.msra.mxu0 0.0
  %977 = vmatprep.subr.mxu0 0.0
  %978 = vmatpush2.msra.mxu0 0.0
  %979 = vmatprep.subr.mxu0 0.0
  %980 = vmatpush2.msra.mxu0 0.0
  %981 = vmatprep.subr.mxu0 0.0
  %982 = vmatpush2.msra.mxu0 0.0
  %983 = vmatprep.subr.mxu0 0.0
  %984 = vmatpush2.msra.mxu0 0.0
  %985 = vmatprep.subr.mxu0 0.0
  %986 = vmatpush2.msra.mxu0 0.0
  %987 = vmatprep.subr.mxu0 0.0
  %988 = vmatpush2.msra.mxu0 0.0
  %989 = vmatprep.subr.mxu0 0.0
  %990 = vmatpush2.msra.mxu0 0.0
  %991 = vmatprep.subr.mxu0 0.0
  %992 = vmatpush2.msra.mxu0 0.0
  %993 = vmatprep.subr.mxu0 0.0
  %994 = vmatpush2.msra.mxu0 0.0
  %995 = vmatprep.subr.mxu0 0.0
  %996 = vmatpush2.msra.mxu0 0.0
  %997 = vmatprep.subr.mxu0 0.0
  %998 = vmatpush2.msra.mxu0 0.0
  %999 = vmatprep.subr.mxu0 0.0
  %1000 = vmatpush2.msra.mxu0 0.0
  %1001 = vmatprep.subr.mxu0 0.0
  %1002 = vmatpush2.msra.mxu0 0.0
  %1003 = vmatprep.subr.mxu0 0.0
  %1004 = vmatpush2.msra.mxu0 0.0
  %1005 = vmatprep.subr.mxu0 0.0
  %1006 = vmatpush2.msra.mxu0 0.0
  %1007 = vmatprep.mubr.f32.mxu0 0.0
  %1008 = vmatmul.mubr.f32.gmra.mxu0 %v916
  %v1009 = vpop.f32.mrf.mxu0
  %v1010 = vadd.f32 0.0, %v1009
  %v1011 = vpop.f32.mrf.mxu0
  %1012 = vmatprep.mubr.f32.mxu0 0.0
  %1013 = vmatmul.mubr.f32.gmra.mxu0 %v919
  %v1014 = vpop.f32.mrf.mxu0
  %v1015 = vadd.f32 0.0, %v1014
  %v1016 = vpop.f32.mrf.mxu0
  %1017 = vmatprep.mubr.f32.mxu0 0.0
  %1018 = vmatmul.mubr.f32.gmra.mxu0 %v922
  %v1019 = vpop.f32.mrf.mxu0
  %v1020 = vadd.f32 0.0, %v1019
  %v1021 = vpop.f32.mrf.mxu0
  %1022 = vmatprep.mubr.f32.mxu0 0.0
  %1023 = vmatmul.mubr.f32.gmra.mxu0 %v925
  %v1024 = vpop.f32.mrf.mxu0
  %v1025 = vadd.f32 0.0, %v1024
  %v1026 = vpop.f32.mrf.mxu0
  %1027 = vmatprep.mubr.f32.mxu0 0.0
  %1028 = vmatmul.mubr.f32.gmra.mxu0 %v928
  %v1029 = vpop.f32.mrf.mxu0
  %v1030 = vadd.f32 0.0, %v1029
  %v1031 = vpop.f32.mrf.mxu0
  %1032 = vmatprep.mubr.f32.mxu0 0.0
  %1033 = vmatmul.mubr.f32.gmra.mxu0 %v931
  %v1034 = vpop.f32.mrf.mxu0
  %v1035 = vadd.f32 0.0, %v1034
  %v1036 = vpop.f32.mrf.mxu0
  %1037 = vmatprep.mubr.f32.mxu0 0.0
  %1038 = vmatmul.mubr.f32.gmra.mxu0 %v934
  %v1039 = vpop.f32.mrf.mxu0
  %v1040 = vadd.f32 0.0, %v1039
  %v1041 = vpop.f32.mrf.mxu0
  %1042 = vmatprep.mubr.f32.mxu0 0.0
  %1043 = vmatmul.mubr.f32.gmra.mxu0 %v937
  %v1044 = vpop.f32.mrf.mxu0
  %v1045 = vadd.f32 0.0, %v1044
  %v1046 = vpop.f32.mrf.mxu0
  %1047 = vdwg.mxu0
  %1056 = vrot.lane.b32.xlu0 %v565, 104
  %v1057 = vpop.permute.xlu0 %1056
  %1058 = vrot.lane.b32.xlu0 %v570, 104
  %v1059 = vpop.permute.xlu0 %1058
  %1060 = vrot.lane.b32.xlu0 %v575, 104
  %v1061 = vpop.permute.xlu0 %1060
  %1062 = vrot.lane.b32.xlu0 %v580, 104
  %v1063 = vpop.permute.xlu0 %1062
  %1064 = vrot.lane.b32.xlu0 %v585, 104
  %v1065 = vpop.permute.xlu0 %1064
  %1066 = vrot.lane.b32.xlu0 %v590, 104
  %v1067 = vpop.permute.xlu0 %1066
  %1068 = vrot.lane.b32.xlu0 %v595, 104
  %v1069 = vpop.permute.xlu0 %1068
  %1070 = vrot.lane.b32.xlu0 %v600, 104
  %v1071 = vpop.permute.xlu0 %1070
  %v1080 = vmul.f32 %v1010, %v1057
  %v1081 = vmul.f32 %v1015, %v1059
  %v1082 = vmul.f32 %v1020, %v1061
  %v1083 = vmul.f32 %v1025, %v1063
  %v1084 = vmul.f32 %v1030, %v1065
  %v1085 = vmul.f32 %v1035, %v1067
  %v1086 = vmul.f32 %v1040, %v1069
  %v1087 = vmul.f32 %v1045, %v1071
  %v1088 = vld [vmem:[%s1 + $0xf0] sm:$0xff]
  %v1089 = vld [vmem:[%s1 + $0x100] sm:$0xff]
  %v1090 = vld [vmem:[%s1 + $0x110] sm:$0xff]
  %v1092 = vsel %vm687, %v1080, 0
  %v1095 = vsel %vm687, %v1081, 0
  %v1098 = vsel %vm687, %v1082, 0
  %v1101 = vsel %vm687, %v1083, 0
  %v1104 = vsel %vm687, %v1084, 0
  %v1107 = vsel %vm687, %v1085, 0
  %v1110 = vsel %vm687, %v1086, 0
  %v1113 = vsel %vm687, %v1087, 0
  %1115 = vmatprep.subr.mxu0 0.0
  %1116 = vmatpush1.msra.mxu0 0.0
  %1117 = vmatprep.subr.mxu0 0.0
  %1118 = vmatpush1.msra.mxu0 0.0
  %1119 = vmatprep.subr.mxu0 0.0
  %1120 = vmatpush1.msra.mxu0 0.0
  %1121 = vmatprep.subr.mxu0 0.0
  %1122 = vmatpush1.msra.mxu0 0.0
  %1123 = vmatprep.subr.mxu0 0.0
  %1124 = vmatpush1.msra.mxu0 0.0
  %1125 = vmatprep.subr.mxu0 0.0
  %1126 = vmatpush1.msra.mxu0 0.0
  %1127 = vmatprep.subr.mxu0 0.0
  %1128 = vmatpush1.msra.mxu0 0.0
  %1129 = vmatprep.subr.mxu0 0.0
  %1130 = vmatpush1.msra.mxu0 0.0
  %1131 = vmatprep.subr.mxu0 0.0
  %1132 = vmatpush1.msra.mxu0 0.0
  %1133 = vmatprep.subr.mxu0 0.0
  %1134 = vmatpush1.msra.mxu0 0.0
  %1135 = vmatprep.subr.mxu0 0.0
  %1136 = vmatpush1.msra.mxu0 0.0
  %1137 = vmatprep.subr.mxu0 0.0
  %1138 = vmatpush1.msra.mxu0 0.0
  %1139 = vmatprep.subr.mxu0 0.0
  %1140 = vmatpush1.msra.mxu0 0.0
  %1141 = vmatprep.subr.mxu0 0.0
  %1142 = vmatpush1.msra.mxu0 %v1090
  %1143 = vmatprep.subr.mxu0 0.0
  %1144 = vmatpush1.msra.mxu0 %v1089
  %1145 = vmatprep.subr.mxu0 0.0
  %1146 = vmatpush1.msra.mxu0 %v1088
  %1147 = vmatprep.subr.mxu0 0.0
  %1148 = vmatpush2.msra.mxu0 0.0
  %1149 = vmatprep.subr.mxu0 0.0
  %1150 = vmatpush2.msra.mxu0 0.0
  %1151 = vmatprep.subr.mxu0 0.0
  %1152 = vmatpush2.msra.mxu0 0.0
  %1153 = vmatprep.subr.mxu0 0.0
  %1154 = vmatpush2.msra.mxu0 0.0
  %1155 = vmatprep.subr.mxu0 0.0
  %1156 = vmatpush2.msra.mxu0 0.0
  %1157 = vmatprep.subr.mxu0 0.0
  %1158 = vmatpush2.msra.mxu0 0.0
  %1159 = vmatprep.subr.mxu0 0.0
  %1160 = vmatpush2.msra.mxu0 0.0
  %1161 = vmatprep.subr.mxu0 0.0
  %1162 = vmatpush2.msra.mxu0 0.0
  %1163 = vmatprep.subr.mxu0 0.0
  %1164 = vmatpush2.msra.mxu0 0.0
  %1165 = vmatprep.subr.mxu0 0.0
  %1166 = vmatpush2.msra.mxu0 0.0
  %1167 = vmatprep.subr.mxu0 0.0
  %1168 = vmatpush2.msra.mxu0 0.0
  %1169 = vmatprep.subr.mxu0 0.0
  %1170 = vmatpush2.msra.mxu0 0.0
  %1171 = vmatprep.subr.mxu0 0.0
  %1172 = vmatpush2.msra.mxu0 0.0
  %1173 = vmatprep.subr.mxu0 0.0
  %1174 = vmatpush2.msra.mxu0 0.0
  %1175 = vmatprep.subr.mxu0 0.0
  %1176 = vmatpush2.msra.mxu0 0.0
  %1177 = vmatprep.subr.mxu0 0.0
  %1178 = vmatpush2.msra.mxu0 0.0
  %1179 = vmatprep.mubr.f32.mxu0 0.0
  %1180 = vmatmul.mubr.f32.gmra.mxu0 %v1092
  %v1181 = vpop.f32.mrf.mxu0
  %v1182 = vadd.f32 0.0, %v1181
  %v1183 = vpop.f32.mrf.mxu0
  %1184 = vmatprep.mubr.f32.mxu0 0.0
  %1185 = vmatmul.mubr.f32.gmra.mxu0 %v1095
  %v1186 = vpop.f32.mrf.mxu0
  %v1187 = vadd.f32 0.0, %v1186
  %v1188 = vpop.f32.mrf.mxu0
  %1189 = vmatprep.mubr.f32.mxu0 0.0
  %1190 = vmatmul.mubr.f32.gmra.mxu0 %v1098
  %v1191 = vpop.f32.mrf.mxu0
  %v1192 = vadd.f32 0.0, %v1191
  %v1193 = vpop.f32.mrf.mxu0
  %1194 = vmatprep.mubr.f32.mxu0 0.0
  %1195 = vmatmul.mubr.f32.gmra.mxu0 %v1101
  %v1196 = vpop.f32.mrf.mxu0
  %v1197 = vadd.f32 0.0, %v1196
  %v1198 = vpop.f32.mrf.mxu0
  %1199 = vmatprep.mubr.f32.mxu0 0.0
  %1200 = vmatmul.mubr.f32.gmra.mxu0 %v1104
  %v1201 = vpop.f32.mrf.mxu0
  %v1202 = vadd.f32 0.0, %v1201
  %v1203 = vpop.f32.mrf.mxu0
  %1204 = vmatprep.mubr.f32.mxu0 0.0
  %1205 = vmatmul.mubr.f32.gmra.mxu0 %v1107
  %v1206 = vpop.f32.mrf.mxu0
  %v1207 = vadd.f32 0.0, %v1206
  %v1208 = vpop.f32.mrf.mxu0
  %1209 = vmatprep.mubr.f32.mxu0 0.0
  %1210 = vmatmul.mubr.f32.gmra.mxu0 %v1110
  %v1211 = vpop.f32.mrf.mxu0
  %v1212 = vadd.f32 0.0, %v1211
  %v1213 = vpop.f32.mrf.mxu0
  %1214 = vmatprep.mubr.f32.mxu0 0.0
  %1215 = vmatmul.mubr.f32.gmra.mxu0 %v1113
  %v1216 = vpop.f32.mrf.mxu0
  %v1217 = vadd.f32 0.0, %v1216
  %v1218 = vpop.f32.mrf.mxu0
  %1219 = vdwg.mxu0
  %1220 = vrot.lane.b32.xlu0 %v11, 116
  %v1221 = vpop.permute.xlu0 %1220
  %1222 = vrot.lane.b32.xlu0 %v12, 116
  %v1223 = vpop.permute.xlu0 %1222
  %1224 = vrot.lane.b32.xlu0 %v13, 116
  %v1225 = vpop.permute.xlu0 %1224
  %1226 = vrot.lane.b32.xlu0 %v14, 116
  %v1227 = vpop.permute.xlu0 %1226
  %1228 = vrot.lane.b32.xlu0 %v15, 116
  %v1229 = vpop.permute.xlu0 %1228
  %1230 = vrot.lane.b32.xlu0 %v16, 116
  %v1231 = vpop.permute.xlu0 %1230
  %1232 = vrot.lane.b32.xlu0 %v17, 116
  %v1233 = vpop.permute.xlu0 %1232
  %1234 = vrot.lane.b32.xlu0 %v18, 116
  %v1235 = vpop.permute.xlu0 %1234
  %1252 = vrot.lane.b32.xlu0 %v1182, 1
  %v1253 = vpop.permute.xlu0 %1252
  %1254 = vrot.lane.b32.xlu0 %v1187, 1
  %v1255 = vpop.permute.xlu0 %1254
  %1256 = vrot.lane.b32.xlu0 %v1192, 1
  %v1257 = vpop.permute.xlu0 %1256
  %1258 = vrot.lane.b32.xlu0 %v1197, 1
  %v1259 = vpop.permute.xlu0 %1258
  %1260 = vrot.lane.b32.xlu0 %v1202, 1
  %v1261 = vpop.permute.xlu0 %1260
  %1262 = vrot.lane.b32.xlu0 %v1207, 1
  %v1263 = vpop.permute.xlu0 %1262
  %1264 = vrot.lane.b32.xlu0 %v1212, 1
  %v1265 = vpop.permute.xlu0 %1264
  %1266 = vrot.lane.b32.xlu0 %v1217, 1
  %v1267 = vpop.permute.xlu0 %1266
  %vm1276 = vcmask 7168
  %v1277 = vsel %vm1276, %v1221, %v1253
  %v1278 = vsel %vm1276, %v1223, %v1255
  %v1279 = vsel %vm1276, %v1225, %v1257
  %v1280 = vsel %vm1276, %v1227, %v1259
  %v1281 = vsel %vm1276, %v1229, %v1261
  %v1282 = vsel %vm1276, %v1231, %v1263
  %v1283 = vsel %vm1276, %v1233, %v1265
  %v1284 = vsel %vm1276, %v1235, %v1267
  %v1285 = vld [vmem:[%s1 + $0x120] sm:$0xff]
  %v1286 = vld [vmem:[%s1 + $0x130] sm:$0x1]
  %v1287 = vld [vmem:[%s1 + $0x140] ss:$0 sm:$0xff]
  %vm1288 = vcmask 72704
  %v1290 = vsel %vm1288, %v1277, 0
  %v1293 = vsel %vm1288, %v1278, 0
  %v1296 = vsel %vm1288, %v1279, 0
  %v1299 = vsel %vm1288, %v1280, 0
  %v1302 = vsel %vm1288, %v1281, 0
  %v1305 = vsel %vm1288, %v1282, 0
  %v1308 = vsel %vm1288, %v1283, 0
  %v1311 = vsel %vm1288, %v1284, 0
  %vm1313 = vcmask 1040384
  %v1315 = vsel %vm1313, %v1286, 0
  %1317 = vmatprep.subr.mxu0 0.0
  %1318 = vmatpush1.msra.mxu0 0.0
  %1319 = vmatprep.subr.mxu0 0.0
  %1320 = vmatpush1.msra.mxu0 0.0
  %1321 = vmatprep.subr.mxu0 0.0
  %1322 = vmatpush1.msra.mxu0 0.0
  %1323 = vmatprep.subr.mxu0 0.0
  %1324 = vmatpush1.msra.mxu0 0.0
  %1325 = vmatprep.subr.mxu0 0.0
  %1326 = vmatpush1.msra.mxu0 0.0
  %1327 = vmatprep.subr.mxu0 0.0
  %1328 = vmatpush1.msra.mxu0 0.0
  %1329 = vmatprep.subr.mxu0 0.0
  %1330 = vmatpush1.msra.mxu0 0.0
  %1331 = vmatprep.subr.mxu0 0.0
  %1332 = vmatpush1.msra.mxu0 0.0
  %1333 = vmatprep.subr.mxu0 0.0
  %1334 = vmatpush1.msra.mxu0 0.0
  %1335 = vmatprep.subr.mxu0 0.0
  %1336 = vmatpush1.msra.mxu0 0.0
  %1337 = vmatprep.subr.mxu0 0.0
  %1338 = vmatpush1.msra.mxu0 0.0
  %1339 = vmatprep.subr.mxu0 0.0
  %1340 = vmatpush1.msra.mxu0 0.0
  %1341 = vmatprep.subr.mxu0 0.0
  %1342 = vmatpush1.msra.mxu0 0.0
  %1343 = vmatprep.subr.mxu0 0.0
  %1344 = vmatpush1.msra.mxu0 0.0
  %1345 = vmatprep.subr.mxu0 0.0
  %1346 = vmatpush1.msra.mxu0 %v1315
  %1347 = vmatprep.subr.mxu0 0.0
  %1348 = vmatpush1.msra.mxu0 %v1285
  %1349 = vmatprep.subr.mxu0 0.0
  %1350 = vmatpush2.msra.mxu0 0.0
  %1351 = vmatprep.subr.mxu0 0.0
  %1352 = vmatpush2.msra.mxu0 0.0
  %1353 = vmatprep.subr.mxu0 0.0
  %1354 = vmatpush2.msra.mxu0 0.0
  %1355 = vmatprep.subr.mxu0 0.0
  %1356 = vmatpush2.msra.mxu0 0.0
  %1357 = vmatprep.subr.mxu0 0.0
  %1358 = vmatpush2.msra.mxu0 0.0
  %1359 = vmatprep.subr.mxu0 0.0
  %1360 = vmatpush2.msra.mxu0 0.0
  %1361 = vmatprep.subr.mxu0 0.0
  %1362 = vmatpush2.msra.mxu0 0.0
  %1363 = vmatprep.subr.mxu0 0.0
  %1364 = vmatpush2.msra.mxu0 0.0
  %1365 = vmatprep.subr.mxu0 0.0
  %1366 = vmatpush2.msra.mxu0 0.0
  %1367 = vmatprep.subr.mxu0 0.0
  %1368 = vmatpush2.msra.mxu0 0.0
  %1369 = vmatprep.subr.mxu0 0.0
  %1370 = vmatpush2.msra.mxu0 0.0
  %1371 = vmatprep.subr.mxu0 0.0
  %1372 = vmatpush2.msra.mxu0 0.0
  %1373 = vmatprep.subr.mxu0 0.0
  %1374 = vmatpush2.msra.mxu0 0.0
  %1375 = vmatprep.subr.mxu0 0.0
  %1376 = vmatpush2.msra.mxu0 0.0
  %1377 = vmatprep.subr.mxu0 0.0
  %1378 = vmatpush2.msra.mxu0 0.0
  %1379 = vmatprep.subr.mxu0 0.0
  %1380 = vmatpush2.msra.mxu0 0.0
  %1381 = vmatprep.mubr.f32.mxu0 0.0
  %1382 = vmatmul.mubr.f32.gmra.mxu0 %v1290
  %v1383 = vpop.f32.mrf.mxu0
  %v1384 = vadd.f32 %v1287, %v1383
  %v1385 = vpop.f32.mrf.mxu0
  %1386 = vmatprep.mubr.f32.mxu0 0.0
  %1387 = vmatmul.mubr.f32.gmra.mxu0 %v1293
  %v1388 = vpop.f32.mrf.mxu0
  %v1389 = vadd.f32 %v1287, %v1388
  %v1390 = vpop.f32.mrf.mxu0
  %1391 = vmatprep.mubr.f32.mxu0 0.0
  %1392 = vmatmul.mubr.f32.gmra.mxu0 %v1296
  %v1393 = vpop.f32.mrf.mxu0
  %v1394 = vadd.f32 %v1287, %v1393
  %v1395 = vpop.f32.mrf.mxu0
  %1396 = vmatprep.mubr.f32.mxu0 0.0
  %1397 = vmatmul.mubr.f32.gmra.mxu0 %v1299
  %v1398 = vpop.f32.mrf.mxu0
  %v1399 = vadd.f32 %v1287, %v1398
  %v1400 = vpop.f32.mrf.mxu0
  %1401 = vmatprep.mubr.f32.mxu0 0.0
  %1402 = vmatmul.mubr.f32.gmra.mxu0 %v1302
  %v1403 = vpop.f32.mrf.mxu0
  %v1404 = vadd.f32 %v1287, %v1403
  %v1405 = vpop.f32.mrf.mxu0
  %1406 = vmatprep.mubr.f32.mxu0 0.0
  %1407 = vmatmul.mubr.f32.gmra.mxu0 %v1305
  %v1408 = vpop.f32.mrf.mxu0
  %v1409 = vadd.f32 %v1287, %v1408
  %v1410 = vpop.f32.mrf.mxu0
  %1411 = vmatprep.mubr.f32.mxu0 0.0
  %1412 = vmatmul.mubr.f32.gmra.mxu0 %v1308
  %v1413 = vpop.f32.mrf.mxu0
  %v1414 = vadd.f32 %v1287, %v1413
  %v1415 = vpop.f32.mrf.mxu0
  %1416 = vmatprep.mubr.f32.mxu0 0.0
  %1417 = vmatmul.mubr.f32.gmra.mxu0 %v1311
  %v1418 = vpop.f32.mrf.mxu0
  %v1419 = vadd.f32 %v1287, %v1418
  %v1420 = vpop.f32.mrf.mxu0
  %1421 = vdwg.mxu0
  %v1422 = vld [vmem:[%s1 + $0x150] sm:$0xff]
  %v1423 = vld [vmem:[%s1 + $0x160] sm:$0xff]
  %v1424 = vld [vmem:[%s1 + $0x170] ss:$0 sm:$0xff]
  %v1426 = vsel %vm173, 0.0, 0
  %1428 = vmatprep.subr.mxu0 0.0
  %1429 = vmatpush1.msra.mxu0 0.0
  %1430 = vmatprep.subr.mxu0 0.0
  %1431 = vmatpush1.msra.mxu0 0.0
  %1432 = vmatprep.subr.mxu0 0.0
  %1433 = vmatpush1.msra.mxu0 0.0
  %1434 = vmatprep.subr.mxu0 0.0
  %1435 = vmatpush1.msra.mxu0 0.0
  %1436 = vmatprep.subr.mxu0 0.0
  %1437 = vmatpush1.msra.mxu0 0.0
  %1438 = vmatprep.subr.mxu0 0.0
  %1439 = vmatpush1.msra.mxu0 0.0
  %1440 = vmatprep.subr.mxu0 0.0
  %1441 = vmatpush1.msra.mxu0 0.0
  %1442 = vmatprep.subr.mxu0 0.0
  %1443 = vmatpush1.msra.mxu0 0.0
  %1444 = vmatprep.subr.mxu0 0.0
  %1445 = vmatpush1.msra.mxu0 0.0
  %1446 = vmatprep.subr.mxu0 0.0
  %1447 = vmatpush1.msra.mxu0 0.0
  %1448 = vmatprep.subr.mxu0 0.0
  %1449 = vmatpush1.msra.mxu0 0.0
  %1450 = vmatprep.subr.mxu0 0.0
  %1451 = vmatpush1.msra.mxu0 0.0
  %1452 = vmatprep.subr.mxu0 0.0
  %1453 = vmatpush1.msra.mxu0 0.0
  %1454 = vmatprep.subr.mxu0 0.0
  %1455 = vmatpush1.msra.mxu0 0.0
  %1456 = vmatprep.subr.mxu0 0.0
  %1457 = vmatpush1.msra.mxu0 %v1423
  %1458 = vmatprep.subr.mxu0 0.0
  %1459 = vmatpush1.msra.mxu0 %v1422
  %1460 = vmatprep.subr.mxu0 0.0
  %1461 = vmatpush2.msra.mxu0 0.0
  %1462 = vmatprep.subr.mxu0 0.0
  %1463 = vmatpush2.msra.mxu0 0.0
  %1464 = vmatprep.subr.mxu0 0.0
  %1465 = vmatpush2.msra.mxu0 0.0
  %1466 = vmatprep.subr.mxu0 0.0
  %1467 = vmatpush2.msra.mxu0 0.0
  %1468 = vmatprep.subr.mxu0 0.0
  %1469 = vmatpush2.msra.mxu0 0.0
  %1470 = vmatprep.subr.mxu0 0.0
  %1471 = vmatpush2.msra.mxu0 0.0
  %1472 = vmatprep.subr.mxu0 0.0
  %1473 = vmatpush2.msra.mxu0 0.0
  %1474 = vmatprep.subr.mxu0 0.0
  %1475 = vmatpush2.msra.mxu0 0.0
  %1476 = vmatprep.subr.mxu0 0.0
  %1477 = vmatpush2.msra.mxu0 0.0
  %1478 = vmatprep.subr.mxu0 0.0
  %1479 = vmatpush2.msra.mxu0 0.0
  %1480 = vmatprep.subr.mxu0 0.0
  %1481 = vmatpush2.msra.mxu0 0.0
  %1482 = vmatprep.subr.mxu0 0.0
  %1483 = vmatpush2.msra.mxu0 0.0
  %1484 = vmatprep.subr.mxu0 0.0
  %1485 = vmatpush2.msra.mxu0 0.0
  %1486 = vmatprep.subr.mxu0 0.0
  %1487 = vmatpush2.msra.mxu0 0.0
  %1488 = vmatprep.subr.mxu0 0.0
  %1489 = vmatpush2.msra.mxu0 0.0
  %1490 = vmatprep.subr.mxu0 0.0
  %1491 = vmatpush2.msra.mxu0 0.0
  %1492 = vmatprep.mubr.f32.mxu0 0.0
  %1493 = vmatmul.mubr.f32.gmra.mxu0 %v1426
  %v1494 = vpop.f32.mrf.mxu0
  %v1495 = vadd.f32 %v1424, %v1494
  %v1496 = vpop.f32.mrf.mxu0
  %1497 = vdwg.mxu0
  %v1498 = vadd.f32 %v1384, %v1495
  %v1499 = vxor.u32 %v1498, 2147483648
  %v1500 = vmul.f32 %v1499, 1.442695
  %v1501 = vpow.pop %v1500
  %v1502 = vadd.f32 %v1501, 1.0
  %v1503 = vrcp.pop %v1502
  %v1504 = vmul.f32 1.0, %v1503
  %1506 = vrot.lane.b32.xlu0 %v1495, 96
  %v1507 = vpop.permute.xlu0 %1506
  %v1509 = vmul.f32 %v1504, %v1507
  %1511 = vrot.lane.b32.xlu0 %v1509, 32
  %v1512 = vpop.permute.xlu0 %1511
  %v1514 = vadd.f32 %v1384, %v1512
  %v1515 = vtanh.pop %v1514
  %v1516 = vsub.f32 1.0, %v1504
  %1518 = vrot.lane.b32.xlu0 %v1515, 112
  %v1519 = vpop.permute.xlu0 %1518
  %v1521 = vmul.f32 %v1516, %v1519
  %v1522 = vmul.f32 %v1504, 0.0
  %v1523 = vadd.f32 %v1521, %v1522
  %1525 = vrot.lane.b32.xlu0 %v1523, 112
  %v1526 = vpop.permute.xlu0 %1525
  %v1527 = vsel %vm173, %v1526, 0
  %1529 = vmatprep.subr.mxu0 0.0
  %1530 = vmatpush1.msra.mxu0 0.0
  %1531 = vmatprep.subr.mxu0 0.0
  %1532 = vmatpush1.msra.mxu0 0.0
  %1533 = vmatprep.subr.mxu0 0.0
  %1534 = vmatpush1.msra.mxu0 0.0
  %1535 = vmatprep.subr.mxu0 0.0
  %1536 = vmatpush1.msra.mxu0 0.0
  %1537 = vmatprep.subr.mxu0 0.0
  %1538 = vmatpush1.msra.mxu0 0.0
  %1539 = vmatprep.subr.mxu0 0.0
  %1540 = vmatpush1.msra.mxu0 0.0
  %1541 = vmatprep.subr.mxu0 0.0
  %1542 = vmatpush1.msra.mxu0 0.0
  %1543 = vmatprep.subr.mxu0 0.0
  %1544 = vmatpush1.msra.mxu0 0.0
  %1545 = vmatprep.subr.mxu0 0.0
  %1546 = vmatpush1.msra.mxu0 0.0
  %1547 = vmatprep.subr.mxu0 0.0
  %1548 = vmatpush1.msra.mxu0 0.0
  %1549 = vmatprep.subr.mxu0 0.0
  %1550 = vmatpush1.msra.mxu0 0.0
  %1551 = vmatprep.subr.mxu0 0.0
  %1552 = vmatpush1.msra.mxu0 0.0
  %1553 = vmatprep.subr.mxu0 0.0
  %1554 = vmatpush1.msra.mxu0 0.0
  %1555 = vmatprep.subr.mxu0 0.0
  %1556 = vmatpush1.msra.mxu0 0.0
  %1557 = vmatprep.subr.mxu0 0.0
  %1558 = vmatpush1.msra.mxu0 %v1423
  %1559 = vmatprep.subr.mxu0 0.0
  %1560 = vmatpush1.msra.mxu0 %v1422
  %1561 = vmatprep.subr.mxu0 0.0
  %1562 = vmatpush2.msra.mxu0 0.0
  %1563 = vmatprep.subr.mxu0 0.0
  %1564 = vmatpush2.msra.mxu0 0.0
  %1565 = vmatprep.subr.mxu0 0.0
  %1566 = vmatpush2.msra.mxu0 0.0
  %1567 = vmatprep.subr.mxu0 0.0
  %1568 = vmatpush2.msra.mxu0 0.0
  %1569 = vmatprep.subr.mxu0 0.0
  %1570 = vmatpush2.msra.mxu0 0.0
  %1571 = vmatprep.subr.mxu0 0.0
  %1572 = vmatpush2.msra.mxu0 0.0
  %1573 = vmatprep.subr.mxu0 0.0
  %1574 = vmatpush2.msra.mxu0 0.0
  %1575 = vmatprep.subr.mxu0 0.0
  %1576 = vmatpush2.msra.mxu0 0.0
  %1577 = vmatprep.subr.mxu0 0.0
  %1578 = vmatpush2.msra.mxu0 0.0
  %1579 = vmatprep.subr.mxu0 0.0
  %1580 = vmatpush2.msra.mxu0 0.0
  %1581 = vmatprep.subr.mxu0 0.0
  %1582 = vmatpush2.msra.mxu0 0.0
  %1583 = vmatprep.subr.mxu0 0.0
  %1584 = vmatpush2.msra.mxu0 0.0
  %1585 = vmatprep.subr.mxu0 0.0
  %1586 = vmatpush2.msra.mxu0 0.0
  %1587 = vmatprep.subr.mxu0 0.0
  %1588 = vmatpush2.msra.mxu0 0.0
  %1589 = vmatprep.subr.mxu0 0.0
  %1590 = vmatpush2.msra.mxu0 0.0
  %1591 = vmatprep.subr.mxu0 0.0
  %1592 = vmatpush2.msra.mxu0 0.0
  %1593 = vmatprep.mubr.f32.mxu0 0.0
  %1594 = vmatmul.mubr.f32.gmra.mxu0 %v1527
  %v1595 = vpop.f32.mrf.mxu0
  %v1596 = vadd.f32 %v1424, %v1595
  %v1597 = vpop.f32.mrf.mxu0
  %1598 = vdwg.mxu0
  %v1599 = vadd.f32 %v1389, %v1596
  %v1600 = vxor.u32 %v1599, 2147483648
  %v1601 = vmul.f32 %v1600, 1.442695
  %v1602 = vpow.pop %v1601
  %v1603 = vadd.f32 %v1602, 1.0
  %v1604 = vrcp.pop %v1603
  %v1605 = vmul.f32 1.0, %v1604
  %1607 = vrot.lane.b32.xlu0 %v1596, 96
  %v1608 = vpop.permute.xlu0 %1607
  %v1610 = vmul.f32 %v1605, %v1608
  %1612 = vrot.lane.b32.xlu0 %v1610, 32
  %v1613 = vpop.permute.xlu0 %1612
  %v1615 = vadd.f32 %v1389, %v1613
  %v1616 = vtanh.pop %v1615
  %v1617 = vsub.f32 1.0, %v1605
  %1619 = vrot.lane.b32.xlu0 %v1616, 112
  %v1620 = vpop.permute.xlu0 %1619
  %v1622 = vmul.f32 %v1617, %v1620
  %v1623 = vmul.f32 %v1605, %v1523
  %v1624 = vadd.f32 %v1622, %v1623
  %1626 = vrot.lane.b32.xlu0 %v1624, 112
  %v1627 = vpop.permute.xlu0 %1626
  %v1628 = vsel %vm173, %v1627, 0
  %1630 = vmatprep.subr.mxu0 0.0
  %1631 = vmatpush1.msra.mxu0 0.0
  %1632 = vmatprep.subr.mxu0 0.0
  %1633 = vmatpush1.msra.mxu0 0.0
  %1634 = vmatprep.subr.mxu0 0.0
  %1635 = vmatpush1.msra.mxu0 0.0
  %1636 = vmatprep.subr.mxu0 0.0
  %1637 = vmatpush1.msra.mxu0 0.0
  %1638 = vmatprep.subr.mxu0 0.0
  %1639 = vmatpush1.msra.mxu0 0.0
  %1640 = vmatprep.subr.mxu0 0.0
  %1641 = vmatpush1.msra.mxu0 0.0
  %1642 = vmatprep.subr.mxu0 0.0
  %1643 = vmatpush1.msra.mxu0 0.0
  %1644 = vmatprep.subr.mxu0 0.0
  %1645 = vmatpush1.msra.mxu0 0.0
  %1646 = vmatprep.subr.mxu0 0.0
  %1647 = vmatpush1.msra.mxu0 0.0
  %1648 = vmatprep.subr.mxu0 0.0
  %1649 = vmatpush1.msra.mxu0 0.0
  %1650 = vmatprep.subr.mxu0 0.0
  %1651 = vmatpush1.msra.mxu0 0.0
  %1652 = vmatprep.subr.mxu0 0.0
  %1653 = vmatpush1.msra.mxu0 0.0
  %1654 = vmatprep.subr.mxu0 0.0
  %1655 = vmatpush1.msra.mxu0 0.0
  %1656 = vmatprep.subr.mxu0 0.0
  %1657 = vmatpush1.msra.mxu0 0.0
  %1658 = vmatprep.subr.mxu0 0.0
  %1659 = vmatpush1.msra.mxu0 %v1423
  %1660 = vmatprep.subr.mxu0 0.0
  %1661 = vmatpush1.msra.mxu0 %v1422
  %1662 = vmatprep.subr.mxu0 0.0
  %1663 = vmatpush2.msra.mxu0 0.0
  %1664 = vmatprep.subr.mxu0 0.0
  %1665 = vmatpush2.msra.mxu0 0.0
  %1666 = vmatprep.subr.mxu0 0.0
  %1667 = vmatpush2.msra.mxu0 0.0
  %1668 = vmatprep.subr.mxu0 0.0
  %1669 = vmatpush2.msra.mxu0 0.0
  %1670 = vmatprep.subr.mxu0 0.0
  %1671 = vmatpush2.msra.mxu0 0.0
  %1672 = vmatprep.subr.mxu0 0.0
  %1673 = vmatpush2.msra.mxu0 0.0
  %1674 = vmatprep.subr.mxu0 0.0
  %1675 = vmatpush2.msra.mxu0 0.0
  %1676 = vmatprep.subr.mxu0 0.0
  %1677 = vmatpush2.msra.mxu0 0.0
  %1678 = vmatprep.subr.mxu0 0.0
  %1679 = vmatpush2.msra.mxu0 0.0
  %1680 = vmatprep.subr.mxu0 0.0
  %1681 = vmatpush2.msra.mxu0 0.0
  %1682 = vmatprep.subr.mxu0 0.0
  %1683 = vmatpush2.msra.mxu0 0.0
  %1684 = vmatprep.subr.mxu0 0.0
  %1685 = vmatpush2.msra.mxu0 0.0
  %1686 = vmatprep.subr.mxu0 0.0
  %1687 = vmatpush2.msra.mxu0 0.0
  %1688 = vmatprep.subr.mxu0 0.0
  %1689 = vmatpush2.msra.mxu0 0.0
  %1690 = vmatprep.subr.mxu0 0.0
  %1691 = vmatpush2.msra.mxu0 0.0
  %1692 = vmatprep.subr.mxu0 0.0
  %1693 = vmatpush2.msra.mxu0 0.0
  %1694 = vmatprep.mubr.f32.mxu0 0.0
  %1695 = vmatmul.mubr.f32.gmra.mxu0 %v1628
  %v1696 = vpop.f32.mrf.mxu0
  %v1697 = vadd.f32 %v1424, %v1696
  %v1698 = vpop.f32.mrf.mxu0
  %1699 = vdwg.mxu0
  %v1700 = vadd.f32 %v1394, %v1697
  %v1701 = vxor.u32 %v1700, 2147483648
  %v1702 = vmul.f32 %v1701, 1.442695
  %v1703 = vpow.pop %v1702
  %v1704 = vadd.f32 %v1703, 1.0
  %v1705 = vrcp.pop %v1704
  %v1706 = vmul.f32 1.0, %v1705
  %1708 = vrot.lane.b32.xlu0 %v1697, 96
  %v1709 = vpop.permute.xlu0 %1708
  %v1711 = vmul.f32 %v1706, %v1709
  %1713 = vrot.lane.b32.xlu0 %v1711, 32
  %v1714 = vpop.permute.xlu0 %1713
  %v1716 = vadd.f32 %v1394, %v1714
  %v1717 = vtanh.pop %v1716
  %v1718 = vsub.f32 1.0, %v1706
  %1720 = vrot.lane.b32.xlu0 %v1717, 112
  %v1721 = vpop.permute.xlu0 %1720
  %v1723 = vmul.f32 %v1718, %v1721
  %v1724 = vmul.f32 %v1706, %v1624
  %v1725 = vadd.f32 %v1723, %v1724
  %1727 = vrot.lane.b32.xlu0 %v1725, 112
  %v1728 = vpop.permute.xlu0 %1727
  %v1729 = vsel %vm173, %v1728, 0
  %1731 = vmatprep.subr.mxu0 0.0
  %1732 = vmatpush1.msra.mxu0 0.0
  %1733 = vmatprep.subr.mxu0 0.0
  %1734 = vmatpush1.msra.mxu0 0.0
  %1735 = vmatprep.subr.mxu0 0.0
  %1736 = vmatpush1.msra.mxu0 0.0
  %1737 = vmatprep.subr.mxu0 0.0
  %1738 = vmatpush1.msra.mxu0 0.0
  %1739 = vmatprep.subr.mxu0 0.0
  %1740 = vmatpush1.msra.mxu0 0.0
  %1741 = vmatprep.subr.mxu0 0.0
  %1742 = vmatpush1.msra.mxu0 0.0
  %1743 = vmatprep.subr.mxu0 0.0
  %1744 = vmatpush1.msra.mxu0 0.0
  %1745 = vmatprep.subr.mxu0 0.0
  %1746 = vmatpush1.msra.mxu0 0.0
  %1747 = vmatprep.subr.mxu0 0.0
  %1748 = vmatpush1.msra.mxu0 0.0
  %1749 = vmatprep.subr.mxu0 0.0
  %1750 = vmatpush1.msra.mxu0 0.0
  %1751 = vmatprep.subr.mxu0 0.0
  %1752 = vmatpush1.msra.mxu0 0.0
  %1753 = vmatprep.subr.mxu0 0.0
  %1754 = vmatpush1.msra.mxu0 0.0
  %1755 = vmatprep.subr.mxu0 0.0
  %1756 = vmatpush1.msra.mxu0 0.0
  %1757 = vmatprep.subr.mxu0 0.0
  %1758 = vmatpush1.msra.mxu0 0.0
  %1759 = vmatprep.subr.mxu0 0.0
  %1760 = vmatpush1.msra.mxu0 %v1423
  %1761 = vmatprep.subr.mxu0 0.0
  %1762 = vmatpush1.msra.mxu0 %v1422
  %1763 = vmatprep.subr.mxu0 0.0
  %1764 = vmatpush2.msra.mxu0 0.0
  %1765 = vmatprep.subr.mxu0 0.0
  %1766 = vmatpush2.msra.mxu0 0.0
  %1767 = vmatprep.subr.mxu0 0.0
  %1768 = vmatpush2.msra.mxu0 0.0
  %1769 = vmatprep.subr.mxu0 0.0
  %1770 = vmatpush2.msra.mxu0 0.0
  %1771 = vmatprep.subr.mxu0 0.0
  %1772 = vmatpush2.msra.mxu0 0.0
  %1773 = vmatprep.subr.mxu0 0.0
  %1774 = vmatpush2.msra.mxu0 0.0
  %1775 = vmatprep.subr.mxu0 0.0
  %1776 = vmatpush2.msra.mxu0 0.0
  %1777 = vmatprep.subr.mxu0 0.0
  %1778 = vmatpush2.msra.mxu0 0.0
  %1779 = vmatprep.subr.mxu0 0.0
  %1780 = vmatpush2.msra.mxu0 0.0
  %1781 = vmatprep.subr.mxu0 0.0
  %1782 = vmatpush2.msra.mxu0 0.0
  %1783 = vmatprep.subr.mxu0 0.0
  %1784 = vmatpush2.msra.mxu0 0.0
  %1785 = vmatprep.subr.mxu0 0.0
  %1786 = vmatpush2.msra.mxu0 0.0
  %1787 = vmatprep.subr.mxu0 0.0
  %1788 = vmatpush2.msra.mxu0 0.0
  %1789 = vmatprep.subr.mxu0 0.0
  %1790 = vmatpush2.msra.mxu0 0.0
  %1791 = vmatprep.subr.mxu0 0.0
  %1792 = vmatpush2.msra.mxu0 0.0
  %1793 = vmatprep.subr.mxu0 0.0
  %1794 = vmatpush2.msra.mxu0 0.0
  %1795 = vmatprep.mubr.f32.mxu0 0.0
  %1796 = vmatmul.mubr.f32.gmra.mxu0 %v1729
  %v1797 = vpop.f32.mrf.mxu0
  %v1798 = vadd.f32 %v1424, %v1797
  %v1799 = vpop.f32.mrf.mxu0
  %1800 = vdwg.mxu0
  %v1801 = vadd.f32 %v1399, %v1798
  %v1802 = vxor.u32 %v1801, 2147483648
  %v1803 = vmul.f32 %v1802, 1.442695
  %v1804 = vpow.pop %v1803
  %v1805 = vadd.f32 %v1804, 1.0
  %v1806 = vrcp.pop %v1805
  %v1807 = vmul.f32 1.0, %v1806
  %1809 = vrot.lane.b32.xlu0 %v1798, 96
  %v1810 = vpop.permute.xlu0 %1809
  %v1812 = vmul.f32 %v1807, %v1810
  %1814 = vrot.lane.b32.xlu0 %v1812, 32
  %v1815 = vpop.permute.xlu0 %1814
  %v1817 = vadd.f32 %v1399, %v1815
  %v1818 = vtanh.pop %v1817
  %v1819 = vsub.f32 1.0, %v1807
  %1821 = vrot.lane.b32.xlu0 %v1818, 112
  %v1822 = vpop.permute.xlu0 %1821
  %v1824 = vmul.f32 %v1819, %v1822
  %v1825 = vmul.f32 %v1807, %v1725
  %v1826 = vadd.f32 %v1824, %v1825
  %1828 = vrot.lane.b32.xlu0 %v1826, 112
  %v1829 = vpop.permute.xlu0 %1828
  %v1830 = vsel %vm173, %v1829, 0
  %1832 = vmatprep.subr.mxu0 0.0
  %1833 = vmatpush1.msra.mxu0 0.0
  %1834 = vmatprep.subr.mxu0 0.0
  %1835 = vmatpush1.msra.mxu0 0.0
  %1836 = vmatprep.subr.mxu0 0.0
  %1837 = vmatpush1.msra.mxu0 0.0
  %1838 = vmatprep.subr.mxu0 0.0
  %1839 = vmatpush1.msra.mxu0 0.0
  %1840 = vmatprep.subr.mxu0 0.0
  %1841 = vmatpush1.msra.mxu0 0.0
  %1842 = vmatprep.subr.mxu0 0.0
  %1843 = vmatpush1.msra.mxu0 0.0
  %1844 = vmatprep.subr.mxu0 0.0
  %1845 = vmatpush1.msra.mxu0 0.0
  %1846 = vmatprep.subr.mxu0 0.0
  %1847 = vmatpush1.msra.mxu0 0.0
  %1848 = vmatprep.subr.mxu0 0.0
  %1849 = vmatpush1.msra.mxu0 0.0
  %1850 = vmatprep.subr.mxu0 0.0
  %1851 = vmatpush1.msra.mxu0 0.0
  %1852 = vmatprep.subr.mxu0 0.0
  %1853 = vmatpush1.msra.mxu0 0.0
  %1854 = vmatprep.subr.mxu0 0.0
  %1855 = vmatpush1.msra.mxu0 0.0
  %1856 = vmatprep.subr.mxu0 0.0
  %1857 = vmatpush1.msra.mxu0 0.0
  %1858 = vmatprep.subr.mxu0 0.0
  %1859 = vmatpush1.msra.mxu0 0.0
  %1860 = vmatprep.subr.mxu0 0.0
  %1861 = vmatpush1.msra.mxu0 %v1423
  %1862 = vmatprep.subr.mxu0 0.0
  %1863 = vmatpush1.msra.mxu0 %v1422
  %1864 = vmatprep.subr.mxu0 0.0
  %1865 = vmatpush2.msra.mxu0 0.0
  %1866 = vmatprep.subr.mxu0 0.0
  %1867 = vmatpush2.msra.mxu0 0.0
  %1868 = vmatprep.subr.mxu0 0.0
  %1869 = vmatpush2.msra.mxu0 0.0
  %1870 = vmatprep.subr.mxu0 0.0
  %1871 = vmatpush2.msra.mxu0 0.0
  %1872 = vmatprep.subr.mxu0 0.0
  %1873 = vmatpush2.msra.mxu0 0.0
  %1874 = vmatprep.subr.mxu0 0.0
  %1875 = vmatpush2.msra.mxu0 0.0
  %1876 = vmatprep.subr.mxu0 0.0
  %1877 = vmatpush2.msra.mxu0 0.0
  %1878 = vmatprep.subr.mxu0 0.0
  %1879 = vmatpush2.msra.mxu0 0.0
  %1880 = vmatprep.subr.mxu0 0.0
  %1881 = vmatpush2.msra.mxu0 0.0
  %1882 = vmatprep.subr.mxu0 0.0
  %1883 = vmatpush2.msra.mxu0 0.0
  %1884 = vmatprep.subr.mxu0 0.0
  %1885 = vmatpush2.msra.mxu0 0.0
  %1886 = vmatprep.subr.mxu0 0.0
  %1887 = vmatpush2.msra.mxu0 0.0
  %1888 = vmatprep.subr.mxu0 0.0
  %1889 = vmatpush2.msra.mxu0 0.0
  %1890 = vmatprep.subr.mxu0 0.0
  %1891 = vmatpush2.msra.mxu0 0.0
  %1892 = vmatprep.subr.mxu0 0.0
  %1893 = vmatpush2.msra.mxu0 0.0
  %1894 = vmatprep.subr.mxu0 0.0
  %1895 = vmatpush2.msra.mxu0 0.0
  %1896 = vmatprep.mubr.f32.mxu0 0.0
  %1897 = vmatmul.mubr.f32.gmra.mxu0 %v1830
  %v1898 = vpop.f32.mrf.mxu0
  %v1899 = vadd.f32 %v1424, %v1898
  %v1900 = vpop.f32.mrf.mxu0
  %1901 = vdwg.mxu0
  %v1902 = vadd.f32 %v1404, %v1899
  %v1903 = vxor.u32 %v1902, 2147483648
  %v1904 = vmul.f32 %v1903, 1.442695
  %v1905 = vpow.pop %v1904
  %v1906 = vadd.f32 %v1905, 1.0
  %v1907 = vrcp.pop %v1906
  %v1908 = vmul.f32 1.0, %v1907
  %1910 = vrot.lane.b32.xlu0 %v1899, 96
  %v1911 = vpop.permute.xlu0 %1910
  %v1913 = vmul.f32 %v1908, %v1911
  %1915 = vrot.lane.b32.xlu0 %v1913, 32
  %v1916 = vpop.permute.xlu0 %1915
  %v1918 = vadd.f32 %v1404, %v1916
  %v1919 = vtanh.pop %v1918
  %v1920 = vsub.f32 1.0, %v1908
  %1922 = vrot.lane.b32.xlu0 %v1919, 112
  %v1923 = vpop.permute.xlu0 %1922
  %v1925 = vmul.f32 %v1920, %v1923
  %v1926 = vmul.f32 %v1908, %v1826
  %v1927 = vadd.f32 %v1925, %v1926
  %1929 = vrot.lane.b32.xlu0 %v1927, 112
  %v1930 = vpop.permute.xlu0 %1929
  %v1931 = vsel %vm173, %v1930, 0
  %1933 = vmatprep.subr.mxu0 0.0
  %1934 = vmatpush1.msra.mxu0 0.0
  %1935 = vmatprep.subr.mxu0 0.0
  %1936 = vmatpush1.msra.mxu0 0.0
  %1937 = vmatprep.subr.mxu0 0.0
  %1938 = vmatpush1.msra.mxu0 0.0
  %1939 = vmatprep.subr.mxu0 0.0
  %1940 = vmatpush1.msra.mxu0 0.0
  %1941 = vmatprep.subr.mxu0 0.0
  %1942 = vmatpush1.msra.mxu0 0.0
  %1943 = vmatprep.subr.mxu0 0.0
  %1944 = vmatpush1.msra.mxu0 0.0
  %1945 = vmatprep.subr.mxu0 0.0
  %1946 = vmatpush1.msra.mxu0 0.0
  %1947 = vmatprep.subr.mxu0 0.0
  %1948 = vmatpush1.msra.mxu0 0.0
  %1949 = vmatprep.subr.mxu0 0.0
  %1950 = vmatpush1.msra.mxu0 0.0
  %1951 = vmatprep.subr.mxu0 0.0
  %1952 = vmatpush1.msra.mxu0 0.0
  %1953 = vmatprep.subr.mxu0 0.0
  %1954 = vmatpush1.msra.mxu0 0.0
  %1955 = vmatprep.subr.mxu0 0.0
  %1956 = vmatpush1.msra.mxu0 0.0
  %1957 = vmatprep.subr.mxu0 0.0
  %1958 = vmatpush1.msra.mxu0 0.0
  %1959 = vmatprep.subr.mxu0 0.0
  %1960 = vmatpush1.msra.mxu0 0.0
  %1961 = vmatprep.subr.mxu0 0.0
  %1962 = vmatpush1.msra.mxu0 %v1423
  %1963 = vmatprep.subr.mxu0 0.0
  %1964 = vmatpush1.msra.mxu0 %v1422
  %1965 = vmatprep.subr.mxu0 0.0
  %1966 = vmatpush2.msra.mxu0 0.0
  %1967 = vmatprep.subr.mxu0 0.0
  %1968 = vmatpush2.msra.mxu0 0.0
  %1969 = vmatprep.subr.mxu0 0.0
  %1970 = vmatpush2.msra.mxu0 0.0
  %1971 = vmatprep.subr.mxu0 0.0
  %1972 = vmatpush2.msra.mxu0 0.0
  %1973 = vmatprep.subr.mxu0 0.0
  %1974 = vmatpush2.msra.mxu0 0.0
  %1975 = vmatprep.subr.mxu0 0.0
  %1976 = vmatpush2.msra.mxu0 0.0
  %1977 = vmatprep.subr.mxu0 0.0
  %1978 = vmatpush2.msra.mxu0 0.0
  %1979 = vmatprep.subr.mxu0 0.0
  %1980 = vmatpush2.msra.mxu0 0.0
  %1981 = vmatprep.subr.mxu0 0.0
  %1982 = vmatpush2.msra.mxu0 0.0
  %1983 = vmatprep.subr.mxu0 0.0
  %1984 = vmatpush2.msra.mxu0 0.0
  %1985 = vmatprep.subr.mxu0 0.0
  %1986 = vmatpush2.msra.mxu0 0.0
  %1987 = vmatprep.subr.mxu0 0.0
  %1988 = vmatpush2.msra.mxu0 0.0
  %1989 = vmatprep.subr.mxu0 0.0
  %1990 = vmatpush2.msra.mxu0 0.0
  %1991 = vmatprep.subr.mxu0 0.0
  %1992 = vmatpush2.msra.mxu0 0.0
  %1993 = vmatprep.subr.mxu0 0.0
  %1994 = vmatpush2.msra.mxu0 0.0
  %1995 = vmatprep.subr.mxu0 0.0
  %1996 = vmatpush2.msra.mxu0 0.0
  %1997 = vmatprep.mubr.f32.mxu0 0.0
  %1998 = vmatmul.mubr.f32.gmra.mxu0 %v1931
  %v1999 = vpop.f32.mrf.mxu0
  %v2000 = vadd.f32 %v1424, %v1999
  %v2001 = vpop.f32.mrf.mxu0
  %2002 = vdwg.mxu0
  %v2003 = vadd.f32 %v1409, %v2000
  %v2004 = vxor.u32 %v2003, 2147483648
  %v2005 = vmul.f32 %v2004, 1.442695
  %v2006 = vpow.pop %v2005
  %v2007 = vadd.f32 %v2006, 1.0
  %v2008 = vrcp.pop %v2007
  %v2009 = vmul.f32 1.0, %v2008
  %2011 = vrot.lane.b32.xlu0 %v2000, 96
  %v2012 = vpop.permute.xlu0 %2011
  %v2014 = vmul.f32 %v2009, %v2012
  %2016 = vrot.lane.b32.xlu0 %v2014, 32
  %v2017 = vpop.permute.xlu0 %2016
  %v2019 = vadd.f32 %v1409, %v2017
  %v2020 = vtanh.pop %v2019
  %v2021 = vsub.f32 1.0, %v2009
  %2023 = vrot.lane.b32.xlu0 %v2020, 112
  %v2024 = vpop.permute.xlu0 %2023
  %v2026 = vmul.f32 %v2021, %v2024
  %v2027 = vmul.f32 %v2009, %v1927
  %v2028 = vadd.f32 %v2026, %v2027
  %2030 = vrot.lane.b32.xlu0 %v2028, 112
  %v2031 = vpop.permute.xlu0 %2030
  %v2032 = vsel %vm173, %v2031, 0
  %2034 = vmatprep.subr.mxu0 0.0
  %2035 = vmatpush1.msra.mxu0 0.0
  %2036 = vmatprep.subr.mxu0 0.0
  %2037 = vmatpush1.msra.mxu0 0.0
  %2038 = vmatprep.subr.mxu0 0.0
  %2039 = vmatpush1.msra.mxu0 0.0
  %2040 = vmatprep.subr.mxu0 0.0
  %2041 = vmatpush1.msra.mxu0 0.0
  %2042 = vmatprep.subr.mxu0 0.0
  %2043 = vmatpush1.msra.mxu0 0.0
  %2044 = vmatprep.subr.mxu0 0.0
  %2045 = vmatpush1.msra.mxu0 0.0
  %2046 = vmatprep.subr.mxu0 0.0
  %2047 = vmatpush1.msra.mxu0 0.0
  %2048 = vmatprep.subr.mxu0 0.0
  %2049 = vmatpush1.msra.mxu0 0.0
  %2050 = vmatprep.subr.mxu0 0.0
  %2051 = vmatpush1.msra.mxu0 0.0
  %2052 = vmatprep.subr.mxu0 0.0
  %2053 = vmatpush1.msra.mxu0 0.0
  %2054 = vmatprep.subr.mxu0 0.0
  %2055 = vmatpush1.msra.mxu0 0.0
  %2056 = vmatprep.subr.mxu0 0.0
  %2057 = vmatpush1.msra.mxu0 0.0
  %2058 = vmatprep.subr.mxu0 0.0
  %2059 = vmatpush1.msra.mxu0 0.0
  %2060 = vmatprep.subr.mxu0 0.0
  %2061 = vmatpush1.msra.mxu0 0.0
  %2062 = vmatprep.subr.mxu0 0.0
  %2063 = vmatpush1.msra.mxu0 %v1423
  %2064 = vmatprep.subr.mxu0 0.0
  %2065 = vmatpush1.msra.mxu0 %v1422
  %2066 = vmatprep.subr.mxu0 0.0
  %2067 = vmatpush2.msra.mxu0 0.0
  %2068 = vmatprep.subr.mxu0 0.0
  %2069 = vmatpush2.msra.mxu0 0.0
  %2070 = vmatprep.subr.mxu0 0.0
  %2071 = vmatpush2.msra.mxu0 0.0
  %2072 = vmatprep.subr.mxu0 0.0
  %2073 = vmatpush2.msra.mxu0 0.0
  %2074 = vmatprep.subr.mxu0 0.0
  %2075 = vmatpush2.msra.mxu0 0.0
  %2076 = vmatprep.subr.mxu0 0.0
  %2077 = vmatpush2.msra.mxu0 0.0
  %2078 = vmatprep.subr.mxu0 0.0
  %2079 = vmatpush2.msra.mxu0 0.0
  %2080 = vmatprep.subr.mxu0 0.0
  %2081 = vmatpush2.msra.mxu0 0.0
  %2082 = vmatprep.subr.mxu0 0.0
  %2083 = vmatpush2.msra.mxu0 0.0
  %2084 = vmatprep.subr.mxu0 0.0
  %2085 = vmatpush2.msra.mxu0 0.0
  %2086 = vmatprep.subr.mxu0 0.0
  %2087 = vmatpush2.msra.mxu0 0.0
  %2088 = vmatprep.subr.mxu0 0.0
  %2089 = vmatpush2.msra.mxu0 0.0
  %2090 = vmatprep.subr.mxu0 0.0
  %2091 = vmatpush2.msra.mxu0 0.0
  %2092 = vmatprep.subr.mxu0 0.0
  %2093 = vmatpush2.msra.mxu0 0.0
  %2094 = vmatprep.subr.mxu0 0.0
  %2095 = vmatpush2.msra.mxu0 0.0
  %2096 = vmatprep.subr.mxu0 0.0
  %2097 = vmatpush2.msra.mxu0 0.0
  %2098 = vmatprep.mubr.f32.mxu0 0.0
  %2099 = vmatmul.mubr.f32.gmra.mxu0 %v2032
  %v2100 = vpop.f32.mrf.mxu0
  %v2101 = vadd.f32 %v1424, %v2100
  %v2102 = vpop.f32.mrf.mxu0
  %2103 = vdwg.mxu0
  %v2104 = vadd.f32 %v1414, %v2101
  %v2105 = vxor.u32 %v2104, 2147483648
  %v2106 = vmul.f32 %v2105, 1.442695
  %v2107 = vpow.pop %v2106
  %v2108 = vadd.f32 %v2107, 1.0
  %v2109 = vrcp.pop %v2108
  %v2110 = vmul.f32 1.0, %v2109
  %2112 = vrot.lane.b32.xlu0 %v2101, 96
  %v2113 = vpop.permute.xlu0 %2112
  %v2115 = vmul.f32 %v2110, %v2113
  %2117 = vrot.lane.b32.xlu0 %v2115, 32
  %v2118 = vpop.permute.xlu0 %2117
  %v2120 = vadd.f32 %v1414, %v2118
  %v2121 = vtanh.pop %v2120
  %v2122 = vsub.f32 1.0, %v2110
  %2124 = vrot.lane.b32.xlu0 %v2121, 112
  %v2125 = vpop.permute.xlu0 %2124
  %v2127 = vmul.f32 %v2122, %v2125
  %v2128 = vmul.f32 %v2110, %v2028
  %v2129 = vadd.f32 %v2127, %v2128
  %2131 = vrot.lane.b32.xlu0 %v2129, 112
  %v2132 = vpop.permute.xlu0 %2131
  %v2133 = vsel %vm173, %v2132, 0
  %2135 = vmatprep.subr.mxu0 0.0
  %2136 = vmatpush1.msra.mxu0 0.0
  %2137 = vmatprep.subr.mxu0 0.0
  %2138 = vmatpush1.msra.mxu0 0.0
  %2139 = vmatprep.subr.mxu0 0.0
  %2140 = vmatpush1.msra.mxu0 0.0
  %2141 = vmatprep.subr.mxu0 0.0
  %2142 = vmatpush1.msra.mxu0 0.0
  %2143 = vmatprep.subr.mxu0 0.0
  %2144 = vmatpush1.msra.mxu0 0.0
  %2145 = vmatprep.subr.mxu0 0.0
  %2146 = vmatpush1.msra.mxu0 0.0
  %2147 = vmatprep.subr.mxu0 0.0
  %2148 = vmatpush1.msra.mxu0 0.0
  %2149 = vmatprep.subr.mxu0 0.0
  %2150 = vmatpush1.msra.mxu0 0.0
  %2151 = vmatprep.subr.mxu0 0.0
  %2152 = vmatpush1.msra.mxu0 0.0
  %2153 = vmatprep.subr.mxu0 0.0
  %2154 = vmatpush1.msra.mxu0 0.0
  %2155 = vmatprep.subr.mxu0 0.0
  %2156 = vmatpush1.msra.mxu0 0.0
  %2157 = vmatprep.subr.mxu0 0.0
  %2158 = vmatpush1.msra.mxu0 0.0
  %2159 = vmatprep.subr.mxu0 0.0
  %2160 = vmatpush1.msra.mxu0 0.0
  %2161 = vmatprep.subr.mxu0 0.0
  %2162 = vmatpush1.msra.mxu0 0.0
  %2163 = vmatprep.subr.mxu0 0.0
  %2164 = vmatpush1.msra.mxu0 %v1423
  %2165 = vmatprep.subr.mxu0 0.0
  %2166 = vmatpush1.msra.mxu0 %v1422
  %2167 = vmatprep.subr.mxu0 0.0
  %2168 = vmatpush2.msra.mxu0 0.0
  %2169 = vmatprep.subr.mxu0 0.0
  %2170 = vmatpush2.msra.mxu0 0.0
  %2171 = vmatprep.subr.mxu0 0.0
  %2172 = vmatpush2.msra.mxu0 0.0
  %2173 = vmatprep.subr.mxu0 0.0
  %2174 = vmatpush2.msra.mxu0 0.0
  %2175 = vmatprep.subr.mxu0 0.0
  %2176 = vmatpush2.msra.mxu0 0.0
  %2177 = vmatprep.subr.mxu0 0.0
  %2178 = vmatpush2.msra.mxu0 0.0
  %2179 = vmatprep.subr.mxu0 0.0
  %2180 = vmatpush2.msra.mxu0 0.0
  %2181 = vmatprep.subr.mxu0 0.0
  %2182 = vmatpush2.msra.mxu0 0.0
  %2183 = vmatprep.subr.mxu0 0.0
  %2184 = vmatpush2.msra.mxu0 0.0
  %2185 = vmatprep.subr.mxu0 0.0
  %2186 = vmatpush2.msra.mxu0 0.0
  %2187 = vmatprep.subr.mxu0 0.0
  %2188 = vmatpush2.msra.mxu0 0.0
  %2189 = vmatprep.subr.mxu0 0.0
  %2190 = vmatpush2.msra.mxu0 0.0
  %2191 = vmatprep.subr.mxu0 0.0
  %2192 = vmatpush2.msra.mxu0 0.0
  %2193 = vmatprep.subr.mxu0 0.0
  %2194 = vmatpush2.msra.mxu0 0.0
  %2195 = vmatprep.subr.mxu0 0.0
  %2196 = vmatpush2.msra.mxu0 0.0
  %2197 = vmatprep.subr.mxu0 0.0
  %2198 = vmatpush2.msra.mxu0 0.0
  %2199 = vmatprep.mubr.f32.mxu0 0.0
  %2200 = vmatmul.mubr.f32.gmra.mxu0 %v2133
  %v2201 = vpop.f32.mrf.mxu0
  %v2202 = vadd.f32 %v1424, %v2201
  %v2203 = vpop.f32.mrf.mxu0
  %2204 = vdwg.mxu0
  %v2205 = vadd.f32 %v1419, %v2202
  %v2206 = vxor.u32 %v2205, 2147483648
  %v2207 = vmul.f32 %v2206, 1.442695
  %v2208 = vpow.pop %v2207
  %v2209 = vadd.f32 %v2208, 1.0
  %v2210 = vrcp.pop %v2209
  %v2211 = vmul.f32 1.0, %v2210
  %2213 = vrot.lane.b32.xlu0 %v2202, 96
  %v2214 = vpop.permute.xlu0 %2213
  %v2216 = vmul.f32 %v2211, %v2214
  %2218 = vrot.lane.b32.xlu0 %v2216, 32
  %v2219 = vpop.permute.xlu0 %2218
  %v2221 = vadd.f32 %v1419, %v2219
  %v2222 = vtanh.pop %v2221
  %v2223 = vsub.f32 1.0, %v2211
  %2225 = vrot.lane.b32.xlu0 %v2222, 112
  %v2226 = vpop.permute.xlu0 %2225
  %v2228 = vmul.f32 %v2223, %v2226
  %v2229 = vmul.f32 %v2211, %v2129
  %v2230 = vadd.f32 %v2228, %v2229
  %v2231 = vsel %vm173, %v312, %v1523
  %v2232 = vsel %vm173, %v314, %v1624
  %v2233 = vsel %vm173, %v316, %v1725
  %v2234 = vsel %vm173, %v318, %v1826
  %v2235 = vsel %vm173, %v320, %v1927
  %v2236 = vsel %vm173, %v322, %v2028
  %v2237 = vsel %vm173, %v324, %v2129
  %v2238 = vsel %vm173, %v326, %v2230
  %v2239 = vld [vmem:[%s1 + $0x180] sm:$0xff]
  %v2240 = vld [vmem:[%s1 + $0x190] sm:$0xff]
  %v2241 = vld [vmem:[%s1 + $0x1a0] sm:$0xff]
  %v2242 = vld [vmem:[%s1 + $0x1b0] sm:$0xff]
  %v2243 = vld [vmem:[%s1 + $0x1c0] ss:$0 sm:$0xff]
  %vm2244 = vcmask 261120
  %v2246 = vsel %vm2244, %v2231, 0
  %v2249 = vsel %vm2244, %v2232, 0
  %v2252 = vsel %vm2244, %v2233, 0
  %v2255 = vsel %vm2244, %v2234, 0
  %v2258 = vsel %vm2244, %v2235, 0
  %v2261 = vsel %vm2244, %v2236, 0
  %v2264 = vsel %vm2244, %v2237, 0
  %v2267 = vsel %vm2244, %v2238, 0
  %2269 = vmatprep.subr.mxu0 0.0
  %2270 = vmatpush1.msra.mxu0 0.0
  %2271 = vmatprep.subr.mxu0 0.0
  %2272 = vmatpush1.msra.mxu0 0.0
  %2273 = vmatprep.subr.mxu0 0.0
  %2274 = vmatpush1.msra.mxu0 0.0
  %2275 = vmatprep.subr.mxu0 0.0
  %2276 = vmatpush1.msra.mxu0 0.0
  %2277 = vmatprep.subr.mxu0 0.0
  %2278 = vmatpush1.msra.mxu0 0.0
  %2279 = vmatprep.subr.mxu0 0.0
  %2280 = vmatpush1.msra.mxu0 0.0
  %2281 = vmatprep.subr.mxu0 0.0
  %2282 = vmatpush1.msra.mxu0 0.0
  %2283 = vmatprep.subr.mxu0 0.0
  %2284 = vmatpush1.msra.mxu0 0.0
  %2285 = vmatprep.subr.mxu0 0.0
  %2286 = vmatpush1.msra.mxu0 0.0
  %2287 = vmatprep.subr.mxu0 0.0
  %2288 = vmatpush1.msra.mxu0 0.0
  %2289 = vmatprep.subr.mxu0 0.0
  %2290 = vmatpush1.msra.mxu0 0.0
  %2291 = vmatprep.subr.mxu0 0.0
  %2292 = vmatpush1.msra.mxu0 0.0
  %2293 = vmatprep.subr.mxu0 0.0
  %2294 = vmatpush1.msra.mxu0 %v2242
  %2295 = vmatprep.subr.mxu0 0.0
  %2296 = vmatpush1.msra.mxu0 %v2241
  %2297 = vmatprep.subr.mxu0 0.0
  %2298 = vmatpush1.msra.mxu0 %v2240
  %2299 = vmatprep.subr.mxu0 0.0
  %2300 = vmatpush1.msra.mxu0 %v2239
  %2301 = vmatprep.subr.mxu0 0.0
  %2302 = vmatpush2.msra.mxu0 0.0
  %2303 = vmatprep.subr.mxu0 0.0
  %2304 = vmatpush2.msra.mxu0 0.0
  %2305 = vmatprep.subr.mxu0 0.0
  %2306 = vmatpush2.msra.mxu0 0.0
  %2307 = vmatprep.subr.mxu0 0.0
  %2308 = vmatpush2.msra.mxu0 0.0
  %2309 = vmatprep.subr.mxu0 0.0
  %2310 = vmatpush2.msra.mxu0 0.0
  %2311 = vmatprep.subr.mxu0 0.0
  %2312 = vmatpush2.msra.mxu0 0.0
  %2313 = vmatprep.subr.mxu0 0.0
  %2314 = vmatpush2.msra.mxu0 0.0
  %2315 = vmatprep.subr.mxu0 0.0
  %2316 = vmatpush2.msra.mxu0 0.0
  %2317 = vmatprep.subr.mxu0 0.0
  %2318 = vmatpush2.msra.mxu0 0.0
  %2319 = vmatprep.subr.mxu0 0.0
  %2320 = vmatpush2.msra.mxu0 0.0
  %2321 = vmatprep.subr.mxu0 0.0
  %2322 = vmatpush2.msra.mxu0 0.0
  %2323 = vmatprep.subr.mxu0 0.0
  %2324 = vmatpush2.msra.mxu0 0.0
  %2325 = vmatprep.subr.mxu0 0.0
  %2326 = vmatpush2.msra.mxu0 0.0
  %2327 = vmatprep.subr.mxu0 0.0
  %2328 = vmatpush2.msra.mxu0 0.0
  %2329 = vmatprep.subr.mxu0 0.0
  %2330 = vmatpush2.msra.mxu0 0.0
  %2331 = vmatprep.subr.mxu0 0.0
  %2332 = vmatpush2.msra.mxu0 0.0
  %2333 = vmatprep.mubr.f32.mxu0 0.0
  %2334 = vmatmul.mubr.f32.gmra.mxu0 %v2246
  %v2335 = vpop.f32.mrf.mxu0
  %v2336 = vadd.f32 %v2243, %v2335
  %v2337 = vpop.f32.mrf.mxu0
  %2338 = vmatprep.mubr.f32.mxu0 0.0
  %2339 = vmatmul.mubr.f32.gmra.mxu0 %v2249
  %v2340 = vpop.f32.mrf.mxu0
  %v2341 = vadd.f32 %v2243, %v2340
  %v2342 = vpop.f32.mrf.mxu0
  %2343 = vmatprep.mubr.f32.mxu0 0.0
  %2344 = vmatmul.mubr.f32.gmra.mxu0 %v2252
  %v2345 = vpop.f32.mrf.mxu0
  %v2346 = vadd.f32 %v2243, %v2345
  %v2347 = vpop.f32.mrf.mxu0
  %2348 = vmatprep.mubr.f32.mxu0 0.0
  %2349 = vmatmul.mubr.f32.gmra.mxu0 %v2255
  %v2350 = vpop.f32.mrf.mxu0
  %v2351 = vadd.f32 %v2243, %v2350
  %v2352 = vpop.f32.mrf.mxu0
  %2353 = vmatprep.mubr.f32.mxu0 0.0
  %2354 = vmatmul.mubr.f32.gmra.mxu0 %v2258
  %v2355 = vpop.f32.mrf.mxu0
  %v2356 = vadd.f32 %v2243, %v2355
  %v2357 = vpop.f32.mrf.mxu0
  %2358 = vmatprep.mubr.f32.mxu0 0.0
  %2359 = vmatmul.mubr.f32.gmra.mxu0 %v2261
  %v2360 = vpop.f32.mrf.mxu0
  %v2361 = vadd.f32 %v2243, %v2360
  %v2362 = vpop.f32.mrf.mxu0
  %2363 = vmatprep.mubr.f32.mxu0 0.0
  %2364 = vmatmul.mubr.f32.gmra.mxu0 %v2264
  %v2365 = vpop.f32.mrf.mxu0
  %v2366 = vadd.f32 %v2243, %v2365
  %v2367 = vpop.f32.mrf.mxu0
  %2368 = vmatprep.mubr.f32.mxu0 0.0
  %2369 = vmatmul.mubr.f32.gmra.mxu0 %v2267
  %v2370 = vpop.f32.mrf.mxu0
  %v2371 = vadd.f32 %v2243, %v2370
  %v2372 = vpop.f32.mrf.mxu0
  %2373 = vdwg.mxu0
  %v2374 = vmax.f32 %v2336, 0.0
  %v2375 = vmax.f32 %v2341, 0.0
  %v2376 = vmax.f32 %v2346, 0.0
  %v2377 = vmax.f32 %v2351, 0.0
  %v2378 = vmax.f32 %v2356, 0.0
  %v2379 = vmax.f32 %v2361, 0.0
  %v2380 = vmax.f32 %v2366, 0.0
  %v2381 = vmax.f32 %v2371, 0.0
  %v2382 = vld [vmem:[%s1 + $0x1d0] sm:$0xff]
  %v2383 = vld [vmem:[%s1 + $0x1e0] sm:$0xff]
  %v2384 = vld [vmem:[%s1 + $0x1f0] ss:$0 sm:$0xff]
  %v2386 = vsel %vm173, %v2374, 0
  %v2389 = vsel %vm173, %v2375, 0
  %v2392 = vsel %vm173, %v2376, 0
  %v2395 = vsel %vm173, %v2377, 0
  %v2398 = vsel %vm173, %v2378, 0
  %v2401 = vsel %vm173, %v2379, 0
  %v2404 = vsel %vm173, %v2380, 0
  %v2407 = vsel %vm173, %v2381, 0
  %2409 = vmatprep.subr.mxu0 0.0
  %2410 = vmatpush1.msra.mxu0 0.0
  %2411 = vmatprep.subr.mxu0 0.0
  %2412 = vmatpush1.msra.mxu0 0.0
  %2413 = vmatprep.subr.mxu0 0.0
  %2414 = vmatpush1.msra.mxu0 0.0
  %2415 = vmatprep.subr.mxu0 0.0
  %2416 = vmatpush1.msra.mxu0 0.0
  %2417 = vmatprep.subr.mxu0 0.0
  %2418 = vmatpush1.msra.mxu0 0.0
  %2419 = vmatprep.subr.mxu0 0.0
  %2420 = vmatpush1.msra.mxu0 0.0
  %2421 = vmatprep.subr.mxu0 0.0
  %2422 = vmatpush1.msra.mxu0 0.0
  %2423 = vmatprep.subr.mxu0 0.0
  %2424 = vmatpush1.msra.mxu0 0.0
  %2425 = vmatprep.subr.mxu0 0.0
  %2426 = vmatpush1.msra.mxu0 0.0
  %2427 = vmatprep.subr.mxu0 0.0
  %2428 = vmatpush1.msra.mxu0 0.0
  %2429 = vmatprep.subr.mxu0 0.0
  %2430 = vmatpush1.msra.mxu0 0.0
  %2431 = vmatprep.subr.mxu0 0.0
  %2432 = vmatpush1.msra.mxu0 0.0
  %2433 = vmatprep.subr.mxu0 0.0
  %2434 = vmatpush1.msra.mxu0 0.0
  %2435 = vmatprep.subr.mxu0 0.0
  %2436 = vmatpush1.msra.mxu0 0.0
  %2437 = vmatprep.subr.mxu0 0.0
  %2438 = vmatpush1.msra.mxu0 %v2383
  %2439 = vmatprep.subr.mxu0 0.0
  %2440 = vmatpush1.msra.mxu0 %v2382
  %2441 = vmatprep.subr.mxu0 0.0
  %2442 = vmatpush2.msra.mxu0 0.0
  %2443 = vmatprep.subr.mxu0 0.0
  %2444 = vmatpush2.msra.mxu0 0.0
  %2445 = vmatprep.subr.mxu0 0.0
  %2446 = vmatpush2.msra.mxu0 0.0
  %2447 = vmatprep.subr.mxu0 0.0
  %2448 = vmatpush2.msra.mxu0 0.0
  %2449 = vmatprep.subr.mxu0 0.0
  %2450 = vmatpush2.msra.mxu0 0.0
  %2451 = vmatprep.subr.mxu0 0.0
  %2452 = vmatpush2.msra.mxu0 0.0
  %2453 = vmatprep.subr.mxu0 0.0
  %2454 = vmatpush2.msra.mxu0 0.0
  %2455 = vmatprep.subr.mxu0 0.0
  %2456 = vmatpush2.msra.mxu0 0.0
  %2457 = vmatprep.subr.mxu0 0.0
  %2458 = vmatpush2.msra.mxu0 0.0
  %2459 = vmatprep.subr.mxu0 0.0
  %2460 = vmatpush2.msra.mxu0 0.0
  %2461 = vmatprep.subr.mxu0 0.0
  %2462 = vmatpush2.msra.mxu0 0.0
  %2463 = vmatprep.subr.mxu0 0.0
  %2464 = vmatpush2.msra.mxu0 0.0
  %2465 = vmatprep.subr.mxu0 0.0
  %2466 = vmatpush2.msra.mxu0 0.0
  %2467 = vmatprep.subr.mxu0 0.0
  %2468 = vmatpush2.msra.mxu0 0.0
  %2469 = vmatprep.subr.mxu0 0.0
  %2470 = vmatpush2.msra.mxu0 0.0
  %2471 = vmatprep.subr.mxu0 0.0
  %2472 = vmatpush2.msra.mxu0 0.0
  %2473 = vmatprep.mubr.f32.mxu0 0.0
  %2474 = vmatmul.mubr.f32.gmra.mxu0 %v2386
  %v2475 = vpop.f32.mrf.mxu0
  %v2476 = vadd.f32 %v2384, %v2475
  %v2477 = vpop.f32.mrf.mxu0
  %2478 = vmatprep.mubr.f32.mxu0 0.0
  %2479 = vmatmul.mubr.f32.gmra.mxu0 %v2389
  %v2480 = vpop.f32.mrf.mxu0
  %v2481 = vadd.f32 %v2384, %v2480
  %v2482 = vpop.f32.mrf.mxu0
  %2483 = vmatprep.mubr.f32.mxu0 0.0
  %2484 = vmatmul.mubr.f32.gmra.mxu0 %v2392
  %v2485 = vpop.f32.mrf.mxu0
  %v2486 = vadd.f32 %v2384, %v2485
  %v2487 = vpop.f32.mrf.mxu0
  %2488 = vmatprep.mubr.f32.mxu0 0.0
  %2489 = vmatmul.mubr.f32.gmra.mxu0 %v2395
  %v2490 = vpop.f32.mrf.mxu0
  %v2491 = vadd.f32 %v2384, %v2490
  %v2492 = vpop.f32.mrf.mxu0
  %2493 = vmatprep.mubr.f32.mxu0 0.0
  %2494 = vmatmul.mubr.f32.gmra.mxu0 %v2398
  %v2495 = vpop.f32.mrf.mxu0
  %v2496 = vadd.f32 %v2384, %v2495
  %v2497 = vpop.f32.mrf.mxu0
  %2498 = vmatprep.mubr.f32.mxu0 0.0
  %2499 = vmatmul.mubr.f32.gmra.mxu0 %v2401
  %v2500 = vpop.f32.mrf.mxu0
  %v2501 = vadd.f32 %v2384, %v2500
  %v2502 = vpop.f32.mrf.mxu0
  %2503 = vmatprep.mubr.f32.mxu0 0.0
  %2504 = vmatmul.mubr.f32.gmra.mxu0 %v2404
  %v2505 = vpop.f32.mrf.mxu0
  %v2506 = vadd.f32 %v2384, %v2505
  %v2507 = vpop.f32.mrf.mxu0
  %2508 = vmatprep.mubr.f32.mxu0 0.0
  %2509 = vmatmul.mubr.f32.gmra.mxu0 %v2407
  %v2510 = vpop.f32.mrf.mxu0
  %v2511 = vadd.f32 %v2384, %v2510
  %v2512 = vpop.f32.mrf.mxu0
  %2513 = vdwg.mxu0
  %vm2514 = vcmask 31744
  %v2515 = vsel %vm2514, %v2476, -inf
  %2516 = vmax.xlane.f32.xlu0 %v2515
  %v2517 = vpop.xlane.xlu0 %2516
  %v2518 = vsel %vm2514, %v2481, -inf
  %2519 = vmax.xlane.f32.xlu0 %v2518
  %v2520 = vpop.xlane.xlu0 %2519
  %v2521 = vsel %vm2514, %v2486, -inf
  %2522 = vmax.xlane.f32.xlu0 %v2521
  %v2523 = vpop.xlane.xlu0 %2522
  %v2524 = vsel %vm2514, %v2491, -inf
  %2525 = vmax.xlane.f32.xlu0 %v2524
  %v2526 = vpop.xlane.xlu0 %2525
  %v2527 = vsel %vm2514, %v2496, -inf
  %2528 = vmax.xlane.f32.xlu0 %v2527
  %v2529 = vpop.xlane.xlu0 %2528
  %v2530 = vsel %vm2514, %v2501, -inf
  %2531 = vmax.xlane.f32.xlu0 %v2530
  %v2532 = vpop.xlane.xlu0 %2531
  %v2533 = vsel %vm2514, %v2506, -inf
  %2534 = vmax.xlane.f32.xlu0 %v2533
  %v2535 = vpop.xlane.xlu0 %2534
  %v2536 = vsel %vm2514, %v2511, -inf
  %2537 = vmax.xlane.f32.xlu0 %v2536
  %v2538 = vpop.xlane.xlu0 %2537
  %v2539 = vsub.f32 %v2476, %v2517
  %v2540 = vsub.f32 %v2481, %v2520
  %v2541 = vsub.f32 %v2486, %v2523
  %v2542 = vsub.f32 %v2491, %v2526
  %v2543 = vsub.f32 %v2496, %v2529
  %v2544 = vsub.f32 %v2501, %v2532
  %v2545 = vsub.f32 %v2506, %v2535
  %v2546 = vsub.f32 %v2511, %v2538
  %v2547 = vmul.f32 %v2539, 1.442695
  %v2548 = vpow.pop %v2547
  %v2549 = vmul.f32 %v2540, 1.442695
  %v2550 = vpow.pop %v2549
  %v2551 = vmul.f32 %v2541, 1.442695
  %v2552 = vpow.pop %v2551
  %v2553 = vmul.f32 %v2542, 1.442695
  %v2554 = vpow.pop %v2553
  %v2555 = vmul.f32 %v2543, 1.442695
  %v2556 = vpow.pop %v2555
  %v2557 = vmul.f32 %v2544, 1.442695
  %v2558 = vpow.pop %v2557
  %v2559 = vmul.f32 %v2545, 1.442695
  %v2560 = vpow.pop %v2559
  %v2561 = vmul.f32 %v2546, 1.442695
  %v2562 = vpow.pop %v2561
  %v2563 = vsel %vm2514, %v2548, 0.0
  %2564 = vadd.xlane.f32.xlu0 %v2563
  %v2565 = vpop.xlane.xlu0 %2564
  %v2566 = vsel %vm2514, %v2550, 0.0
  %2567 = vadd.xlane.f32.xlu0 %v2566
  %v2568 = vpop.xlane.xlu0 %2567
  %v2569 = vsel %vm2514, %v2552, 0.0
  %2570 = vadd.xlane.f32.xlu0 %v2569
  %v2571 = vpop.xlane.xlu0 %2570
  %v2572 = vsel %vm2514, %v2554, 0.0
  %2573 = vadd.xlane.f32.xlu0 %v2572
  %v2574 = vpop.xlane.xlu0 %2573
  %v2575 = vsel %vm2514, %v2556, 0.0
  %2576 = vadd.xlane.f32.xlu0 %v2575
  %v2577 = vpop.xlane.xlu0 %2576
  %v2578 = vsel %vm2514, %v2558, 0.0
  %2579 = vadd.xlane.f32.xlu0 %v2578
  %v2580 = vpop.xlane.xlu0 %2579
  %v2581 = vsel %vm2514, %v2560, 0.0
  %2582 = vadd.xlane.f32.xlu0 %v2581
  %v2583 = vpop.xlane.xlu0 %2582
  %v2584 = vsel %vm2514, %v2562, 0.0
  %2585 = vadd.xlane.f32.xlu0 %v2584
  %v2586 = vpop.xlane.xlu0 %2585
  %v2587 = vrcp.pop %v2565
  %v2588 = vmul.f32 %v2548, %v2587
  %v2589 = vrcp.pop %v2568
  %v2590 = vmul.f32 %v2550, %v2589
  %v2591 = vrcp.pop %v2571
  %v2592 = vmul.f32 %v2552, %v2591
  %v2593 = vrcp.pop %v2574
  %v2594 = vmul.f32 %v2554, %v2593
  %v2595 = vrcp.pop %v2577
  %v2596 = vmul.f32 %v2556, %v2595
  %v2597 = vrcp.pop %v2580
  %v2598 = vmul.f32 %v2558, %v2597
  %v2599 = vrcp.pop %v2583
  %v2600 = vmul.f32 %v2560, %v2599
  %v2601 = vrcp.pop %v2586
  %v2602 = vmul.f32 %v2562, %v2601
  %v2603 = vlaneseq
  %v2604 = vand.u32 %v2603, 127
  %v2605 = vcvt.s32.f32 %v2604
  %vm2606 = vcmp.eq.f32.partialorder %v2476, %v2517
  %vm2607 = vcmp.eq.f32.partialorder %v2481, %v2520
  %vm2608 = vcmp.eq.f32.partialorder %v2486, %v2523
  %vm2609 = vcmp.eq.f32.partialorder %v2491, %v2526
  %vm2610 = vcmp.eq.f32.partialorder %v2496, %v2529
  %vm2611 = vcmp.eq.f32.partialorder %v2501, %v2532
  %vm2612 = vcmp.eq.f32.partialorder %v2506, %v2535
  %vm2613 = vcmp.eq.f32.partialorder %v2511, %v2538
  %v2614 = vsel %vm2606, %v2605, 1e+09
  %v2615 = vsel %vm2607, %v2605, 1e+09
  %v2616 = vsel %vm2608, %v2605, 1e+09
  %v2617 = vsel %vm2609, %v2605, 1e+09
  %v2618 = vsel %vm2610, %v2605, 1e+09
  %v2619 = vsel %vm2611, %v2605, 1e+09
  %v2620 = vsel %vm2612, %v2605, 1e+09
  %v2621 = vsel %vm2613, %v2605, 1e+09
  %v2622 = vsel %vm2514, %v2614, inf
  %2623 = vmin.xlane.f32.xlu0 %v2622
  %v2624 = vpop.xlane.xlu0 %2623
  %v2625 = vsel %vm2514, %v2615, inf
  %2626 = vmin.xlane.f32.xlu0 %v2625
  %v2627 = vpop.xlane.xlu0 %2626
  %v2628 = vsel %vm2514, %v2616, inf
  %2629 = vmin.xlane.f32.xlu0 %v2628
  %v2630 = vpop.xlane.xlu0 %2629
  %v2631 = vsel %vm2514, %v2617, inf
  %2632 = vmin.xlane.f32.xlu0 %v2631
  %v2633 = vpop.xlane.xlu0 %2632
  %v2634 = vsel %vm2514, %v2618, inf
  %2635 = vmin.xlane.f32.xlu0 %v2634
  %v2636 = vpop.xlane.xlu0 %2635
  %v2637 = vsel %vm2514, %v2619, inf
  %2638 = vmin.xlane.f32.xlu0 %v2637
  %v2639 = vpop.xlane.xlu0 %2638
  %v2640 = vsel %vm2514, %v2620, inf
  %2641 = vmin.xlane.f32.xlu0 %v2640
  %v2642 = vpop.xlane.xlu0 %2641
  %v2643 = vsel %vm2514, %v2621, inf
  %2644 = vmin.xlane.f32.xlu0 %v2643
  %v2645 = vpop.xlane.xlu0 %2644
  %vm2646 = vcmp.eq.f32.partialorder %v2605, %v2624
  %vm2647 = vcmp.eq.f32.partialorder %v2605, %v2627
  %vm2648 = vcmp.eq.f32.partialorder %v2605, %v2630
  %vm2649 = vcmp.eq.f32.partialorder %v2605, %v2633
  %vm2650 = vcmp.eq.f32.partialorder %v2605, %v2636
  %vm2651 = vcmp.eq.f32.partialorder %v2605, %v2639
  %vm2652 = vcmp.eq.f32.partialorder %v2605, %v2642
  %vm2653 = vcmp.eq.f32.partialorder %v2605, %v2645
  %v2654 = vsel %vm2646, -1e+09, %v2476
  %v2655 = vsel %vm2647, -1e+09, %v2481
  %v2656 = vsel %vm2648, -1e+09, %v2486
  %v2657 = vsel %vm2649, -1e+09, %v2491
  %v2658 = vsel %vm2650, -1e+09, %v2496
  %v2659 = vsel %vm2651, -1e+09, %v2501
  %v2660 = vsel %vm2652, -1e+09, %v2506
  %v2661 = vsel %vm2653, -1e+09, %v2511
  %v2662 = vsel %vm2514, %v2654, -inf
  %2663 = vmax.xlane.f32.xlu0 %v2662
  %v2664 = vpop.xlane.xlu0 %2663
  %v2665 = vsel %vm2514, %v2655, -inf
  %2666 = vmax.xlane.f32.xlu0 %v2665
  %v2667 = vpop.xlane.xlu0 %2666
  %v2668 = vsel %vm2514, %v2656, -inf
  %2669 = vmax.xlane.f32.xlu0 %v2668
  %v2670 = vpop.xlane.xlu0 %2669
  %v2671 = vsel %vm2514, %v2657, -inf
  %2672 = vmax.xlane.f32.xlu0 %v2671
  %v2673 = vpop.xlane.xlu0 %2672
  %v2674 = vsel %vm2514, %v2658, -inf
  %2675 = vmax.xlane.f32.xlu0 %v2674
  %v2676 = vpop.xlane.xlu0 %2675
  %v2677 = vsel %vm2514, %v2659, -inf
  %2678 = vmax.xlane.f32.xlu0 %v2677
  %v2679 = vpop.xlane.xlu0 %2678
  %v2680 = vsel %vm2514, %v2660, -inf
  %2681 = vmax.xlane.f32.xlu0 %v2680
  %v2682 = vpop.xlane.xlu0 %2681
  %v2683 = vsel %vm2514, %v2661, -inf
  %2684 = vmax.xlane.f32.xlu0 %v2683
  %v2685 = vpop.xlane.xlu0 %2684
  %vm2686 = vcmp.eq.f32.partialorder %v2654, %v2664
  %vm2687 = vcmp.eq.f32.partialorder %v2655, %v2667
  %vm2688 = vcmp.eq.f32.partialorder %v2656, %v2670
  %vm2689 = vcmp.eq.f32.partialorder %v2657, %v2673
  %vm2690 = vcmp.eq.f32.partialorder %v2658, %v2676
  %vm2691 = vcmp.eq.f32.partialorder %v2659, %v2679
  %vm2692 = vcmp.eq.f32.partialorder %v2660, %v2682
  %vm2693 = vcmp.eq.f32.partialorder %v2661, %v2685
  %v2694 = vsel %vm2686, %v2605, 1e+09
  %v2695 = vsel %vm2687, %v2605, 1e+09
  %v2696 = vsel %vm2688, %v2605, 1e+09
  %v2697 = vsel %vm2689, %v2605, 1e+09
  %v2698 = vsel %vm2690, %v2605, 1e+09
  %v2699 = vsel %vm2691, %v2605, 1e+09
  %v2700 = vsel %vm2692, %v2605, 1e+09
  %v2701 = vsel %vm2693, %v2605, 1e+09
  %v2702 = vsel %vm2514, %v2694, inf
  %2703 = vmin.xlane.f32.xlu0 %v2702
  %v2704 = vpop.xlane.xlu0 %2703
  %v2705 = vsel %vm2514, %v2695, inf
  %2706 = vmin.xlane.f32.xlu0 %v2705
  %v2707 = vpop.xlane.xlu0 %2706
  %v2708 = vsel %vm2514, %v2696, inf
  %2709 = vmin.xlane.f32.xlu0 %v2708
  %v2710 = vpop.xlane.xlu0 %2709
  %v2711 = vsel %vm2514, %v2697, inf
  %2712 = vmin.xlane.f32.xlu0 %v2711
  %v2713 = vpop.xlane.xlu0 %2712
  %v2714 = vsel %vm2514, %v2698, inf
  %2715 = vmin.xlane.f32.xlu0 %v2714
  %v2716 = vpop.xlane.xlu0 %2715
  %v2717 = vsel %vm2514, %v2699, inf
  %2718 = vmin.xlane.f32.xlu0 %v2717
  %v2719 = vpop.xlane.xlu0 %2718
  %v2720 = vsel %vm2514, %v2700, inf
  %2721 = vmin.xlane.f32.xlu0 %v2720
  %v2722 = vpop.xlane.xlu0 %2721
  %v2723 = vsel %vm2514, %v2701, inf
  %2724 = vmin.xlane.f32.xlu0 %v2723
  %v2725 = vpop.xlane.xlu0 %2724
  %vm2726 = vcmp.eq.f32.partialorder %v2605, %v2704
  %vm2727 = vcmp.eq.f32.partialorder %v2605, %v2707
  %vm2728 = vcmp.eq.f32.partialorder %v2605, %v2710
  %vm2729 = vcmp.eq.f32.partialorder %v2605, %v2713
  %vm2730 = vcmp.eq.f32.partialorder %v2605, %v2716
  %vm2731 = vcmp.eq.f32.partialorder %v2605, %v2719
  %vm2732 = vcmp.eq.f32.partialorder %v2605, %v2722
  %vm2733 = vcmp.eq.f32.partialorder %v2605, %v2725
  %v2734 = vsub.f32 %v2664, %v2517
  %v2735 = vsub.f32 %v2667, %v2520
  %v2736 = vsub.f32 %v2670, %v2523
  %v2737 = vsub.f32 %v2673, %v2526
  %v2738 = vsub.f32 %v2676, %v2529
  %v2739 = vsub.f32 %v2679, %v2532
  %v2740 = vsub.f32 %v2682, %v2535
  %v2741 = vsub.f32 %v2685, %v2538
  %v2742 = vmul.f32 %v2734, 1.442695
  %v2743 = vpow.pop %v2742
  %v2744 = vmul.f32 %v2735, 1.442695
  %v2745 = vpow.pop %v2744
  %v2746 = vmul.f32 %v2736, 1.442695
  %v2747 = vpow.pop %v2746
  %v2748 = vmul.f32 %v2737, 1.442695
  %v2749 = vpow.pop %v2748
  %v2750 = vmul.f32 %v2738, 1.442695
  %v2751 = vpow.pop %v2750
  %v2752 = vmul.f32 %v2739, 1.442695
  %v2753 = vpow.pop %v2752
  %v2754 = vmul.f32 %v2740, 1.442695
  %v2755 = vpow.pop %v2754
  %v2756 = vmul.f32 %v2741, 1.442695
  %v2757 = vpow.pop %v2756
  %v2758 = vadd.f32 %v2743, 1.0
  %v2759 = vadd.f32 %v2745, 1.0
  %v2760 = vadd.f32 %v2747, 1.0
  %v2761 = vadd.f32 %v2749, 1.0
  %v2762 = vadd.f32 %v2751, 1.0
  %v2763 = vadd.f32 %v2753, 1.0
  %v2764 = vadd.f32 %v2755, 1.0
  %v2765 = vadd.f32 %v2757, 1.0
  %v2766 = vrcp.pop %v2758
  %v2767 = vmul.f32 1.0, %v2766
  %v2768 = vrcp.pop %v2759
  %v2769 = vmul.f32 1.0, %v2768
  %v2770 = vrcp.pop %v2760
  %v2771 = vmul.f32 1.0, %v2770
  %v2772 = vrcp.pop %v2761
  %v2773 = vmul.f32 1.0, %v2772
  %v2774 = vrcp.pop %v2762
  %v2775 = vmul.f32 1.0, %v2774
  %v2776 = vrcp.pop %v2763
  %v2777 = vmul.f32 1.0, %v2776
  %v2778 = vrcp.pop %v2764
  %v2779 = vmul.f32 1.0, %v2778
  %v2780 = vrcp.pop %v2765
  %v2781 = vmul.f32 1.0, %v2780
  %v2782 = vsel %vm2646, 1, 0
  %v2783 = vsel %vm2647, 1, 0
  %v2784 = vsel %vm2648, 1, 0
  %v2785 = vsel %vm2649, 1, 0
  %v2786 = vsel %vm2650, 1, 0
  %v2787 = vsel %vm2651, 1, 0
  %v2788 = vsel %vm2652, 1, 0
  %v2789 = vsel %vm2653, 1, 0
  %v2790 = vcvt.s32.f32 %v2782
  %v2791 = vcvt.s32.f32 %v2783
  %v2792 = vcvt.s32.f32 %v2784
  %v2793 = vcvt.s32.f32 %v2785
  %v2794 = vcvt.s32.f32 %v2786
  %v2795 = vcvt.s32.f32 %v2787
  %v2796 = vcvt.s32.f32 %v2788
  %v2797 = vcvt.s32.f32 %v2789
  %v2798 = vmul.f32 %v2767, %v2790
  %v2799 = vmul.f32 %v2769, %v2791
  %v2800 = vmul.f32 %v2771, %v2792
  %v2801 = vmul.f32 %v2773, %v2793
  %v2802 = vmul.f32 %v2775, %v2794
  %v2803 = vmul.f32 %v2777, %v2795
  %v2804 = vmul.f32 %v2779, %v2796
  %v2805 = vmul.f32 %v2781, %v2797
  %v2806 = vmul.f32 %v2743, %v2767
  %v2807 = vmul.f32 %v2745, %v2769
  %v2808 = vmul.f32 %v2747, %v2771
  %v2809 = vmul.f32 %v2749, %v2773
  %v2810 = vmul.f32 %v2751, %v2775
  %v2811 = vmul.f32 %v2753, %v2777
  %v2812 = vmul.f32 %v2755, %v2779
  %v2813 = vmul.f32 %v2757, %v2781
  %v2814 = vsel %vm2726, 1, 0
  %v2815 = vsel %vm2727, 1, 0
  %v2816 = vsel %vm2728, 1, 0
  %v2817 = vsel %vm2729, 1, 0
  %v2818 = vsel %vm2730, 1, 0
  %v2819 = vsel %vm2731, 1, 0
  %v2820 = vsel %vm2732, 1, 0
  %v2821 = vsel %vm2733, 1, 0
  %v2822 = vcvt.s32.f32 %v2814
  %v2823 = vcvt.s32.f32 %v2815
  %v2824 = vcvt.s32.f32 %v2816
  %v2825 = vcvt.s32.f32 %v2817
  %v2826 = vcvt.s32.f32 %v2818
  %v2827 = vcvt.s32.f32 %v2819
  %v2828 = vcvt.s32.f32 %v2820
  %v2829 = vcvt.s32.f32 %v2821
  %v2830 = vmul.f32 %v2806, %v2822
  %v2831 = vmul.f32 %v2807, %v2823
  %v2832 = vmul.f32 %v2808, %v2824
  %v2833 = vmul.f32 %v2809, %v2825
  %v2834 = vmul.f32 %v2810, %v2826
  %v2835 = vmul.f32 %v2811, %v2827
  %v2836 = vmul.f32 %v2812, %v2828
  %v2837 = vmul.f32 %v2813, %v2829
  %v2838 = vadd.f32 %v2798, %v2830
  %v2839 = vadd.f32 %v2799, %v2831
  %v2840 = vadd.f32 %v2800, %v2832
  %v2841 = vadd.f32 %v2801, %v2833
  %v2842 = vadd.f32 %v2802, %v2834
  %v2843 = vadd.f32 %v2803, %v2835
  %v2844 = vadd.f32 %v2804, %v2836
  %v2845 = vadd.f32 %v2805, %v2837
  %v2846 = vld [vmem:[%s1 + $0x200] sm:$0xf]
  %v2848 = vsel %vm2514, %v2838, 0
  %v2851 = vsel %vm2514, %v2839, 0
  %v2854 = vsel %vm2514, %v2840, 0
  %v2857 = vsel %vm2514, %v2841, 0
  %v2860 = vsel %vm2514, %v2842, 0
  %v2863 = vsel %vm2514, %v2843, 0
  %v2866 = vsel %vm2514, %v2844, 0
  %v2869 = vsel %vm2514, %v2845, 0
  %v2872 = vsel %vm47, %v2846, 0
  %2874 = vmatprep.subr.mxu0 0.0
  %2875 = vmatpush1.msra.mxu0 0.0
  %2876 = vmatprep.subr.mxu0 0.0
  %2877 = vmatpush1.msra.mxu0 0.0
  %2878 = vmatprep.subr.mxu0 0.0
  %2879 = vmatpush1.msra.mxu0 0.0
  %2880 = vmatprep.subr.mxu0 0.0
  %2881 = vmatpush1.msra.mxu0 0.0
  %2882 = vmatprep.subr.mxu0 0.0
  %2883 = vmatpush1.msra.mxu0 0.0
  %2884 = vmatprep.subr.mxu0 0.0
  %2885 = vmatpush1.msra.mxu0 0.0
  %2886 = vmatprep.subr.mxu0 0.0
  %2887 = vmatpush1.msra.mxu0 0.0
  %2888 = vmatprep.subr.mxu0 0.0
  %2889 = vmatpush1.msra.mxu0 0.0
  %2890 = vmatprep.subr.mxu0 0.0
  %2891 = vmatpush1.msra.mxu0 0.0
  %2892 = vmatprep.subr.mxu0 0.0
  %2893 = vmatpush1.msra.mxu0 0.0
  %2894 = vmatprep.subr.mxu0 0.0
  %2895 = vmatpush1.msra.mxu0 0.0
  %2896 = vmatprep.subr.mxu0 0.0
  %2897 = vmatpush1.msra.mxu0 0.0
  %2898 = vmatprep.subr.mxu0 0.0
  %2899 = vmatpush1.msra.mxu0 0.0
  %2900 = vmatprep.subr.mxu0 0.0
  %2901 = vmatpush1.msra.mxu0 0.0
  %2902 = vmatprep.subr.mxu0 0.0
  %2903 = vmatpush1.msra.mxu0 0.0
  %2904 = vmatprep.subr.mxu0 0.0
  %2905 = vmatpush1.msra.mxu0 %v2872
  %2906 = vmatprep.subr.mxu0 0.0
  %2907 = vmatpush2.msra.mxu0 0.0
  %2908 = vmatprep.subr.mxu0 0.0
  %2909 = vmatpush2.msra.mxu0 0.0
  %2910 = vmatprep.subr.mxu0 0.0
  %2911 = vmatpush2.msra.mxu0 0.0
  %2912 = vmatprep.subr.mxu0 0.0
  %2913 = vmatpush2.msra.mxu0 0.0
  %2914 = vmatprep.subr.mxu0 0.0
  %2915 = vmatpush2.msra.mxu0 0.0
  %2916 = vmatprep.subr.mxu0 0.0
  %2917 = vmatpush2.msra.mxu0 0.0
  %2918 = vmatprep.subr.mxu0 0.0
  %2919 = vmatpush2.msra.mxu0 0.0
  %2920 = vmatprep.subr.mxu0 0.0
  %2921 = vmatpush2.msra.mxu0 0.0
  %2922 = vmatprep.subr.mxu0 0.0
  %2923 = vmatpush2.msra.mxu0 0.0
  %2924 = vmatprep.subr.mxu0 0.0
  %2925 = vmatpush2.msra.mxu0 0.0
  %2926 = vmatprep.subr.mxu0 0.0
  %2927 = vmatpush2.msra.mxu0 0.0
  %2928 = vmatprep.subr.mxu0 0.0
  %2929 = vmatpush2.msra.mxu0 0.0
  %2930 = vmatprep.subr.mxu0 0.0
  %2931 = vmatpush2.msra.mxu0 0.0
  %2932 = vmatprep.subr.mxu0 0.0
  %2933 = vmatpush2.msra.mxu0 0.0
  %2934 = vmatprep.subr.mxu0 0.0
  %2935 = vmatpush2.msra.mxu0 0.0
  %2936 = vmatprep.subr.mxu0 0.0
  %2937 = vmatpush2.msra.mxu0 0.0
  %2938 = vmatprep.mubr.f32.mxu0 0.0
  %2939 = vmatmul.mubr.f32.gmra.mxu0 %v2848
  %v2940 = vpop.f32.mrf.mxu0
  %v2941 = vadd.f32 0.0, %v2940
  %v2942 = vpop.f32.mrf.mxu0
  %2943 = vmatprep.mubr.f32.mxu0 0.0
  %2944 = vmatmul.mubr.f32.gmra.mxu0 %v2851
  %v2945 = vpop.f32.mrf.mxu0
  %v2946 = vadd.f32 0.0, %v2945
  %v2947 = vpop.f32.mrf.mxu0
  %2948 = vmatprep.mubr.f32.mxu0 0.0
  %2949 = vmatmul.mubr.f32.gmra.mxu0 %v2854
  %v2950 = vpop.f32.mrf.mxu0
  %v2951 = vadd.f32 0.0, %v2950
  %v2952 = vpop.f32.mrf.mxu0
  %2953 = vmatprep.mubr.f32.mxu0 0.0
  %2954 = vmatmul.mubr.f32.gmra.mxu0 %v2857
  %v2955 = vpop.f32.mrf.mxu0
  %v2956 = vadd.f32 0.0, %v2955
  %v2957 = vpop.f32.mrf.mxu0
  %2958 = vmatprep.mubr.f32.mxu0 0.0
  %2959 = vmatmul.mubr.f32.gmra.mxu0 %v2860
  %v2960 = vpop.f32.mrf.mxu0
  %v2961 = vadd.f32 0.0, %v2960
  %v2962 = vpop.f32.mrf.mxu0
  %2963 = vmatprep.mubr.f32.mxu0 0.0
  %2964 = vmatmul.mubr.f32.gmra.mxu0 %v2863
  %v2965 = vpop.f32.mrf.mxu0
  %v2966 = vadd.f32 0.0, %v2965
  %v2967 = vpop.f32.mrf.mxu0
  %2968 = vmatprep.mubr.f32.mxu0 0.0
  %2969 = vmatmul.mubr.f32.gmra.mxu0 %v2866
  %v2970 = vpop.f32.mrf.mxu0
  %v2971 = vadd.f32 0.0, %v2970
  %v2972 = vpop.f32.mrf.mxu0
  %2973 = vmatprep.mubr.f32.mxu0 0.0
  %2974 = vmatmul.mubr.f32.gmra.mxu0 %v2869
  %v2975 = vpop.f32.mrf.mxu0
  %v2976 = vadd.f32 0.0, %v2975
  %v2977 = vpop.f32.mrf.mxu0
  %2978 = vdwg.mxu0
  %v2979 = vmul.f32 %v311, %v2941
  %v2980 = vmul.f32 %v313, %v2946
  %v2981 = vmul.f32 %v315, %v2951
  %v2982 = vmul.f32 %v317, %v2956
  %v2983 = vmul.f32 %v319, %v2961
  %v2984 = vmul.f32 %v321, %v2966
  %v2985 = vmul.f32 %v323, %v2971
  %v2986 = vmul.f32 %v325, %v2976
  %v2987 = vld [vmem:[%s1 + $0x210] sm:$0xff]
  %v2988 = vld [vmem:[%s1 + $0x220] sm:$0xff]
  %v2989 = vld [vmem:[%s1 + $0x230] sm:$0xff]
  %v2990 = vld [vmem:[%s1 + $0x240] sm:$0xff]
  %v2991 = vld [vmem:[%s1 + $0x250] sm:$0xff]
  %v2992 = vld [vmem:[%s1 + $0x260] sm:$0xff]
  %v2993 = vld [vmem:[%s1 + $0x270] sm:$0xff]
  %v2994 = vld [vmem:[%s1 + $0x280] sm:$0xff]
  %v2995 = vld [vmem:[%s1 + $0x290] sm:$0xff]
  %v2996 = vld [vmem:[%s1 + $0x2a0] sm:$0xff]
  %v2997 = vld [vmem:[%s1 + $0x2b0] sm:$0xff]
  %v2998 = vld [vmem:[%s1 + $0x2c0] sm:$0xff]
  %v2999 = vld [vmem:[%s1 + $0x2d0] sm:$0xff]
  %v3000 = vld [vmem:[%s1 + $0x2e0] sm:$0xff]
  %v3001 = vld [vmem:[%s1 + $0x2f0] sm:$0xff]
  %v3002 = vld [vmem:[%s1 + $0x300] sm:$0xff]
  %v3003 = vld [vmem:[%s1 + $0x310] sm:$0xf]
  %v3005 = vsel %vm47, %v3003, 0
  %3007 = vmatprep.subr.mxu0 0.0
  %3008 = vmatpush1.msra.mxu0 0.0
  %3009 = vmatprep.subr.mxu0 0.0
  %3010 = vmatpush1.msra.mxu0 0.0
  %3011 = vmatprep.subr.mxu0 0.0
  %3012 = vmatpush1.msra.mxu0 0.0
  %3013 = vmatprep.subr.mxu0 0.0
  %3014 = vmatpush1.msra.mxu0 0.0
  %3015 = vmatprep.subr.mxu0 0.0
  %3016 = vmatpush1.msra.mxu0 0.0
  %3017 = vmatprep.subr.mxu0 0.0
  %3018 = vmatpush1.msra.mxu0 0.0
  %3019 = vmatprep.subr.mxu0 0.0
  %3020 = vmatpush1.msra.mxu0 0.0
  %3021 = vmatprep.subr.mxu0 0.0
  %3022 = vmatpush1.msra.mxu0 0.0
  %3023 = vmatprep.subr.mxu0 0.0
  %3024 = vmatpush1.msra.mxu0 0.0
  %3025 = vmatprep.subr.mxu0 0.0
  %3026 = vmatpush1.msra.mxu0 0.0
  %3027 = vmatprep.subr.mxu0 0.0
  %3028 = vmatpush1.msra.mxu0 0.0
  %3029 = vmatprep.subr.mxu0 0.0
  %3030 = vmatpush1.msra.mxu0 0.0
  %3031 = vmatprep.subr.mxu0 0.0
  %3032 = vmatpush1.msra.mxu0 0.0
  %3033 = vmatprep.subr.mxu0 0.0
  %3034 = vmatpush1.msra.mxu0 0.0
  %3035 = vmatprep.subr.mxu0 0.0
  %3036 = vmatpush1.msra.mxu0 0.0
  %3037 = vmatprep.subr.mxu0 0.0
  %3038 = vmatpush1.msra.mxu0 %v3005
  %3039 = vmatprep.subr.mxu0 0.0
  %3040 = vmatpush2.msra.mxu0 0.0
  %3041 = vmatprep.subr.mxu0 0.0
  %3042 = vmatpush2.msra.mxu0 0.0
  %3043 = vmatprep.subr.mxu0 0.0
  %3044 = vmatpush2.msra.mxu0 0.0
  %3045 = vmatprep.subr.mxu0 0.0
  %3046 = vmatpush2.msra.mxu0 0.0
  %3047 = vmatprep.subr.mxu0 0.0
  %3048 = vmatpush2.msra.mxu0 0.0
  %3049 = vmatprep.subr.mxu0 0.0
  %3050 = vmatpush2.msra.mxu0 0.0
  %3051 = vmatprep.subr.mxu0 0.0
  %3052 = vmatpush2.msra.mxu0 0.0
  %3053 = vmatprep.subr.mxu0 0.0
  %3054 = vmatpush2.msra.mxu0 0.0
  %3055 = vmatprep.subr.mxu0 0.0
  %3056 = vmatpush2.msra.mxu0 0.0
  %3057 = vmatprep.subr.mxu0 0.0
  %3058 = vmatpush2.msra.mxu0 0.0
  %3059 = vmatprep.subr.mxu0 0.0
  %3060 = vmatpush2.msra.mxu0 0.0
  %3061 = vmatprep.subr.mxu0 0.0
  %3062 = vmatpush2.msra.mxu0 0.0
  %3063 = vmatprep.subr.mxu0 0.0
  %3064 = vmatpush2.msra.mxu0 0.0
  %3065 = vmatprep.subr.mxu0 0.0
  %3066 = vmatpush2.msra.mxu0 0.0
  %3067 = vmatprep.subr.mxu0 0.0
  %3068 = vmatpush2.msra.mxu0 0.0
  %3069 = vmatprep.subr.mxu0 0.0
  %3070 = vmatpush2.msra.mxu0 0.0
  %3071 = vmatprep.mubr.f32.mxu0 0.0
  %3072 = vmatmul.mubr.f32.gmra.mxu0 %v2848
  %v3073 = vpop.f32.mrf.mxu0
  %v3074 = vadd.f32 0.0, %v3073
  %v3075 = vpop.f32.mrf.mxu0
  %3076 = vmatprep.mubr.f32.mxu0 0.0
  %3077 = vmatmul.mubr.f32.gmra.mxu0 %v2851
  %v3078 = vpop.f32.mrf.mxu0
  %v3079 = vadd.f32 0.0, %v3078
  %v3080 = vpop.f32.mrf.mxu0
  %3081 = vmatprep.mubr.f32.mxu0 0.0
  %3082 = vmatmul.mubr.f32.gmra.mxu0 %v2854
  %v3083 = vpop.f32.mrf.mxu0
  %v3084 = vadd.f32 0.0, %v3083
  %v3085 = vpop.f32.mrf.mxu0
  %3086 = vmatprep.mubr.f32.mxu0 0.0
  %3087 = vmatmul.mubr.f32.gmra.mxu0 %v2857
  %v3088 = vpop.f32.mrf.mxu0
  %v3089 = vadd.f32 0.0, %v3088
  %v3090 = vpop.f32.mrf.mxu0
  %3091 = vmatprep.mubr.f32.mxu0 0.0
  %3092 = vmatmul.mubr.f32.gmra.mxu0 %v2860
  %v3093 = vpop.f32.mrf.mxu0
  %v3094 = vadd.f32 0.0, %v3093
  %v3095 = vpop.f32.mrf.mxu0
  %3096 = vmatprep.mubr.f32.mxu0 0.0
  %3097 = vmatmul.mubr.f32.gmra.mxu0 %v2863
  %v3098 = vpop.f32.mrf.mxu0
  %v3099 = vadd.f32 0.0, %v3098
  %v3100 = vpop.f32.mrf.mxu0
  %3101 = vmatprep.mubr.f32.mxu0 0.0
  %3102 = vmatmul.mubr.f32.gmra.mxu0 %v2866
  %v3103 = vpop.f32.mrf.mxu0
  %v3104 = vadd.f32 0.0, %v3103
  %v3105 = vpop.f32.mrf.mxu0
  %3106 = vmatprep.mubr.f32.mxu0 0.0
  %3107 = vmatmul.mubr.f32.gmra.mxu0 %v2869
  %v3108 = vpop.f32.mrf.mxu0
  %v3109 = vadd.f32 0.0, %v3108
  %v3110 = vpop.f32.mrf.mxu0
  %3111 = vdwg.mxu0
  %3112 = vmatprep.subr.mxu0 0.0
  %3113 = vmatpush1.msra.mxu0 %v3002
  %3114 = vmatprep.subr.mxu0 0.0
  %3115 = vmatpush1.msra.mxu0 %v3001
  %3116 = vmatprep.subr.mxu0 0.0
  %3117 = vmatpush1.msra.mxu0 %v3000
  %3118 = vmatprep.subr.mxu0 0.0
  %3119 = vmatpush1.msra.mxu0 %v2999
  %3120 = vmatprep.subr.mxu0 0.0
  %3121 = vmatpush1.msra.mxu0 %v2998
  %3122 = vmatprep.subr.mxu0 0.0
  %3123 = vmatpush1.msra.mxu0 %v2997
  %3124 = vmatprep.subr.mxu0 0.0
  %3125 = vmatpush1.msra.mxu0 %v2996
  %3126 = vmatprep.subr.mxu0 0.0
  %3127 = vmatpush1.msra.mxu0 %v2995
  %3128 = vmatprep.subr.mxu0 0.0
  %3129 = vmatpush1.msra.mxu0 %v2994
  %3130 = vmatprep.subr.mxu0 0.0
  %3131 = vmatpush1.msra.mxu0 %v2993
  %3132 = vmatprep.subr.mxu0 0.0
  %3133 = vmatpush1.msra.mxu0 %v2992
  %3134 = vmatprep.subr.mxu0 0.0
  %3135 = vmatpush1.msra.mxu0 %v2991
  %3136 = vmatprep.subr.mxu0 0.0
  %3137 = vmatpush1.msra.mxu0 %v2990
  %3138 = vmatprep.subr.mxu0 0.0
  %3139 = vmatpush1.msra.mxu0 %v2989
  %3140 = vmatprep.subr.mxu0 0.0
  %3141 = vmatpush1.msra.mxu0 %v2988
  %3142 = vmatprep.subr.mxu0 0.0
  %3143 = vmatpush1.msra.mxu0 %v2987
  %3144 = vmatprep.subr.mxu0 0.0
  %3145 = vmatpush2.msra.mxu0 0.0
  %3146 = vmatprep.subr.mxu0 0.0
  %3147 = vmatpush2.msra.mxu0 0.0
  %3148 = vmatprep.subr.mxu0 0.0
  %3149 = vmatpush2.msra.mxu0 0.0
  %3150 = vmatprep.subr.mxu0 0.0
  %3151 = vmatpush2.msra.mxu0 0.0
  %3152 = vmatprep.subr.mxu0 0.0
  %3153 = vmatpush2.msra.mxu0 0.0
  %3154 = vmatprep.subr.mxu0 0.0
  %3155 = vmatpush2.msra.mxu0 0.0
  %3156 = vmatprep.subr.mxu0 0.0
  %3157 = vmatpush2.msra.mxu0 0.0
  %3158 = vmatprep.subr.mxu0 0.0
  %3159 = vmatpush2.msra.mxu0 0.0
  %3160 = vmatprep.subr.mxu0 0.0
  %3161 = vmatpush2.msra.mxu0 0.0
  %3162 = vmatprep.subr.mxu0 0.0
  %3163 = vmatpush2.msra.mxu0 0.0
  %3164 = vmatprep.subr.mxu0 0.0
  %3165 = vmatpush2.msra.mxu0 0.0
  %3166 = vmatprep.subr.mxu0 0.0
  %3167 = vmatpush2.msra.mxu0 0.0
  %3168 = vmatprep.subr.mxu0 0.0
  %3169 = vmatpush2.msra.mxu0 0.0
  %3170 = vmatprep.subr.mxu0 0.0
  %3171 = vmatpush2.msra.mxu0 0.0
  %3172 = vmatprep.subr.mxu0 0.0
  %3173 = vmatpush2.msra.mxu0 0.0
  %3174 = vmatprep.subr.mxu0 0.0
  %3175 = vmatpush2.msra.mxu0 0.0
  %3176 = vmatprep.mubr.f32.mxu0 0.0
  %3177 = vmatmul.mubr.f32.gmra.mxu0 %v2979
  %v3178 = vpop.f32.mrf.mxu0
  %v3179 = vadd.f32 %v3074, %v3178
  %v3180 = vpop.f32.mrf.mxu0
  %3181 = vmatprep.mubr.f32.mxu0 0.0
  %3182 = vmatmul.mubr.f32.gmra.mxu0 %v2980
  %v3183 = vpop.f32.mrf.mxu0
  %v3184 = vadd.f32 %v3079, %v3183
  %v3185 = vpop.f32.mrf.mxu0
  %3186 = vmatprep.mubr.f32.mxu0 0.0
  %3187 = vmatmul.mubr.f32.gmra.mxu0 %v2981
  %v3188 = vpop.f32.mrf.mxu0
  %v3189 = vadd.f32 %v3084, %v3188
  %v3190 = vpop.f32.mrf.mxu0
  %3191 = vmatprep.mubr.f32.mxu0 0.0
  %3192 = vmatmul.mubr.f32.gmra.mxu0 %v2982
  %v3193 = vpop.f32.mrf.mxu0
  %v3194 = vadd.f32 %v3089, %v3193
  %v3195 = vpop.f32.mrf.mxu0
  %3196 = vmatprep.mubr.f32.mxu0 0.0
  %3197 = vmatmul.mubr.f32.gmra.mxu0 %v2983
  %v3198 = vpop.f32.mrf.mxu0
  %v3199 = vadd.f32 %v3094, %v3198
  %v3200 = vpop.f32.mrf.mxu0
  %3201 = vmatprep.mubr.f32.mxu0 0.0
  %3202 = vmatmul.mubr.f32.gmra.mxu0 %v2984
  %v3203 = vpop.f32.mrf.mxu0
  %v3204 = vadd.f32 %v3099, %v3203
  %v3205 = vpop.f32.mrf.mxu0
  %3206 = vmatprep.mubr.f32.mxu0 0.0
  %3207 = vmatmul.mubr.f32.gmra.mxu0 %v2985
  %v3208 = vpop.f32.mrf.mxu0
  %v3209 = vadd.f32 %v3104, %v3208
  %v3210 = vpop.f32.mrf.mxu0
  %3211 = vmatprep.mubr.f32.mxu0 0.0
  %3212 = vmatmul.mubr.f32.gmra.mxu0 %v2986
  %v3213 = vpop.f32.mrf.mxu0
  %v3214 = vadd.f32 %v3109, %v3213
  %v3215 = vpop.f32.mrf.mxu0
  %3216 = vdwg.mxu0
  %v3217 = vld [vmem:[%s1 + $0x320] ss:$0 sm:$0xff]
  %v3218 = vadd.f32 %v3179, %v3217
  %v3219 = vadd.f32 %v3184, %v3217
  %v3220 = vadd.f32 %v3189, %v3217
  %v3221 = vadd.f32 %v3194, %v3217
  %v3222 = vadd.f32 %v3199, %v3217
  %v3223 = vadd.f32 %v3204, %v3217
  %v3224 = vadd.f32 %v3209, %v3217
  %v3225 = vadd.f32 %v3214, %v3217
  %3234 = vrot.lane.b32.xlu0 %v2588, 8
  %v3235 = vpop.permute.xlu0 %3234
  %3236 = vrot.lane.b32.xlu0 %v2590, 8
  %v3237 = vpop.permute.xlu0 %3236
  %3238 = vrot.lane.b32.xlu0 %v2592, 8
  %v3239 = vpop.permute.xlu0 %3238
  %3240 = vrot.lane.b32.xlu0 %v2594, 8
  %v3241 = vpop.permute.xlu0 %3240
  %3242 = vrot.lane.b32.xlu0 %v2596, 8
  %v3243 = vpop.permute.xlu0 %3242
  %3244 = vrot.lane.b32.xlu0 %v2598, 8
  %v3245 = vpop.permute.xlu0 %3244
  %3246 = vrot.lane.b32.xlu0 %v2600, 8
  %v3247 = vpop.permute.xlu0 %3246
  %3248 = vrot.lane.b32.xlu0 %v2602, 8
  %v3249 = vpop.permute.xlu0 %3248
  %v3258 = vsel %vm659, %v3218, %v3235
  %v3259 = vsel %vm659, %v3219, %v3237
  %v3260 = vsel %vm659, %v3220, %v3239
  %v3261 = vsel %vm659, %v3221, %v3241
  %v3262 = vsel %vm659, %v3222, %v3243
  %v3263 = vsel %vm659, %v3223, %v3245
  %v3264 = vsel %vm659, %v3224, %v3247
  %v3265 = vsel %vm659, %v3225, %v3249
  %v3266 = vsel %vm22, %v3258, %v2624
  %v3267 = vsel %vm22, %v3259, %v2627
  %v3268 = vsel %vm22, %v3260, %v2630
  %v3269 = vsel %vm22, %v3261, %v2633
  %v3270 = vsel %vm22, %v3262, %v2636
  %v3271 = vsel %vm22, %v3263, %v2639
  %v3272 = vsel %vm22, %v3264, %v2642
  %v3273 = vsel %vm22, %v3265, %v2645
  %vm3274 = vcmask 105472
  %v3275 = vsel %vm3274, %v3266, %v2704
  %v3276 = vsel %vm3274, %v3267, %v2707
  %v3277 = vsel %vm3274, %v3268, %v2710
  %v3278 = vsel %vm3274, %v3269, %v2713
  %v3279 = vsel %vm3274, %v3270, %v2716
  %v3280 = vsel %vm3274, %v3271, %v2719
  %v3281 = vsel %vm3274, %v3272, %v2722
  %v3282 = vsel %vm3274, %v3273, %v2725
  %vm3283 = vcmask 113664
  %v3284 = vsel %vm3283, %v3275, 0.0
  %v3285 = vsel %vm3283, %v3276, 0.0
  %v3286 = vsel %vm3283, %v3277, 0.0
  %v3287 = vsel %vm3283, %v3278, 0.0
  %v3288 = vsel %vm3283, %v3279, 0.0
  %v3289 = vsel %vm3283, %v3280, 0.0
  %v3290 = vsel %vm3283, %v3281, 0.0
  %v3291 = vsel %vm3283, %v3282, 0.0
  %3292 = vst.msk [vmem:[%s2] sm:$0xff] %vm173, %v3284
  %3293 = vst.msk [vmem:[%s2 + $0x8] sm:$0xff] %vm173, %v3285
  %3294 = vst.msk [vmem:[%s2 + $0x10] sm:$0xff] %vm173, %v3286
  %3295 = vst.msk [vmem:[%s2 + $0x18] sm:$0xff] %vm173, %v3287
  %3296 = vst.msk [vmem:[%s2 + $0x20] sm:$0xff] %vm173, %v3288
  %3297 = vst.msk [vmem:[%s2 + $0x28] sm:$0xff] %vm173, %v3289
  %3298 = vst.msk [vmem:[%s2 + $0x30] sm:$0xff] %vm173, %v3290
  %3299 = vst.msk [vmem:[%s2 + $0x38] sm:$0xff] %vm173, %v3291
  // Predicated region
  $region10: #{fused_forward.1} parent=0 // pred_check
    _
  $region11: #{fused_forward.1} parent=0 // pred_check_branch
    %3301 = sbr.rel (0) target = $region13
  $region12: #{fused_forward.1} parent=0 // pred_region
    _
  $region13: #{fused_forward.1} parent=0 // pred_fallthru
    _
  // Predicated region
  $region14: #{fused_forward.1} parent=0 // pred_check
    _
  $region15: #{fused_forward.1} parent=0 // pred_check_branch
    %3303 = sbr.rel (0) target = $region17
  $region16: #{fused_forward.1} parent=0 // pred_region
    _
  $region17: #{fused_forward.1} parent=0 // pred_fallthru
    _

</llo_original>
